<compile_context>
chip_gen: v5e
topology: v5e:2x2
jax: 0.10.0
libtpu: 0.0.40
codegen_flags: <defaults>
</compile_context>

<pallas_src>
import jax
import jax.numpy as jnp
from jax.experimental import pallas as pl
from jax.experimental.pallas import tpu as pltpu

_DELTA = 1.0  # NOTE: backpropAPLoss.forward hard-codes delta = 1.0 regardless of ctor arg.


def _ap_pair_kernel(xr_ref, xc_ref, m_ref, ab_ref):
    """One anchor block vs one "others" block.

    xr_ref: (1, TR)   anchors, pre-scaled and pre-biased: x/(2d) - 0.5  (lanes)
    xc_ref: (TC, 1)   others,  pre-scaled:               x/(2d)        (sublanes)
    m_ref:  (2, TC)   row 0 = positive mask, row 1 = valid-negative mask
    ab_ref: (2, TR)   accumulator output (a row, b row), lane-dense,
                      resident across the j (reduction) grid axis.
    """
    @pl.when(pl.program_id(1) == 0)
    def _():
        ab_ref[...] = jnp.zeros_like(ab_ref)

    # t[c, r] = clip((x[c] - x[r]) / (2*delta) + 0.5, 0, 1)  -- sub + clip only.
    t = jnp.clip(xc_ref[...] - xr_ref[...], 0.0, 1.0)          # (TC, TR)
    # Masked reductions over the "others" axis as one MXU matmul.
    ab_ref[...] += jnp.dot(m_ref[...], t, preferred_element_type=jnp.float32)


def _pairwise_sums(x, pos_mask_f, neg_mask_f):
    """For each element i: a_i = sum_j pos_j*clamp(.), b_i = sum_j neg_j*clamp(.)."""
    M = x.shape[0]
    TR = 256
    TC_MAX = 2048
    Mp = int(pl.cdiv(M, TR)) * TR              # multiple of 256
    if Mp > TC_MAX:
        Mp = int(pl.cdiv(Mp, TC_MAX)) * TC_MAX  # keep TC | Mp for large M
    TC = min(Mp, TC_MAX)
    pad = Mp - M

    inv2d = 1.0 / (2.0 * _DELTA)
    xs = x.astype(jnp.float32) * inv2d
    # Fold the +0.5 bias into the anchors (O(M) work saves O(M^2) kernel ops).
    xr = jnp.pad(xs - 0.5, (0, pad)).reshape(1, Mp)     # anchors along lanes
    xc = jnp.pad(xs, (0, pad)).reshape(Mp, 1)           # others along sublanes
    masks = jnp.stack([jnp.pad(pos_mask_f, (0, pad)),
                       jnp.pad(neg_mask_f, (0, pad))], axis=0)   # (2, Mp), lane-dense

    grid = (Mp // TR, Mp // TC)
    ab = pl.pallas_call(
        _ap_pair_kernel,
        out_shape=jax.ShapeDtypeStruct((2, Mp), jnp.float32),
        grid_spec=pltpu.PrefetchScalarGridSpec(
            num_scalar_prefetch=0,
            grid=grid,
            in_specs=[
                pl.BlockSpec((1, TR), lambda i, j: (0, i)),   # anchors (scaled+biased)
                pl.BlockSpec((TC, 1), lambda i, j: (j, 0)),   # others (scaled)
                pl.BlockSpec((2, TC), lambda i, j: (0, j)),   # stacked pos/neg masks
            ],
            out_specs=pl.BlockSpec((2, TR), lambda i, j: (0, i)),  # lane-dense a/b
        ),
        compiler_params=pltpu.CompilerParams(
            dimension_semantics=("parallel", "arbitrary")),
    )(xr, xc, masks)
    return ab[0, :M], ab[1, :M]


def _loss_from_pairwise(x, t, pos, a, b):
    """Shared O(M) glue: running-max precision over ascending positives -> 1 - AP."""
    fg_num = jnp.sum(pos.astype(jnp.float32))
    a = a + 0.5                                  # torch: a = sum(tmp1) + 0.5
    prec_raw = jnp.where(pos, a / (a + b), -jnp.inf)

    # Replicate the ascending-logit loop with a running max (cummax): sort the
    # positives by logit (non-positives pushed to the end with +inf keys).
    key = jnp.where(pos, x, jnp.inf)
    order = jnp.argsort(key)
    prec_cm = jax.lax.cummax(prec_raw[order], axis=0)

    ap = jnp.sum(jnp.where(pos[order], prec_cm, 0.0)) / jnp.maximum(fg_num, 1.0)
    loss = 1.0 - ap

    has_pos = jnp.max(t) > 0
    return jnp.where(has_pos, loss, jnp.float32(0.0))


def ap_loss(logits, targets, positive_label=1, negative_label=0):
    """Forward of backpropAPLoss: returns 1 - AP (scalar).

    If max(targets) <= 0 the PyTorch code returns a zeros(1) tensor; here we
    return the scalar 0.0 for that case.
    """
    x = logits.reshape(-1).astype(jnp.float32)
    t = targets.reshape(-1)

    pos = (t == positive_label)
    neg = (t == negative_label)

    min_pos = jnp.min(jnp.where(pos, x, jnp.inf))
    valid_neg = neg & (x >= min_pos - _DELTA)

    a, b = _pairwise_sums(x, pos.astype(jnp.float32), valid_neg.astype(jnp.float32))
    # TODO(synk): ctx.grad side-effect (gradient caching for backward) is not reproduced.
    return _loss_from_pairwise(x, t, pos, a, b)


if __name__ == "__main__":
    key = jax.random.PRNGKey(0)
    k1, k2 = jax.random.split(key)
    B, C, H, W = 2, 4, 16, 16                     # M = 2048 elements
    logits = jax.random.normal(k1, (B, C, H, W), dtype=jnp.float32)
    targets = (jax.random.uniform(k2, (B, C, H, W)) < 0.1).astype(jnp.int32)  # 1=pos, 0=neg

    loss = ap_loss(logits, targets)
    jax.block_until_ready(loss)

    # --- sanity checks: kernel pairwise sums vs dense high-precision JAX ----
    xf = logits.reshape(-1).astype(jnp.float32)
    tf = targets.reshape(-1)
    posf = (tf == 1).astype(jnp.float32)
    min_pos = jnp.min(jnp.where(posf > 0, xf, jnp.inf))
    negf = ((tf == 0) & (xf >= min_pos - _DELTA)).astype(jnp.float32)

    clamped = jnp.clip((xf[None, :] - xf[:, None]) * (1.0 / (2.0 * _DELTA)) + 0.5, 0.0, 1.0)
    a_ref = jnp.dot(clamped, posf, precision=jax.lax.Precision.HIGHEST)
    b_ref = jnp.dot(clamped, negf, precision=jax.lax.Precision.HIGHEST)
    a_k, b_k = _pairwise_sums(xf, posf, negf)

    a_scale = float(jnp.max(jnp.abs(a_ref))) + 1.0
    b_scale = float(jnp.max(jnp.abs(b_ref))) + 1.0
    assert float(jnp.max(jnp.abs(a_k - a_ref))) <= 1e-2 * a_scale
    assert float(jnp.max(jnp.abs(b_k - b_ref))) <= 1e-2 * b_scale

    # Full-loss check against a dense pure-JAX reference using identical glue
    # (tolerance allows for MXU f32 accumulation differences).
    loss_ref = _loss_from_pairwise(xf, tf, tf == 1, a_ref, b_ref)
    assert abs(float(loss) - float(loss_ref)) <= 3e-2
    assert bool(jnp.isfinite(loss))

    print("KERNEL_OK")
</pallas_src>

<mosaic_0001>
module attributes {stable_mosaic.version = 11 : i64} {
  func.func @_ap_pair_kernel(%arg0: i32, %arg1: i32, %arg2: memref<1x256xf32, #tpu.memory_space<vmem>>, %arg3: memref<2048x1xf32, #tpu.memory_space<vmem>>, %arg4: memref<2x2048xf32, #tpu.memory_space<vmem>>, %arg5: memref<2x256xf32, #tpu.memory_space<vmem>>) attributes {dimension_semantics = [#tpu.dimension_semantics<parallel>, #tpu.dimension_semantics<arbitrary>], iteration_bounds = array<i64: 8, 1>, scalar_prefetch = 0 : i64, scratch_operands = 0 : i64, tpu.core_type = #tpu.core_type<tc>, window_params = [{transform_indices = @transform_0, window_bounds = array<i64: 1, 256>}, {transform_indices = @transform_1, window_bounds = array<i64: 2048, 1>}, {transform_indices = @transform_2, window_bounds = array<i64: 2, 2048>}, {transform_indices = @transform_3, window_bounds = array<i64: 2, 256>}]} {
    %c0_i32 = arith.constant 0 : i32
    %0 = arith.cmpi eq, %arg1, %c0_i32 : i32
    %1 = arith.extui %0 : i1 to i32
    %c0_i32_0 = arith.constant 0 : i32
    %2 = arith.cmpi ne, %1, %c0_i32_0 : i32
    scf.if %2 {
      %cst_12 = arith.constant 0.000000e+00 : f32
      %17 = vector.broadcast %cst_12 : f32 to vector<2x256xf32>
      %c0_13 = arith.constant 0 : index
      %c0_14 = arith.constant 0 : index
      %18 = vector.load %arg5[%c0_13, %c0_14] : memref<2x256xf32, #tpu.memory_space<vmem>>, vector<2x256xf32>
      tpu.vector_store %arg5[%c0_13, %c0_14], %17 {strides = array<i32>} : memref<2x256xf32, #tpu.memory_space<vmem>>, vector<2x256xf32>,
    } else {
    }
    %c0 = arith.constant 0 : index
    %c0_1 = arith.constant 0 : index
    %3 = vector.load %arg3[%c0, %c0_1] : memref<2048x1xf32, #tpu.memory_space<vmem>>, vector<2048x1xf32>
    %c0_2 = arith.constant 0 : index
    %c0_3 = arith.constant 0 : index
    %4 = vector.load %arg2[%c0_2, %c0_3] : memref<1x256xf32, #tpu.memory_space<vmem>>, vector<1x256xf32>
    %5 = vector.broadcast %3 : vector<2048x1xf32> to vector<2048x256xf32>
    %6 = vector.broadcast %4 : vector<1x256xf32> to vector<2048x256xf32>
    %7 = arith.subf %5, %6 : vector<2048x256xf32>
    %cst = arith.constant 0.000000e+00 : f32
    %cst_4 = arith.constant 1.000000e+00 : f32
    %8 = vector.broadcast %cst : f32 to vector<2048x256xf32>
    %9 = arith.maximumf %8, %7 : vector<2048x256xf32>
    %10 = vector.broadcast %cst_4 : f32 to vector<2048x256xf32>
    %11 = arith.minimumf %10, %9 : vector<2048x256xf32>
    %c0_5 = arith.constant 0 : index
    %c0_6 = arith.constant 0 : index
    %12 = vector.load %arg5[%c0_5, %c0_6] : memref<2x256xf32, #tpu.memory_space<vmem>>, vector<2x256xf32>
    %c0_7 = arith.constant 0 : index
    %c0_8 = arith.constant 0 : index
    %13 = vector.load %arg4[%c0_7, %c0_8] : memref<2x2048xf32, #tpu.memory_space<vmem>>, vector<2x2048xf32>
    %cst_9 = arith.constant dense<0.000000e+00> : vector<2x256xf32>
    %14 = tpu.matmul %13, %11, %cst_9 {dimension_numbers = #tpu.dot_dimension_numbers<[1], [0], [0], [1], [0, 0, 1, 1], [], []>} : vector<2x2048xf32>, vector<2048x256xf32>, vector<2x256xf32> -> vector<2x256xf32>
    %15 = arith.addf %12, %14 : vector<2x256xf32>
    %c0_10 = arith.constant 0 : index
    %c0_11 = arith.constant 0 : index
    %16 = vector.load %arg5[%c0_10, %c0_11] : memref<2x256xf32, #tpu.memory_space<vmem>>, vector<2x256xf32>
    tpu.vector_store %arg5[%c0_10, %c0_11], %15 {strides = array<i32>} : memref<2x256xf32, #tpu.memory_space<vmem>>, vector<2x256xf32>,
    return
  }
  func.func @transform_0(%arg0: i32, %arg1: i32) -> (i32, i32) {
    %c0_i32 = arith.constant 0 : i32
    %c0_i32_0 = arith.constant 0 : i32
    return %c0_i32, %arg0 : i32, i32
  }
  func.func @transform_1(%arg0: i32, %arg1: i32) -> (i32, i32) {
    %c0_i32 = arith.constant 0 : i32
    %c0_i32_0 = arith.constant 0 : i32
    return %arg1, %c0_i32 : i32, i32
  }
  func.func @transform_2(%arg0: i32, %arg1: i32) -> (i32, i32) {
    %c0_i32 = arith.constant 0 : i32
    %c0_i32_0 = arith.constant 0 : i32
    return %c0_i32, %arg1 : i32, i32
  }
  func.func @transform_3(%arg0: i32, %arg1: i32) -> (i32, i32) {
    %c0_i32 = arith.constant 0 : i32
    %c0_i32_0 = arith.constant 0 : i32
    return %c0_i32, %arg0 : i32, i32
  }
}

</mosaic_0001>

<llo_original>
// kernel: tpu_custom_call.1
$region0: #{tpu_custom_call.1}
  #allocation0 [shape = 'u32[]', space=smem, size = 0x4, offset = 0x4, fixed_abs, tag = 'smem constant byte address 0x4 - core index']
  #allocation1 [shape = 'u32[72,128]{1,0:T(1,128)}', space=vmem, size = 0x9000, scoped, tag = 'internal scratch']
  %s0 = inlined_call_operand.vmem [shape: f32[1,2048], index: 0, kind: input, shape index: {}]
  %s1 = inlined_call_operand.vmem [shape: f32[2048,1], index: 1, kind: input, shape index: {}]
  %s2 = inlined_call_operand.vmem [shape: f32[2,2048], index: 2, kind: input, shape index: {}]
  %s3 = inlined_call_operand.hbm [shape: f32[2,2048], index: 3, kind: output, shape index: {}]
  %s4 = sld [smem:[#allocation0]]
  $region49: #{tpu_custom_call.1} parent=0
    _
  %s6 = ssub.s32 1, %s4
  %s7 = scalar_select 0, %s6, %s4
  $region1: #{tpu_custom_call.1} parent=0
    #allocation2 [shape = 'u8[4096]{0}', space=vmem, size = 0x1000, scoped, tag = 'output window, operand 0']
    #allocation3 [shape = 's32[2]{0}', space=sflag, size = 0x8, scoped, tag = 'scoped memory for tpu_custom_call.1']
    %8 = vsyncpa [#allocation3], 0
    %s9 = scalar_lea.sflag [#allocation3], 1
    %10 = vsyncpa %s9, 0
    loop: start=0, step=1, limit=10
    $region2: #{tpu_custom_call.1} parent=1 // loop_pre_header
      _
    $region3: #{tpu_custom_call.1} parent=1 // loop_header
      %s12 = sphi 0, %s16
      %p13 = scmp.ge.s32.totalorder %s12, 10
      %s19 = sphi 0, %s31
      %s20 = sphi 0, %s27
      %s21 = sphi 0, %s19
      %s22 = sphi 0, %s20
      %s23 = sphi 0, %s21
      %s24 = sphi 0, %s22
      %s34 = sphi 0, %s36
      %s37 = sphi 0, %s34
      %s38 = sphi 0, %s37
      %s54 = sphi 0, %s38
      %s60 = sphi 0, %s62
      %s63 = sphi 0, %s60
      %s64 = sphi 0, %s63
      %s80 = sphi 0, %s64
      %s86 = sphi 0, %s88
      %s89 = sphi 0, %s86
      %s90 = sphi 0, %s89
      %s106 = sphi 0, %s90
      %s112 = sphi 0, %s114
      %s115 = sphi 0, %s112
      %s116 = sphi 0, %s115
      %s132 = sphi 0, %s116
    $region4: #{tpu_custom_call.1} parent=1 // loop_header_branch
      %15 = sbr.rel (%p13) target = $region8
    $region5: #{tpu_custom_call.1} parent=1 // loop_body
      %s17 = ssub.s32 %s12, 1
      %s18 = ssub.s32 %s12, 2
      %s25 = sadd.s32 1, %s20
      %p26 = scmp.ge.s32.totalorder %s25, 1
      %s27 = scalar_select %p26, 0, %s25
      %s28 = sadd.s32 1, %s19
      %s29 = scalar_select %p26, %s28, %s19
      %p30 = scmp.ge.s32.totalorder %s29, 8
      %s31 = scalar_select %p30, 0, %s29
      %s32 = ssub.s32 %s19, %s31
      %p33 = scmp.eq.s32.totalorder %s32, 0
      %s35 = sadd.s32 %s34, 1
      %s36 = scalar_select %p33, %s34, %s35
      %p39 = pneg %p33
      %p40 = scmp.eq.s32.totalorder %s12, 7
      %p41 = por %p39, %p40
      %p42 = scmp.ne.s32.totalorder %s34, %s37
      %p43 = scmp.eq.s32.totalorder %s12, 0
      %p44 = por %p42, %p43
      %p45 = scmp.ne.s32.totalorder %s34, %s37
      %p46 = scmp.eq.s32.totalorder %s17, 7
      %p47 = por %p45, %p46
      %p48 = scmp.ne.s32.totalorder %s37, %s38
      %p49 = scmp.eq.s32.totalorder %s17, 0
      %p50 = por %p48, %p49
      %p51 = scmp.ne.s32.totalorder %s37, %s38
      %p52 = scmp.eq.s32.totalorder %s18, 7
      %p53 = por %p51, %p52
      %p55 = scmp.ne.s32.totalorder %s38, %s54
      %p56 = scmp.eq.s32.totalorder %s18, 0
      %p57 = por %p55, %p56
      %s58 = ssub.s32 %s20, %s27
      %p59 = scmp.eq.s32.totalorder %s58, 0
      %s61 = sadd.s32 %s60, 1
      %s62 = scalar_select %p59, %s60, %s61
      %p65 = pneg %p59
      %p66 = scmp.eq.s32.totalorder %s12, 7
      %p67 = por %p65, %p66
      %p68 = scmp.ne.s32.totalorder %s60, %s63
      %p69 = scmp.eq.s32.totalorder %s12, 0
      %p70 = por %p68, %p69
      %p71 = scmp.ne.s32.totalorder %s60, %s63
      %p72 = scmp.eq.s32.totalorder %s17, 7
      %p73 = por %p71, %p72
      %p74 = scmp.ne.s32.totalorder %s63, %s64
      %p75 = scmp.eq.s32.totalorder %s17, 0
      %p76 = por %p74, %p75
      %p77 = scmp.ne.s32.totalorder %s63, %s64
      %p78 = scmp.eq.s32.totalorder %s18, 7
      %p79 = por %p77, %p78
      %p81 = scmp.ne.s32.totalorder %s64, %s80
      %p82 = scmp.eq.s32.totalorder %s18, 0
      %p83 = por %p81, %p82
      %s84 = ssub.s32 %s20, %s27
      %p85 = scmp.eq.s32.totalorder %s84, 0
      %s87 = sadd.s32 %s86, 1
      %s88 = scalar_select %p85, %s86, %s87
      %p91 = pneg %p85
      %p92 = scmp.eq.s32.totalorder %s12, 7
      %p93 = por %p91, %p92
      %p94 = scmp.ne.s32.totalorder %s86, %s89
      %p95 = scmp.eq.s32.totalorder %s12, 0
      %p96 = por %p94, %p95
      %p97 = scmp.ne.s32.totalorder %s86, %s89
      %p98 = scmp.eq.s32.totalorder %s17, 7
      %p99 = por %p97, %p98
      %p100 = scmp.ne.s32.totalorder %s89, %s90
      %p101 = scmp.eq.s32.totalorder %s17, 0
      %p102 = por %p100, %p101
      %p103 = scmp.ne.s32.totalorder %s89, %s90
      %p104 = scmp.eq.s32.totalorder %s18, 7
      %p105 = por %p103, %p104
      %p107 = scmp.ne.s32.totalorder %s90, %s106
      %p108 = scmp.eq.s32.totalorder %s18, 0
      %p109 = por %p107, %p108
      %s110 = ssub.s32 %s19, %s31
      %p111 = scmp.eq.s32.totalorder %s110, 0
      %s113 = sadd.s32 %s112, 1
      %s114 = scalar_select %p111, %s112, %s113
      %p117 = pneg %p111
      %p118 = scmp.eq.s32.totalorder %s12, 7
      %p119 = por %p117, %p118
      %p120 = scmp.ne.s32.totalorder %s112, %s115
      %p121 = scmp.eq.s32.totalorder %s12, 0
      %p122 = por %p120, %p121
      %p123 = scmp.ne.s32.totalorder %s112, %s115
      %p124 = scmp.eq.s32.totalorder %s17, 7
      %p125 = por %p123, %p124
      %p126 = scmp.ne.s32.totalorder %s115, %s116
      %p127 = scmp.eq.s32.totalorder %s17, 0
      %p128 = por %p126, %p127
      %p129 = scmp.ne.s32.totalorder %s115, %s116
      %p130 = scmp.eq.s32.totalorder %s18, 7
      %p131 = por %p129, %p130
      %p133 = scmp.ne.s32.totalorder %s116, %s132
      %p134 = scmp.eq.s32.totalorder %s18, 0
      %p135 = por %p133, %p134
      %p136 = scmp.le.s32.totalorder 1, %s12
      %p137 = scmp.lt.s32.totalorder %s12, 9
      %p138 = pnand %p136, %p137
      %p139 = pneg %p138
      // Predicated region
      $region9: #{tpu_custom_call.1} parent=5 // pred_check
        _
      $region10: #{tpu_custom_call.1} parent=5 // pred_check_branch
        %141 = sbr.rel (%p138) target = $region12
      $region11: #{tpu_custom_call.1} parent=5 // pred_region
        %s142 = ssub.s32 %s12, 1
        // Predicated region
        $region13: #{tpu_custom_call.1} parent=11 // pred_check
          %p143 = pneg %p76
        $region14: #{tpu_custom_call.1} parent=11 // pred_check_branch
          %145 = sbr.rel (%p143) target = $region16
        $region15: #{tpu_custom_call.1} parent=11 // pred_region
          %s146 = smul.u32 256, %s22
          %p147 = scmp.lt.s32.totalorder %s146, 255
          %s148 = scalar_select %p147, %s146, 255
          %s149 = smul.addr %s148, 8
          %s150 = scalar_lea.vmem %s1, %s149
          %s151 = smul.u32 256, %s22
        $region16: #{tpu_custom_call.1} parent=11 // pred_fallthru
          _
        // Predicated region
        $region17: #{tpu_custom_call.1} parent=11 // pred_check
          %p152 = pneg %p102
        $region18: #{tpu_custom_call.1} parent=11 // pred_check_branch
          %154 = sbr.rel (%p152) target = $region20
        $region19: #{tpu_custom_call.1} parent=11 // pred_region
          %s155 = smul.u32 16, %s22
          %p156 = scmp.lt.s32.totalorder %s155, 15
          %s157 = scalar_select %p156, %s155, 15
          %s158 = smul.addr %s157, 2
          %s159 = scalar_lea.vmem %s2, %s158
          %s160 = smul.u32 16, %s22
        $region20: #{tpu_custom_call.1} parent=11 // pred_fallthru
          _
      $region12: #{tpu_custom_call.1} parent=5 // pred_fallthru
        _
      %p161 = scmp.lt.s32.totalorder %s12, 8
      // Predicated region
      $region21: #{tpu_custom_call.1} parent=5 // pred_check
        %p162 = pneg %p161
      $region22: #{tpu_custom_call.1} parent=5 // pred_check_branch
        %164 = sbr.rel (%p162) target = $region24
      $region23: #{tpu_custom_call.1} parent=5 // pred_region
        // Predicated region
        $region25: #{tpu_custom_call.1} parent=23 // pred_check
          %p165 = pneg %p44
        $region26: #{tpu_custom_call.1} parent=23 // pred_check_branch
          %167 = sbr.rel (%p165) target = $region28
        $region27: #{tpu_custom_call.1} parent=23 // pred_region
          %s168 = smul.u32 2, %s19
          %p169 = scmp.lt.s32.totalorder %s168, 15
          %s170 = scalar_select %p169, %s168, 15
          %s171 = scalar_lea.vmem %s0, %s170
          %s172 = smul.u32 2, %s19
        $region28: #{tpu_custom_call.1} parent=23 // pred_fallthru
          _
      $region24: #{tpu_custom_call.1} parent=5 // pred_fallthru
        _
      %p173 = scmp.le.s32.totalorder 1, %s12
      %p174 = scmp.lt.s32.totalorder %s12, 9
      %p175 = pnand %p173, %p174
      %p176 = pneg %p175
      // Predicated region
      $region29: #{tpu_custom_call.1} parent=5 // pred_check
        _
      $region30: #{tpu_custom_call.1} parent=5 // pred_check_branch
        %178 = sbr.rel (%p175) target = $region32
      $region31: #{tpu_custom_call.1} parent=5 // pred_region
        %s179 = ssub.s32 %s12, 1
        %s180 = smul.u32 2, %s21
        %p181 = scmp.lt.s32.totalorder %s180, 15
        %s182 = scalar_select %p181, %s180, 15
        %s183 = scalar_lea.vmem %s0, %s182
        %p184 = pneg %p50
        %p185 = pneg %p47
        %s186 = smul.u32 256, %s22
        %p187 = scmp.lt.s32.totalorder %s186, 255
        %s188 = scalar_select %p187, %s186, 255
        %s189 = smul.addr %s188, 8
        %s190 = scalar_lea.vmem %s1, %s189
        %p191 = pneg %p76
        %p192 = pneg %p73
        %s193 = smul.u32 16, %s22
        %p194 = scmp.lt.s32.totalorder %s193, 15
        %s195 = scalar_select %p194, %s193, 15
        %s196 = smul.addr %s195, 2
        %s197 = scalar_lea.vmem %s2, %s196
        %p198 = pneg %p102
        %p199 = pneg %p99
        %p200 = pneg %p128
        %p201 = pneg %p125
        %s202 = sand.u32 %s115, 1
        %s203 = scalar_lea.sflag [#allocation3], %s202
        %s204 = sand.u32 %s115, 1
        %s205 = smul.addr %s204, 4
        %s206 = scalar_lea.vmem [#allocation2], %s205
        %s207 = smul.u32 2, %s21
        %p208 = scmp.lt.s32.totalorder %s207, 15
        %s209 = scalar_select %p208, %s207, 15
        %s210 = scalar_lea.vmem %s0, %s209
        %s211 = smul.u32 2, %s21
        %s212 = smul.u32 256, %s22
        %p213 = scmp.lt.s32.totalorder %s212, 255
        %s214 = scalar_select %p213, %s212, 255
        %s215 = smul.addr %s214, 8
        %s216 = scalar_lea.vmem %s1, %s215
        %s217 = smul.u32 256, %s22
        %s218 = smul.u32 16, %s22
        %p219 = scmp.lt.s32.totalorder %s218, 15
        %s220 = scalar_select %p219, %s218, 15
        %s221 = smul.addr %s220, 2
        %s222 = scalar_lea.vmem %s2, %s221
        %s223 = smul.u32 16, %s22
        %s224 = smul.u32 2, %s21
        %p225 = scmp.eq.s32.totalorder %s22, 0
        // Predicated region
        $region33: #{tpu_custom_call.1} parent=31 // pred_check
          %p226 = pneg %p225
        $region34: #{tpu_custom_call.1} parent=31 // pred_check_branch
          %228 = sbr.rel (%p226) target = $region36
        $region35: #{tpu_custom_call.1} parent=31 // pred_region
          %229 = vst [vmem:[%s206] sm:$0xf] 0.0
        $region36: #{tpu_custom_call.1} parent=31 // pred_fallthru
          _
        %v230 = vld [vmem:[%s216] sm:$0xff]
        %v231 = vld [vmem:[%s216 + $0x8] sm:$0xff]
        %v232 = vld [vmem:[%s216 + $0x10] sm:$0xff]
        %v233 = vld [vmem:[%s216 + $0x18] sm:$0xff]
        %v234 = vld [vmem:[%s216 + $0x20] sm:$0xff]
        %v235 = vld [vmem:[%s216 + $0x28] sm:$0xff]
        %v236 = vld [vmem:[%s216 + $0x30] sm:$0xff]
        %v237 = vld [vmem:[%s216 + $0x38] sm:$0xff]
        %v238 = vld [vmem:[%s216 + $0x40] sm:$0xff]
        %v239 = vld [vmem:[%s216 + $0x48] sm:$0xff]
        %v240 = vld [vmem:[%s216 + $0x50] sm:$0xff]
        %v241 = vld [vmem:[%s216 + $0x58] sm:$0xff]
        %v242 = vld [vmem:[%s216 + $0x60] sm:$0xff]
        %v243 = vld [vmem:[%s216 + $0x68] sm:$0xff]
        %v244 = vld [vmem:[%s216 + $0x70] sm:$0xff]
        %v245 = vld [vmem:[%s216 + $0x78] sm:$0xff]
        %v246 = vld [vmem:[%s216 + $0x80] sm:$0xff]
        %v247 = vld [vmem:[%s216 + $0x88] sm:$0xff]
        %v248 = vld [vmem:[%s216 + $0x90] sm:$0xff]
        %v249 = vld [vmem:[%s216 + $0x98] sm:$0xff]
        %v250 = vld [vmem:[%s216 + $0xa0] sm:$0xff]
        %v251 = vld [vmem:[%s216 + $0xa8] sm:$0xff]
        %v252 = vld [vmem:[%s216 + $0xb0] sm:$0xff]
        %v253 = vld [vmem:[%s216 + $0xb8] sm:$0xff]
        %v254 = vld [vmem:[%s216 + $0xc0] sm:$0xff]
        %v255 = vld [vmem:[%s216 + $0xc8] sm:$0xff]
        %v256 = vld [vmem:[%s216 + $0xd0] sm:$0xff]
        %v257 = vld [vmem:[%s216 + $0xd8] sm:$0xff]
        %v258 = vld [vmem:[%s216 + $0xe0] sm:$0xff]
        %v259 = vld [vmem:[%s216 + $0xe8] sm:$0xff]
        %v260 = vld [vmem:[%s216 + $0xf0] sm:$0xff]
        %v261 = vld [vmem:[%s216 + $0xf8] sm:$0xff]
        %v262 = vld [vmem:[%s216 + $0x100] sm:$0xff]
        %v263 = vld [vmem:[%s216 + $0x108] sm:$0xff]
        %v264 = vld [vmem:[%s216 + $0x110] sm:$0xff]
        %v265 = vld [vmem:[%s216 + $0x118] sm:$0xff]
        %v266 = vld [vmem:[%s216 + $0x120] sm:$0xff]
        %v267 = vld [vmem:[%s216 + $0x128] sm:$0xff]
        %v268 = vld [vmem:[%s216 + $0x130] sm:$0xff]
        %v269 = vld [vmem:[%s216 + $0x138] sm:$0xff]
        %v270 = vld [vmem:[%s216 + $0x140] sm:$0xff]
        %v271 = vld [vmem:[%s216 + $0x148] sm:$0xff]
        %v272 = vld [vmem:[%s216 + $0x150] sm:$0xff]
        %v273 = vld [vmem:[%s216 + $0x158] sm:$0xff]
        %v274 = vld [vmem:[%s216 + $0x160] sm:$0xff]
        %v275 = vld [vmem:[%s216 + $0x168] sm:$0xff]
        %v276 = vld [vmem:[%s216 + $0x170] sm:$0xff]
        %v277 = vld [vmem:[%s216 + $0x178] sm:$0xff]
        %v278 = vld [vmem:[%s216 + $0x180] sm:$0xff]
        %v279 = vld [vmem:[%s216 + $0x188] sm:$0xff]
        %v280 = vld [vmem:[%s216 + $0x190] sm:$0xff]
        %v281 = vld [vmem:[%s216 + $0x198] sm:$0xff]
        %v282 = vld [vmem:[%s216 + $0x1a0] sm:$0xff]
        %v283 = vld [vmem:[%s216 + $0x1a8] sm:$0xff]
        %v284 = vld [vmem:[%s216 + $0x1b0] sm:$0xff]
        %v285 = vld [vmem:[%s216 + $0x1b8] sm:$0xff]
        %v286 = vld [vmem:[%s216 + $0x1c0] sm:$0xff]
        %v287 = vld [vmem:[%s216 + $0x1c8] sm:$0xff]
        %v288 = vld [vmem:[%s216 + $0x1d0] sm:$0xff]
        %v289 = vld [vmem:[%s216 + $0x1d8] sm:$0xff]
        %v290 = vld [vmem:[%s216 + $0x1e0] sm:$0xff]
        %v291 = vld [vmem:[%s216 + $0x1e8] sm:$0xff]
        %v292 = vld [vmem:[%s216 + $0x1f0] sm:$0xff]
        %v293 = vld [vmem:[%s216 + $0x1f8] sm:$0xff]
        %v294 = vld [vmem:[%s216 + $0x200] sm:$0xff]
        %v295 = vld [vmem:[%s216 + $0x208] sm:$0xff]
        %v296 = vld [vmem:[%s216 + $0x210] sm:$0xff]
        %v297 = vld [vmem:[%s216 + $0x218] sm:$0xff]
        %v298 = vld [vmem:[%s216 + $0x220] sm:$0xff]
        %v299 = vld [vmem:[%s216 + $0x228] sm:$0xff]
        %v300 = vld [vmem:[%s216 + $0x230] sm:$0xff]
        %v301 = vld [vmem:[%s216 + $0x238] sm:$0xff]
        %v302 = vld [vmem:[%s216 + $0x240] sm:$0xff]
        %v303 = vld [vmem:[%s216 + $0x248] sm:$0xff]
        %v304 = vld [vmem:[%s216 + $0x250] sm:$0xff]
        %v305 = vld [vmem:[%s216 + $0x258] sm:$0xff]
        %v306 = vld [vmem:[%s216 + $0x260] sm:$0xff]
        %v307 = vld [vmem:[%s216 + $0x268] sm:$0xff]
        %v308 = vld [vmem:[%s216 + $0x270] sm:$0xff]
        %v309 = vld [vmem:[%s216 + $0x278] sm:$0xff]
        %v310 = vld [vmem:[%s216 + $0x280] sm:$0xff]
        %v311 = vld [vmem:[%s216 + $0x288] sm:$0xff]
        %v312 = vld [vmem:[%s216 + $0x290] sm:$0xff]
        %v313 = vld [vmem:[%s216 + $0x298] sm:$0xff]
        %v314 = vld [vmem:[%s216 + $0x2a0] sm:$0xff]
        %v315 = vld [vmem:[%s216 + $0x2a8] sm:$0xff]
        %v316 = vld [vmem:[%s216 + $0x2b0] sm:$0xff]
        %v317 = vld [vmem:[%s216 + $0x2b8] sm:$0xff]
        %v318 = vld [vmem:[%s216 + $0x2c0] sm:$0xff]
        %v319 = vld [vmem:[%s216 + $0x2c8] sm:$0xff]
        %v320 = vld [vmem:[%s216 + $0x2d0] sm:$0xff]
        %v321 = vld [vmem:[%s216 + $0x2d8] sm:$0xff]
        %v322 = vld [vmem:[%s216 + $0x2e0] sm:$0xff]
        %v323 = vld [vmem:[%s216 + $0x2e8] sm:$0xff]
        %v324 = vld [vmem:[%s216 + $0x2f0] sm:$0xff]
        %v325 = vld [vmem:[%s216 + $0x2f8] sm:$0xff]
        %v326 = vld [vmem:[%s216 + $0x300] sm:$0xff]
        %v327 = vld [vmem:[%s216 + $0x308] sm:$0xff]
        %v328 = vld [vmem:[%s216 + $0x310] sm:$0xff]
        %v329 = vld [vmem:[%s216 + $0x318] sm:$0xff]
        %v330 = vld [vmem:[%s216 + $0x320] sm:$0xff]
        %v331 = vld [vmem:[%s216 + $0x328] sm:$0xff]
        %v332 = vld [vmem:[%s216 + $0x330] sm:$0xff]
        %v333 = vld [vmem:[%s216 + $0x338] sm:$0xff]
        %v334 = vld [vmem:[%s216 + $0x340] sm:$0xff]
        %v335 = vld [vmem:[%s216 + $0x348] sm:$0xff]
        %v336 = vld [vmem:[%s216 + $0x350] sm:$0xff]
        %v337 = vld [vmem:[%s216 + $0x358] sm:$0xff]
        %v338 = vld [vmem:[%s216 + $0x360] sm:$0xff]
        %v339 = vld [vmem:[%s216 + $0x368] sm:$0xff]
        %v340 = vld [vmem:[%s216 + $0x370] sm:$0xff]
        %v341 = vld [vmem:[%s216 + $0x378] sm:$0xff]
        %v342 = vld [vmem:[%s216 + $0x380] sm:$0xff]
        %v343 = vld [vmem:[%s216 + $0x388] sm:$0xff]
        %v344 = vld [vmem:[%s216 + $0x390] sm:$0xff]
        %v345 = vld [vmem:[%s216 + $0x398] sm:$0xff]
        %v346 = vld [vmem:[%s216 + $0x3a0] sm:$0xff]
        %v347 = vld [vmem:[%s216 + $0x3a8] sm:$0xff]
        %v348 = vld [vmem:[%s216 + $0x3b0] sm:$0xff]
        %v349 = vld [vmem:[%s216 + $0x3b8] sm:$0xff]
        %v350 = vld [vmem:[%s216 + $0x3c0] sm:$0xff]
        %v351 = vld [vmem:[%s216 + $0x3c8] sm:$0xff]
        %v352 = vld [vmem:[%s216 + $0x3d0] sm:$0xff]
        %v353 = vld [vmem:[%s216 + $0x3d8] sm:$0xff]
        %v354 = vld [vmem:[%s216 + $0x3e0] sm:$0xff]
        %v355 = vld [vmem:[%s216 + $0x3e8] sm:$0xff]
        %v356 = vld [vmem:[%s216 + $0x3f0] sm:$0xff]
        %v357 = vld [vmem:[%s216 + $0x3f8] sm:$0xff]
        %v358 = vld [vmem:[%s216 + $0x400] sm:$0xff]
        %v359 = vld [vmem:[%s216 + $0x408] sm:$0xff]
        %v360 = vld [vmem:[%s216 + $0x410] sm:$0xff]
        %v361 = vld [vmem:[%s216 + $0x418] sm:$0xff]
        %v362 = vld [vmem:[%s216 + $0x420] sm:$0xff]
        %v363 = vld [vmem:[%s216 + $0x428] sm:$0xff]
        %v364 = vld [vmem:[%s216 + $0x430] sm:$0xff]
        %v365 = vld [vmem:[%s216 + $0x438] sm:$0xff]
        %v366 = vld [vmem:[%s216 + $0x440] sm:$0xff]
        %v367 = vld [vmem:[%s216 + $0x448] sm:$0xff]
        %v368 = vld [vmem:[%s216 + $0x450] sm:$0xff]
        %v369 = vld [vmem:[%s216 + $0x458] sm:$0xff]
        %v370 = vld [vmem:[%s216 + $0x460] sm:$0xff]
        %v371 = vld [vmem:[%s216 + $0x468] sm:$0xff]
        %v372 = vld [vmem:[%s216 + $0x470] sm:$0xff]
        %v373 = vld [vmem:[%s216 + $0x478] sm:$0xff]
        %v374 = vld [vmem:[%s216 + $0x480] sm:$0xff]
        %v375 = vld [vmem:[%s216 + $0x488] sm:$0xff]
        %v376 = vld [vmem:[%s216 + $0x490] sm:$0xff]
        %v377 = vld [vmem:[%s216 + $0x498] sm:$0xff]
        %v378 = vld [vmem:[%s216 + $0x4a0] sm:$0xff]
        %v379 = vld [vmem:[%s216 + $0x4a8] sm:$0xff]
        %v380 = vld [vmem:[%s216 + $0x4b0] sm:$0xff]
        %v381 = vld [vmem:[%s216 + $0x4b8] sm:$0xff]
        %v382 = vld [vmem:[%s216 + $0x4c0] sm:$0xff]
        %v383 = vld [vmem:[%s216 + $0x4c8] sm:$0xff]
        %v384 = vld [vmem:[%s216 + $0x4d0] sm:$0xff]
        %v385 = vld [vmem:[%s216 + $0x4d8] sm:$0xff]
        %v386 = vld [vmem:[%s216 + $0x4e0] sm:$0xff]
        %v387 = vld [vmem:[%s216 + $0x4e8] sm:$0xff]
        %v388 = vld [vmem:[%s216 + $0x4f0] sm:$0xff]
        %v389 = vld [vmem:[%s216 + $0x4f8] sm:$0xff]
        %v390 = vld [vmem:[%s216 + $0x500] sm:$0xff]
        %v391 = vld [vmem:[%s216 + $0x508] sm:$0xff]
        %v392 = vld [vmem:[%s216 + $0x510] sm:$0xff]
        %v393 = vld [vmem:[%s216 + $0x518] sm:$0xff]
        %v394 = vld [vmem:[%s216 + $0x520] sm:$0xff]
        %v395 = vld [vmem:[%s216 + $0x528] sm:$0xff]
        %v396 = vld [vmem:[%s216 + $0x530] sm:$0xff]
        %v397 = vld [vmem:[%s216 + $0x538] sm:$0xff]
        %v398 = vld [vmem:[%s216 + $0x540] sm:$0xff]
        %v399 = vld [vmem:[%s216 + $0x548] sm:$0xff]
        %v400 = vld [vmem:[%s216 + $0x550] sm:$0xff]
        %v401 = vld [vmem:[%s216 + $0x558] sm:$0xff]
        %v402 = vld [vmem:[%s216 + $0x560] sm:$0xff]
        %v403 = vld [vmem:[%s216 + $0x568] sm:$0xff]
        %v404 = vld [vmem:[%s216 + $0x570] sm:$0xff]
        %v405 = vld [vmem:[%s216 + $0x578] sm:$0xff]
        %v406 = vld [vmem:[%s216 + $0x580] sm:$0xff]
        %v407 = vld [vmem:[%s216 + $0x588] sm:$0xff]
        %v408 = vld [vmem:[%s216 + $0x590] sm:$0xff]
        %v409 = vld [vmem:[%s216 + $0x598] sm:$0xff]
        %v410 = vld [vmem:[%s216 + $0x5a0] sm:$0xff]
        %v411 = vld [vmem:[%s216 + $0x5a8] sm:$0xff]
        %v412 = vld [vmem:[%s216 + $0x5b0] sm:$0xff]
        %v413 = vld [vmem:[%s216 + $0x5b8] sm:$0xff]
        %v414 = vld [vmem:[%s216 + $0x5c0] sm:$0xff]
        %v415 = vld [vmem:[%s216 + $0x5c8] sm:$0xff]
        %v416 = vld [vmem:[%s216 + $0x5d0] sm:$0xff]
        %v417 = vld [vmem:[%s216 + $0x5d8] sm:$0xff]
        %v418 = vld [vmem:[%s216 + $0x5e0] sm:$0xff]
        %v419 = vld [vmem:[%s216 + $0x5e8] sm:$0xff]
        %v420 = vld [vmem:[%s216 + $0x5f0] sm:$0xff]
        %v421 = vld [vmem:[%s216 + $0x5f8] sm:$0xff]
        %v422 = vld [vmem:[%s216 + $0x600] sm:$0xff]
        %v423 = vld [vmem:[%s216 + $0x608] sm:$0xff]
        %v424 = vld [vmem:[%s216 + $0x610] sm:$0xff]
        %v425 = vld [vmem:[%s216 + $0x618] sm:$0xff]
        %v426 = vld [vmem:[%s216 + $0x620] sm:$0xff]
        %v427 = vld [vmem:[%s216 + $0x628] sm:$0xff]
        %v428 = vld [vmem:[%s216 + $0x630] sm:$0xff]
        %v429 = vld [vmem:[%s216 + $0x638] sm:$0xff]
        %v430 = vld [vmem:[%s216 + $0x640] sm:$0xff]
        %v431 = vld [vmem:[%s216 + $0x648] sm:$0xff]
        %v432 = vld [vmem:[%s216 + $0x650] sm:$0xff]
        %v433 = vld [vmem:[%s216 + $0x658] sm:$0xff]
        %v434 = vld [vmem:[%s216 + $0x660] sm:$0xff]
        %v435 = vld [vmem:[%s216 + $0x668] sm:$0xff]
        %v436 = vld [vmem:[%s216 + $0x670] sm:$0xff]
        %v437 = vld [vmem:[%s216 + $0x678] sm:$0xff]
        %v438 = vld [vmem:[%s216 + $0x680] sm:$0xff]
        %v439 = vld [vmem:[%s216 + $0x688] sm:$0xff]
        %v440 = vld [vmem:[%s216 + $0x690] sm:$0xff]
        %v441 = vld [vmem:[%s216 + $0x698] sm:$0xff]
        %v442 = vld [vmem:[%s216 + $0x6a0] sm:$0xff]
        %v443 = vld [vmem:[%s216 + $0x6a8] sm:$0xff]
        %v444 = vld [vmem:[%s216 + $0x6b0] sm:$0xff]
        %v445 = vld [vmem:[%s216 + $0x6b8] sm:$0xff]
        %v446 = vld [vmem:[%s216 + $0x6c0] sm:$0xff]
        %v447 = vld [vmem:[%s216 + $0x6c8] sm:$0xff]
        %v448 = vld [vmem:[%s216 + $0x6d0] sm:$0xff]
        %v449 = vld [vmem:[%s216 + $0x6d8] sm:$0xff]
        %v450 = vld [vmem:[%s216 + $0x6e0] sm:$0xff]
        %v451 = vld [vmem:[%s216 + $0x6e8] sm:$0xff]
        %v452 = vld [vmem:[%s216 + $0x6f0] sm:$0xff]
        %v453 = vld [vmem:[%s216 + $0x6f8] sm:$0xff]
        %v454 = vld [vmem:[%s216 + $0x700] sm:$0xff]
        %v455 = vld [vmem:[%s216 + $0x708] sm:$0xff]
        %v456 = vld [vmem:[%s216 + $0x710] sm:$0xff]
        %v457 = vld [vmem:[%s216 + $0x718] sm:$0xff]
        %v458 = vld [vmem:[%s216 + $0x720] sm:$0xff]
        %v459 = vld [vmem:[%s216 + $0x728] sm:$0xff]
        %v460 = vld [vmem:[%s216 + $0x730] sm:$0xff]
        %v461 = vld [vmem:[%s216 + $0x738] sm:$0xff]
        %v462 = vld [vmem:[%s216 + $0x740] sm:$0xff]
        %v463 = vld [vmem:[%s216 + $0x748] sm:$0xff]
        %v464 = vld [vmem:[%s216 + $0x750] sm:$0xff]
        %v465 = vld [vmem:[%s216 + $0x758] sm:$0xff]
        %v466 = vld [vmem:[%s216 + $0x760] sm:$0xff]
        %v467 = vld [vmem:[%s216 + $0x768] sm:$0xff]
        %v468 = vld [vmem:[%s216 + $0x770] sm:$0xff]
        %v469 = vld [vmem:[%s216 + $0x778] sm:$0xff]
        %v470 = vld [vmem:[%s216 + $0x780] sm:$0xff]
        %v471 = vld [vmem:[%s216 + $0x788] sm:$0xff]
        %v472 = vld [vmem:[%s216 + $0x790] sm:$0xff]
        %v473 = vld [vmem:[%s216 + $0x798] sm:$0xff]
        %v474 = vld [vmem:[%s216 + $0x7a0] sm:$0xff]
        %v475 = vld [vmem:[%s216 + $0x7a8] sm:$0xff]
        %v476 = vld [vmem:[%s216 + $0x7b0] sm:$0xff]
        %v477 = vld [vmem:[%s216 + $0x7b8] sm:$0xff]
        %v478 = vld [vmem:[%s216 + $0x7c0] sm:$0xff]
        %v479 = vld [vmem:[%s216 + $0x7c8] sm:$0xff]
        %v480 = vld [vmem:[%s216 + $0x7d0] sm:$0xff]
        %v481 = vld [vmem:[%s216 + $0x7d8] sm:$0xff]
        %v482 = vld [vmem:[%s216 + $0x7e0] sm:$0xff]
        %v483 = vld [vmem:[%s216 + $0x7e8] sm:$0xff]
        %v484 = vld [vmem:[%s216 + $0x7f0] sm:$0xff]
        %v485 = vld [vmem:[%s216 + $0x7f8] sm:$0xff]
        %v486 = vld [vmem:[%s210] sm:$0x3]
        %488 = vset.pattern.permute.xlu0 0
        %489 = vperm.xlu0 %488, %v230
        %v490 = vpop.permute.xlu0 %489
        %493 = vset.pattern.permute.xlu0 0
        %494 = vperm.xlu0 %493, %v231
        %v495 = vpop.permute.xlu0 %494
        %498 = vset.pattern.permute.xlu0 0
        %499 = vperm.xlu0 %498, %v232
        %v500 = vpop.permute.xlu0 %499
        %503 = vset.pattern.permute.xlu0 0
        %504 = vperm.xlu0 %503, %v233
        %v505 = vpop.permute.xlu0 %504
        %508 = vset.pattern.permute.xlu0 0
        %509 = vperm.xlu0 %508, %v234
        %v510 = vpop.permute.xlu0 %509
        %513 = vset.pattern.permute.xlu0 0
        %514 = vperm.xlu0 %513, %v235
        %v515 = vpop.permute.xlu0 %514
        %518 = vset.pattern.permute.xlu0 0
        %519 = vperm.xlu0 %518, %v236
        %v520 = vpop.permute.xlu0 %519
        %523 = vset.pattern.permute.xlu0 0
        %524 = vperm.xlu0 %523, %v237
        %v525 = vpop.permute.xlu0 %524
        %528 = vset.pattern.permute.xlu0 0
        %529 = vperm.xlu0 %528, %v238
        %v530 = vpop.permute.xlu0 %529
        %533 = vset.pattern.permute.xlu0 0
        %534 = vperm.xlu0 %533, %v239
        %v535 = vpop.permute.xlu0 %534
        %538 = vset.pattern.permute.xlu0 0
        %539 = vperm.xlu0 %538, %v240
        %v540 = vpop.permute.xlu0 %539
        %543 = vset.pattern.permute.xlu0 0
        %544 = vperm.xlu0 %543, %v241
        %v545 = vpop.permute.xlu0 %544
        %548 = vset.pattern.permute.xlu0 0
        %549 = vperm.xlu0 %548, %v242
        %v550 = vpop.permute.xlu0 %549
        %553 = vset.pattern.permute.xlu0 0
        %554 = vperm.xlu0 %553, %v243
        %v555 = vpop.permute.xlu0 %554
        %558 = vset.pattern.permute.xlu0 0
        %559 = vperm.xlu0 %558, %v244
        %v560 = vpop.permute.xlu0 %559
        %563 = vset.pattern.permute.xlu0 0
        %564 = vperm.xlu0 %563, %v245
        %v565 = vpop.permute.xlu0 %564
        %568 = vset.pattern.permute.xlu0 0
        %569 = vperm.xlu0 %568, %v246
        %v570 = vpop.permute.xlu0 %569
        %573 = vset.pattern.permute.xlu0 0
        %574 = vperm.xlu0 %573, %v247
        %v575 = vpop.permute.xlu0 %574
        %578 = vset.pattern.permute.xlu0 0
        %579 = vperm.xlu0 %578, %v248
        %v580 = vpop.permute.xlu0 %579
        %583 = vset.pattern.permute.xlu0 0
        %584 = vperm.xlu0 %583, %v249
        %v585 = vpop.permute.xlu0 %584
        %588 = vset.pattern.permute.xlu0 0
        %589 = vperm.xlu0 %588, %v250
        %v590 = vpop.permute.xlu0 %589
        %593 = vset.pattern.permute.xlu0 0
        %594 = vperm.xlu0 %593, %v251
        %v595 = vpop.permute.xlu0 %594
        %598 = vset.pattern.permute.xlu0 0
        %599 = vperm.xlu0 %598, %v252
        %v600 = vpop.permute.xlu0 %599
        %603 = vset.pattern.permute.xlu0 0
        %604 = vperm.xlu0 %603, %v253
        %v605 = vpop.permute.xlu0 %604
        %608 = vset.pattern.permute.xlu0 0
        %609 = vperm.xlu0 %608, %v254
        %v610 = vpop.permute.xlu0 %609
        %613 = vset.pattern.permute.xlu0 0
        %614 = vperm.xlu0 %613, %v255
        %v615 = vpop.permute.xlu0 %614
        %618 = vset.pattern.permute.xlu0 0
        %619 = vperm.xlu0 %618, %v256
        %v620 = vpop.permute.xlu0 %619
        %623 = vset.pattern.permute.xlu0 0
        %624 = vperm.xlu0 %623, %v257
        %v625 = vpop.permute.xlu0 %624
        %628 = vset.pattern.permute.xlu0 0
        %629 = vperm.xlu0 %628, %v258
        %v630 = vpop.permute.xlu0 %629
        %633 = vset.pattern.permute.xlu0 0
        %634 = vperm.xlu0 %633, %v259
        %v635 = vpop.permute.xlu0 %634
        %638 = vset.pattern.permute.xlu0 0
        %639 = vperm.xlu0 %638, %v260
        %v640 = vpop.permute.xlu0 %639
        %643 = vset.pattern.permute.xlu0 0
        %644 = vperm.xlu0 %643, %v261
        %v645 = vpop.permute.xlu0 %644
        %648 = vset.pattern.permute.xlu0 0
        %649 = vperm.xlu0 %648, %v262
        %v650 = vpop.permute.xlu0 %649
        %653 = vset.pattern.permute.xlu0 0
        %654 = vperm.xlu0 %653, %v263
        %v655 = vpop.permute.xlu0 %654
        %658 = vset.pattern.permute.xlu0 0
        %659 = vperm.xlu0 %658, %v264
        %v660 = vpop.permute.xlu0 %659
        %663 = vset.pattern.permute.xlu0 0
        %664 = vperm.xlu0 %663, %v265
        %v665 = vpop.permute.xlu0 %664
        %668 = vset.pattern.permute.xlu0 0
        %669 = vperm.xlu0 %668, %v266
        %v670 = vpop.permute.xlu0 %669
        %673 = vset.pattern.permute.xlu0 0
        %674 = vperm.xlu0 %673, %v267
        %v675 = vpop.permute.xlu0 %674
        %678 = vset.pattern.permute.xlu0 0
        %679 = vperm.xlu0 %678, %v268
        %v680 = vpop.permute.xlu0 %679
        %683 = vset.pattern.permute.xlu0 0
        %684 = vperm.xlu0 %683, %v269
        %v685 = vpop.permute.xlu0 %684
        %688 = vset.pattern.permute.xlu0 0
        %689 = vperm.xlu0 %688, %v270
        %v690 = vpop.permute.xlu0 %689
        %693 = vset.pattern.permute.xlu0 0
        %694 = vperm.xlu0 %693, %v271
        %v695 = vpop.permute.xlu0 %694
        %698 = vset.pattern.permute.xlu0 0
        %699 = vperm.xlu0 %698, %v272
        %v700 = vpop.permute.xlu0 %699
        %703 = vset.pattern.permute.xlu0 0
        %704 = vperm.xlu0 %703, %v273
        %v705 = vpop.permute.xlu0 %704
        %708 = vset.pattern.permute.xlu0 0
        %709 = vperm.xlu0 %708, %v274
        %v710 = vpop.permute.xlu0 %709
        %713 = vset.pattern.permute.xlu0 0
        %714 = vperm.xlu0 %713, %v275
        %v715 = vpop.permute.xlu0 %714
        %718 = vset.pattern.permute.xlu0 0
        %719 = vperm.xlu0 %718, %v276
        %v720 = vpop.permute.xlu0 %719
        %723 = vset.pattern.permute.xlu0 0
        %724 = vperm.xlu0 %723, %v277
        %v725 = vpop.permute.xlu0 %724
        %728 = vset.pattern.permute.xlu0 0
        %729 = vperm.xlu0 %728, %v278
        %v730 = vpop.permute.xlu0 %729
        %733 = vset.pattern.permute.xlu0 0
        %734 = vperm.xlu0 %733, %v279
        %v735 = vpop.permute.xlu0 %734
        %738 = vset.pattern.permute.xlu0 0
        %739 = vperm.xlu0 %738, %v280
        %v740 = vpop.permute.xlu0 %739
        %743 = vset.pattern.permute.xlu0 0
        %744 = vperm.xlu0 %743, %v281
        %v745 = vpop.permute.xlu0 %744
        %748 = vset.pattern.permute.xlu0 0
        %749 = vperm.xlu0 %748, %v282
        %v750 = vpop.permute.xlu0 %749
        %753 = vset.pattern.permute.xlu0 0
        %754 = vperm.xlu0 %753, %v283
        %v755 = vpop.permute.xlu0 %754
        %758 = vset.pattern.permute.xlu0 0
        %759 = vperm.xlu0 %758, %v284
        %v760 = vpop.permute.xlu0 %759
        %763 = vset.pattern.permute.xlu0 0
        %764 = vperm.xlu0 %763, %v285
        %v765 = vpop.permute.xlu0 %764
        %768 = vset.pattern.permute.xlu0 0
        %769 = vperm.xlu0 %768, %v286
        %v770 = vpop.permute.xlu0 %769
        %773 = vset.pattern.permute.xlu0 0
        %774 = vperm.xlu0 %773, %v287
        %v775 = vpop.permute.xlu0 %774
        %778 = vset.pattern.permute.xlu0 0
        %779 = vperm.xlu0 %778, %v288
        %v780 = vpop.permute.xlu0 %779
        %783 = vset.pattern.permute.xlu0 0
        %784 = vperm.xlu0 %783, %v289
        %v785 = vpop.permute.xlu0 %784
        %788 = vset.pattern.permute.xlu0 0
        %789 = vperm.xlu0 %788, %v290
        %v790 = vpop.permute.xlu0 %789
        %793 = vset.pattern.permute.xlu0 0
        %794 = vperm.xlu0 %793, %v291
        %v795 = vpop.permute.xlu0 %794
        %798 = vset.pattern.permute.xlu0 0
        %799 = vperm.xlu0 %798, %v292
        %v800 = vpop.permute.xlu0 %799
        %803 = vset.pattern.permute.xlu0 0
        %804 = vperm.xlu0 %803, %v293
        %v805 = vpop.permute.xlu0 %804
        %808 = vset.pattern.permute.xlu0 0
        %809 = vperm.xlu0 %808, %v294
        %v810 = vpop.permute.xlu0 %809
        %813 = vset.pattern.permute.xlu0 0
        %814 = vperm.xlu0 %813, %v295
        %v815 = vpop.permute.xlu0 %814
        %818 = vset.pattern.permute.xlu0 0
        %819 = vperm.xlu0 %818, %v296
        %v820 = vpop.permute.xlu0 %819
        %823 = vset.pattern.permute.xlu0 0
        %824 = vperm.xlu0 %823, %v297
        %v825 = vpop.permute.xlu0 %824
        %828 = vset.pattern.permute.xlu0 0
        %829 = vperm.xlu0 %828, %v298
        %v830 = vpop.permute.xlu0 %829
        %833 = vset.pattern.permute.xlu0 0
        %834 = vperm.xlu0 %833, %v299
        %v835 = vpop.permute.xlu0 %834
        %838 = vset.pattern.permute.xlu0 0
        %839 = vperm.xlu0 %838, %v300
        %v840 = vpop.permute.xlu0 %839
        %843 = vset.pattern.permute.xlu0 0
        %844 = vperm.xlu0 %843, %v301
        %v845 = vpop.permute.xlu0 %844
        %848 = vset.pattern.permute.xlu0 0
        %849 = vperm.xlu0 %848, %v302
        %v850 = vpop.permute.xlu0 %849
        %853 = vset.pattern.permute.xlu0 0
        %854 = vperm.xlu0 %853, %v303
        %v855 = vpop.permute.xlu0 %854
        %858 = vset.pattern.permute.xlu0 0
        %859 = vperm.xlu0 %858, %v304
        %v860 = vpop.permute.xlu0 %859
        %863 = vset.pattern.permute.xlu0 0
        %864 = vperm.xlu0 %863, %v305
        %v865 = vpop.permute.xlu0 %864
        %868 = vset.pattern.permute.xlu0 0
        %869 = vperm.xlu0 %868, %v306
        %v870 = vpop.permute.xlu0 %869
        %873 = vset.pattern.permute.xlu0 0
        %874 = vperm.xlu0 %873, %v307
        %v875 = vpop.permute.xlu0 %874
        %878 = vset.pattern.permute.xlu0 0
        %879 = vperm.xlu0 %878, %v308
        %v880 = vpop.permute.xlu0 %879
        %883 = vset.pattern.permute.xlu0 0
        %884 = vperm.xlu0 %883, %v309
        %v885 = vpop.permute.xlu0 %884
        %888 = vset.pattern.permute.xlu0 0
        %889 = vperm.xlu0 %888, %v310
        %v890 = vpop.permute.xlu0 %889
        %893 = vset.pattern.permute.xlu0 0
        %894 = vperm.xlu0 %893, %v311
        %v895 = vpop.permute.xlu0 %894
        %898 = vset.pattern.permute.xlu0 0
        %899 = vperm.xlu0 %898, %v312
        %v900 = vpop.permute.xlu0 %899
        %903 = vset.pattern.permute.xlu0 0
        %904 = vperm.xlu0 %903, %v313
        %v905 = vpop.permute.xlu0 %904
        %908 = vset.pattern.permute.xlu0 0
        %909 = vperm.xlu0 %908, %v314
        %v910 = vpop.permute.xlu0 %909
        %913 = vset.pattern.permute.xlu0 0
        %914 = vperm.xlu0 %913, %v315
        %v915 = vpop.permute.xlu0 %914
        %918 = vset.pattern.permute.xlu0 0
        %919 = vperm.xlu0 %918, %v316
        %v920 = vpop.permute.xlu0 %919
        %923 = vset.pattern.permute.xlu0 0
        %924 = vperm.xlu0 %923, %v317
        %v925 = vpop.permute.xlu0 %924
        %928 = vset.pattern.permute.xlu0 0
        %929 = vperm.xlu0 %928, %v318
        %v930 = vpop.permute.xlu0 %929
        %933 = vset.pattern.permute.xlu0 0
        %934 = vperm.xlu0 %933, %v319
        %v935 = vpop.permute.xlu0 %934
        %938 = vset.pattern.permute.xlu0 0
        %939 = vperm.xlu0 %938, %v320
        %v940 = vpop.permute.xlu0 %939
        %943 = vset.pattern.permute.xlu0 0
        %944 = vperm.xlu0 %943, %v321
        %v945 = vpop.permute.xlu0 %944
        %948 = vset.pattern.permute.xlu0 0
        %949 = vperm.xlu0 %948, %v322
        %v950 = vpop.permute.xlu0 %949
        %953 = vset.pattern.permute.xlu0 0
        %954 = vperm.xlu0 %953, %v323
        %v955 = vpop.permute.xlu0 %954
        %958 = vset.pattern.permute.xlu0 0
        %959 = vperm.xlu0 %958, %v324
        %v960 = vpop.permute.xlu0 %959
        %963 = vset.pattern.permute.xlu0 0
        %964 = vperm.xlu0 %963, %v325
        %v965 = vpop.permute.xlu0 %964
        %968 = vset.pattern.permute.xlu0 0
        %969 = vperm.xlu0 %968, %v326
        %v970 = vpop.permute.xlu0 %969
        %973 = vset.pattern.permute.xlu0 0
        %974 = vperm.xlu0 %973, %v327
        %v975 = vpop.permute.xlu0 %974
        %978 = vset.pattern.permute.xlu0 0
        %979 = vperm.xlu0 %978, %v328
        %v980 = vpop.permute.xlu0 %979
        %983 = vset.pattern.permute.xlu0 0
        %984 = vperm.xlu0 %983, %v329
        %v985 = vpop.permute.xlu0 %984
        %988 = vset.pattern.permute.xlu0 0
        %989 = vperm.xlu0 %988, %v330
        %v990 = vpop.permute.xlu0 %989
        %993 = vset.pattern.permute.xlu0 0
        %994 = vperm.xlu0 %993, %v331
        %v995 = vpop.permute.xlu0 %994
        %998 = vset.pattern.permute.xlu0 0
        %999 = vperm.xlu0 %998, %v332
        %v1000 = vpop.permute.xlu0 %999
        %1003 = vset.pattern.permute.xlu0 0
        %1004 = vperm.xlu0 %1003, %v333
        %v1005 = vpop.permute.xlu0 %1004
        %1008 = vset.pattern.permute.xlu0 0
        %1009 = vperm.xlu0 %1008, %v334
        %v1010 = vpop.permute.xlu0 %1009
        %1013 = vset.pattern.permute.xlu0 0
        %1014 = vperm.xlu0 %1013, %v335
        %v1015 = vpop.permute.xlu0 %1014
        %1018 = vset.pattern.permute.xlu0 0
        %1019 = vperm.xlu0 %1018, %v336
        %v1020 = vpop.permute.xlu0 %1019
        %1023 = vset.pattern.permute.xlu0 0
        %1024 = vperm.xlu0 %1023, %v337
        %v1025 = vpop.permute.xlu0 %1024
        %1028 = vset.pattern.permute.xlu0 0
        %1029 = vperm.xlu0 %1028, %v338
        %v1030 = vpop.permute.xlu0 %1029
        %1033 = vset.pattern.permute.xlu0 0
        %1034 = vperm.xlu0 %1033, %v339
        %v1035 = vpop.permute.xlu0 %1034
        %1038 = vset.pattern.permute.xlu0 0
        %1039 = vperm.xlu0 %1038, %v340
        %v1040 = vpop.permute.xlu0 %1039
        %1043 = vset.pattern.permute.xlu0 0
        %1044 = vperm.xlu0 %1043, %v341
        %v1045 = vpop.permute.xlu0 %1044
        %1048 = vset.pattern.permute.xlu0 0
        %1049 = vperm.xlu0 %1048, %v342
        %v1050 = vpop.permute.xlu0 %1049
        %1053 = vset.pattern.permute.xlu0 0
        %1054 = vperm.xlu0 %1053, %v343
        %v1055 = vpop.permute.xlu0 %1054
        %1058 = vset.pattern.permute.xlu0 0
        %1059 = vperm.xlu0 %1058, %v344
        %v1060 = vpop.permute.xlu0 %1059
        %1063 = vset.pattern.permute.xlu0 0
        %1064 = vperm.xlu0 %1063, %v345
        %v1065 = vpop.permute.xlu0 %1064
        %1068 = vset.pattern.permute.xlu0 0
        %1069 = vperm.xlu0 %1068, %v346
        %v1070 = vpop.permute.xlu0 %1069
        %1073 = vset.pattern.permute.xlu0 0
        %1074 = vperm.xlu0 %1073, %v347
        %v1075 = vpop.permute.xlu0 %1074
        %1078 = vset.pattern.permute.xlu0 0
        %1079 = vperm.xlu0 %1078, %v348
        %v1080 = vpop.permute.xlu0 %1079
        %1083 = vset.pattern.permute.xlu0 0
        %1084 = vperm.xlu0 %1083, %v349
        %v1085 = vpop.permute.xlu0 %1084
        %1088 = vset.pattern.permute.xlu0 0
        %1089 = vperm.xlu0 %1088, %v350
        %v1090 = vpop.permute.xlu0 %1089
        %1093 = vset.pattern.permute.xlu0 0
        %1094 = vperm.xlu0 %1093, %v351
        %v1095 = vpop.permute.xlu0 %1094
        %1098 = vset.pattern.permute.xlu0 0
        %1099 = vperm.xlu0 %1098, %v352
        %v1100 = vpop.permute.xlu0 %1099
        %1103 = vset.pattern.permute.xlu0 0
        %1104 = vperm.xlu0 %1103, %v353
        %v1105 = vpop.permute.xlu0 %1104
        %1108 = vset.pattern.permute.xlu0 0
        %1109 = vperm.xlu0 %1108, %v354
        %v1110 = vpop.permute.xlu0 %1109
        %1113 = vset.pattern.permute.xlu0 0
        %1114 = vperm.xlu0 %1113, %v355
        %v1115 = vpop.permute.xlu0 %1114
        %1118 = vset.pattern.permute.xlu0 0
        %1119 = vperm.xlu0 %1118, %v356
        %v1120 = vpop.permute.xlu0 %1119
        %1123 = vset.pattern.permute.xlu0 0
        %1124 = vperm.xlu0 %1123, %v357
        %v1125 = vpop.permute.xlu0 %1124
        %1128 = vset.pattern.permute.xlu0 0
        %1129 = vperm.xlu0 %1128, %v358
        %v1130 = vpop.permute.xlu0 %1129
        %1133 = vset.pattern.permute.xlu0 0
        %1134 = vperm.xlu0 %1133, %v359
        %v1135 = vpop.permute.xlu0 %1134
        %1138 = vset.pattern.permute.xlu0 0
        %1139 = vperm.xlu0 %1138, %v360
        %v1140 = vpop.permute.xlu0 %1139
        %1143 = vset.pattern.permute.xlu0 0
        %1144 = vperm.xlu0 %1143, %v361
        %v1145 = vpop.permute.xlu0 %1144
        %1148 = vset.pattern.permute.xlu0 0
        %1149 = vperm.xlu0 %1148, %v362
        %v1150 = vpop.permute.xlu0 %1149
        %1153 = vset.pattern.permute.xlu0 0
        %1154 = vperm.xlu0 %1153, %v363
        %v1155 = vpop.permute.xlu0 %1154
        %1158 = vset.pattern.permute.xlu0 0
        %1159 = vperm.xlu0 %1158, %v364
        %v1160 = vpop.permute.xlu0 %1159
        %1163 = vset.pattern.permute.xlu0 0
        %1164 = vperm.xlu0 %1163, %v365
        %v1165 = vpop.permute.xlu0 %1164
        %1168 = vset.pattern.permute.xlu0 0
        %1169 = vperm.xlu0 %1168, %v366
        %v1170 = vpop.permute.xlu0 %1169
        %1173 = vset.pattern.permute.xlu0 0
        %1174 = vperm.xlu0 %1173, %v367
        %v1175 = vpop.permute.xlu0 %1174
        %1178 = vset.pattern.permute.xlu0 0
        %1179 = vperm.xlu0 %1178, %v368
        %v1180 = vpop.permute.xlu0 %1179
        %1183 = vset.pattern.permute.xlu0 0
        %1184 = vperm.xlu0 %1183, %v369
        %v1185 = vpop.permute.xlu0 %1184
        %1188 = vset.pattern.permute.xlu0 0
        %1189 = vperm.xlu0 %1188, %v370
        %v1190 = vpop.permute.xlu0 %1189
        %1193 = vset.pattern.permute.xlu0 0
        %1194 = vperm.xlu0 %1193, %v371
        %v1195 = vpop.permute.xlu0 %1194
        %1198 = vset.pattern.permute.xlu0 0
        %1199 = vperm.xlu0 %1198, %v372
        %v1200 = vpop.permute.xlu0 %1199
        %1203 = vset.pattern.permute.xlu0 0
        %1204 = vperm.xlu0 %1203, %v373
        %v1205 = vpop.permute.xlu0 %1204
        %1208 = vset.pattern.permute.xlu0 0
        %1209 = vperm.xlu0 %1208, %v374
        %v1210 = vpop.permute.xlu0 %1209
        %1213 = vset.pattern.permute.xlu0 0
        %1214 = vperm.xlu0 %1213, %v375
        %v1215 = vpop.permute.xlu0 %1214
        %1218 = vset.pattern.permute.xlu0 0
        %1219 = vperm.xlu0 %1218, %v376
        %v1220 = vpop.permute.xlu0 %1219
        %1223 = vset.pattern.permute.xlu0 0
        %1224 = vperm.xlu0 %1223, %v377
        %v1225 = vpop.permute.xlu0 %1224
        %1228 = vset.pattern.permute.xlu0 0
        %1229 = vperm.xlu0 %1228, %v378
        %v1230 = vpop.permute.xlu0 %1229
        %1233 = vset.pattern.permute.xlu0 0
        %1234 = vperm.xlu0 %1233, %v379
        %v1235 = vpop.permute.xlu0 %1234
        %1238 = vset.pattern.permute.xlu0 0
        %1239 = vperm.xlu0 %1238, %v380
        %v1240 = vpop.permute.xlu0 %1239
        %1243 = vset.pattern.permute.xlu0 0
        %1244 = vperm.xlu0 %1243, %v381
        %v1245 = vpop.permute.xlu0 %1244
        %1248 = vset.pattern.permute.xlu0 0
        %1249 = vperm.xlu0 %1248, %v382
        %v1250 = vpop.permute.xlu0 %1249
        %1253 = vset.pattern.permute.xlu0 0
        %1254 = vperm.xlu0 %1253, %v383
        %v1255 = vpop.permute.xlu0 %1254
        %1258 = vset.pattern.permute.xlu0 0
        %1259 = vperm.xlu0 %1258, %v384
        %v1260 = vpop.permute.xlu0 %1259
        %1263 = vset.pattern.permute.xlu0 0
        %1264 = vperm.xlu0 %1263, %v385
        %v1265 = vpop.permute.xlu0 %1264
        %1268 = vset.pattern.permute.xlu0 0
        %1269 = vperm.xlu0 %1268, %v386
        %v1270 = vpop.permute.xlu0 %1269
        %1273 = vset.pattern.permute.xlu0 0
        %1274 = vperm.xlu0 %1273, %v387
        %v1275 = vpop.permute.xlu0 %1274
        %1278 = vset.pattern.permute.xlu0 0
        %1279 = vperm.xlu0 %1278, %v388
        %v1280 = vpop.permute.xlu0 %1279
        %1283 = vset.pattern.permute.xlu0 0
        %1284 = vperm.xlu0 %1283, %v389
        %v1285 = vpop.permute.xlu0 %1284
        %1288 = vset.pattern.permute.xlu0 0
        %1289 = vperm.xlu0 %1288, %v390
        %v1290 = vpop.permute.xlu0 %1289
        %1293 = vset.pattern.permute.xlu0 0
        %1294 = vperm.xlu0 %1293, %v391
        %v1295 = vpop.permute.xlu0 %1294
        %1298 = vset.pattern.permute.xlu0 0
        %1299 = vperm.xlu0 %1298, %v392
        %v1300 = vpop.permute.xlu0 %1299
        %1303 = vset.pattern.permute.xlu0 0
        %1304 = vperm.xlu0 %1303, %v393
        %v1305 = vpop.permute.xlu0 %1304
        %1308 = vset.pattern.permute.xlu0 0
        %1309 = vperm.xlu0 %1308, %v394
        %v1310 = vpop.permute.xlu0 %1309
        %1313 = vset.pattern.permute.xlu0 0
        %1314 = vperm.xlu0 %1313, %v395
        %v1315 = vpop.permute.xlu0 %1314
        %1318 = vset.pattern.permute.xlu0 0
        %1319 = vperm.xlu0 %1318, %v396
        %v1320 = vpop.permute.xlu0 %1319
        %1323 = vset.pattern.permute.xlu0 0
        %1324 = vperm.xlu0 %1323, %v397
        %v1325 = vpop.permute.xlu0 %1324
        %1328 = vset.pattern.permute.xlu0 0
        %1329 = vperm.xlu0 %1328, %v398
        %v1330 = vpop.permute.xlu0 %1329
        %1333 = vset.pattern.permute.xlu0 0
        %1334 = vperm.xlu0 %1333, %v399
        %v1335 = vpop.permute.xlu0 %1334
        %1338 = vset.pattern.permute.xlu0 0
        %1339 = vperm.xlu0 %1338, %v400
        %v1340 = vpop.permute.xlu0 %1339
        %1343 = vset.pattern.permute.xlu0 0
        %1344 = vperm.xlu0 %1343, %v401
        %v1345 = vpop.permute.xlu0 %1344
        %1348 = vset.pattern.permute.xlu0 0
        %1349 = vperm.xlu0 %1348, %v402
        %v1350 = vpop.permute.xlu0 %1349
        %1353 = vset.pattern.permute.xlu0 0
        %1354 = vperm.xlu0 %1353, %v403
        %v1355 = vpop.permute.xlu0 %1354
        %1358 = vset.pattern.permute.xlu0 0
        %1359 = vperm.xlu0 %1358, %v404
        %v1360 = vpop.permute.xlu0 %1359
        %1363 = vset.pattern.permute.xlu0 0
        %1364 = vperm.xlu0 %1363, %v405
        %v1365 = vpop.permute.xlu0 %1364
        %1368 = vset.pattern.permute.xlu0 0
        %1369 = vperm.xlu0 %1368, %v406
        %v1370 = vpop.permute.xlu0 %1369
        %1373 = vset.pattern.permute.xlu0 0
        %1374 = vperm.xlu0 %1373, %v407
        %v1375 = vpop.permute.xlu0 %1374
        %1378 = vset.pattern.permute.xlu0 0
        %1379 = vperm.xlu0 %1378, %v408
        %v1380 = vpop.permute.xlu0 %1379
        %1383 = vset.pattern.permute.xlu0 0
        %1384 = vperm.xlu0 %1383, %v409
        %v1385 = vpop.permute.xlu0 %1384
        %1388 = vset.pattern.permute.xlu0 0
        %1389 = vperm.xlu0 %1388, %v410
        %v1390 = vpop.permute.xlu0 %1389
        %1393 = vset.pattern.permute.xlu0 0
        %1394 = vperm.xlu0 %1393, %v411
        %v1395 = vpop.permute.xlu0 %1394
        %1398 = vset.pattern.permute.xlu0 0
        %1399 = vperm.xlu0 %1398, %v412
        %v1400 = vpop.permute.xlu0 %1399
        %1403 = vset.pattern.permute.xlu0 0
        %1404 = vperm.xlu0 %1403, %v413
        %v1405 = vpop.permute.xlu0 %1404
        %1408 = vset.pattern.permute.xlu0 0
        %1409 = vperm.xlu0 %1408, %v414
        %v1410 = vpop.permute.xlu0 %1409
        %1413 = vset.pattern.permute.xlu0 0
        %1414 = vperm.xlu0 %1413, %v415
        %v1415 = vpop.permute.xlu0 %1414
        %1418 = vset.pattern.permute.xlu0 0
        %1419 = vperm.xlu0 %1418, %v416
        %v1420 = vpop.permute.xlu0 %1419
        %1423 = vset.pattern.permute.xlu0 0
        %1424 = vperm.xlu0 %1423, %v417
        %v1425 = vpop.permute.xlu0 %1424
        %1428 = vset.pattern.permute.xlu0 0
        %1429 = vperm.xlu0 %1428, %v418
        %v1430 = vpop.permute.xlu0 %1429
        %1433 = vset.pattern.permute.xlu0 0
        %1434 = vperm.xlu0 %1433, %v419
        %v1435 = vpop.permute.xlu0 %1434
        %1438 = vset.pattern.permute.xlu0 0
        %1439 = vperm.xlu0 %1438, %v420
        %v1440 = vpop.permute.xlu0 %1439
        %1443 = vset.pattern.permute.xlu0 0
        %1444 = vperm.xlu0 %1443, %v421
        %v1445 = vpop.permute.xlu0 %1444
        %1448 = vset.pattern.permute.xlu0 0
        %1449 = vperm.xlu0 %1448, %v422
        %v1450 = vpop.permute.xlu0 %1449
        %1453 = vset.pattern.permute.xlu0 0
        %1454 = vperm.xlu0 %1453, %v423
        %v1455 = vpop.permute.xlu0 %1454
        %1458 = vset.pattern.permute.xlu0 0
        %1459 = vperm.xlu0 %1458, %v424
        %v1460 = vpop.permute.xlu0 %1459
        %1463 = vset.pattern.permute.xlu0 0
        %1464 = vperm.xlu0 %1463, %v425
        %v1465 = vpop.permute.xlu0 %1464
        %1468 = vset.pattern.permute.xlu0 0
        %1469 = vperm.xlu0 %1468, %v426
        %v1470 = vpop.permute.xlu0 %1469
        %1473 = vset.pattern.permute.xlu0 0
        %1474 = vperm.xlu0 %1473, %v427
        %v1475 = vpop.permute.xlu0 %1474
        %1478 = vset.pattern.permute.xlu0 0
        %1479 = vperm.xlu0 %1478, %v428
        %v1480 = vpop.permute.xlu0 %1479
        %1483 = vset.pattern.permute.xlu0 0
        %1484 = vperm.xlu0 %1483, %v429
        %v1485 = vpop.permute.xlu0 %1484
        %1488 = vset.pattern.permute.xlu0 0
        %1489 = vperm.xlu0 %1488, %v430
        %v1490 = vpop.permute.xlu0 %1489
        %1493 = vset.pattern.permute.xlu0 0
        %1494 = vperm.xlu0 %1493, %v431
        %v1495 = vpop.permute.xlu0 %1494
        %1498 = vset.pattern.permute.xlu0 0
        %1499 = vperm.xlu0 %1498, %v432
        %v1500 = vpop.permute.xlu0 %1499
        %1503 = vset.pattern.permute.xlu0 0
        %1504 = vperm.xlu0 %1503, %v433
        %v1505 = vpop.permute.xlu0 %1504
        %1508 = vset.pattern.permute.xlu0 0
        %1509 = vperm.xlu0 %1508, %v434
        %v1510 = vpop.permute.xlu0 %1509
        %1513 = vset.pattern.permute.xlu0 0
        %1514 = vperm.xlu0 %1513, %v435
        %v1515 = vpop.permute.xlu0 %1514
        %1518 = vset.pattern.permute.xlu0 0
        %1519 = vperm.xlu0 %1518, %v436
        %v1520 = vpop.permute.xlu0 %1519
        %1523 = vset.pattern.permute.xlu0 0
        %1524 = vperm.xlu0 %1523, %v437
        %v1525 = vpop.permute.xlu0 %1524
        %1528 = vset.pattern.permute.xlu0 0
        %1529 = vperm.xlu0 %1528, %v438
        %v1530 = vpop.permute.xlu0 %1529
        %1533 = vset.pattern.permute.xlu0 0
        %1534 = vperm.xlu0 %1533, %v439
        %v1535 = vpop.permute.xlu0 %1534
        %1538 = vset.pattern.permute.xlu0 0
        %1539 = vperm.xlu0 %1538, %v440
        %v1540 = vpop.permute.xlu0 %1539
        %1543 = vset.pattern.permute.xlu0 0
        %1544 = vperm.xlu0 %1543, %v441
        %v1545 = vpop.permute.xlu0 %1544
        %1548 = vset.pattern.permute.xlu0 0
        %1549 = vperm.xlu0 %1548, %v442
        %v1550 = vpop.permute.xlu0 %1549
        %1553 = vset.pattern.permute.xlu0 0
        %1554 = vperm.xlu0 %1553, %v443
        %v1555 = vpop.permute.xlu0 %1554
        %1558 = vset.pattern.permute.xlu0 0
        %1559 = vperm.xlu0 %1558, %v444
        %v1560 = vpop.permute.xlu0 %1559
        %1563 = vset.pattern.permute.xlu0 0
        %1564 = vperm.xlu0 %1563, %v445
        %v1565 = vpop.permute.xlu0 %1564
        %1568 = vset.pattern.permute.xlu0 0
        %1569 = vperm.xlu0 %1568, %v446
        %v1570 = vpop.permute.xlu0 %1569
        %1573 = vset.pattern.permute.xlu0 0
        %1574 = vperm.xlu0 %1573, %v447
        %v1575 = vpop.permute.xlu0 %1574
        %1578 = vset.pattern.permute.xlu0 0
        %1579 = vperm.xlu0 %1578, %v448
        %v1580 = vpop.permute.xlu0 %1579
        %1583 = vset.pattern.permute.xlu0 0
        %1584 = vperm.xlu0 %1583, %v449
        %v1585 = vpop.permute.xlu0 %1584
        %1588 = vset.pattern.permute.xlu0 0
        %1589 = vperm.xlu0 %1588, %v450
        %v1590 = vpop.permute.xlu0 %1589
        %1593 = vset.pattern.permute.xlu0 0
        %1594 = vperm.xlu0 %1593, %v451
        %v1595 = vpop.permute.xlu0 %1594
        %1598 = vset.pattern.permute.xlu0 0
        %1599 = vperm.xlu0 %1598, %v452
        %v1600 = vpop.permute.xlu0 %1599
        %1603 = vset.pattern.permute.xlu0 0
        %1604 = vperm.xlu0 %1603, %v453
        %v1605 = vpop.permute.xlu0 %1604
        %1608 = vset.pattern.permute.xlu0 0
        %1609 = vperm.xlu0 %1608, %v454
        %v1610 = vpop.permute.xlu0 %1609
        %1613 = vset.pattern.permute.xlu0 0
        %1614 = vperm.xlu0 %1613, %v455
        %v1615 = vpop.permute.xlu0 %1614
        %1618 = vset.pattern.permute.xlu0 0
        %1619 = vperm.xlu0 %1618, %v456
        %v1620 = vpop.permute.xlu0 %1619
        %1623 = vset.pattern.permute.xlu0 0
        %1624 = vperm.xlu0 %1623, %v457
        %v1625 = vpop.permute.xlu0 %1624
        %1628 = vset.pattern.permute.xlu0 0
        %1629 = vperm.xlu0 %1628, %v458
        %v1630 = vpop.permute.xlu0 %1629
        %1633 = vset.pattern.permute.xlu0 0
        %1634 = vperm.xlu0 %1633, %v459
        %v1635 = vpop.permute.xlu0 %1634
        %1638 = vset.pattern.permute.xlu0 0
        %1639 = vperm.xlu0 %1638, %v460
        %v1640 = vpop.permute.xlu0 %1639
        %1643 = vset.pattern.permute.xlu0 0
        %1644 = vperm.xlu0 %1643, %v461
        %v1645 = vpop.permute.xlu0 %1644
        %1648 = vset.pattern.permute.xlu0 0
        %1649 = vperm.xlu0 %1648, %v462
        %v1650 = vpop.permute.xlu0 %1649
        %1653 = vset.pattern.permute.xlu0 0
        %1654 = vperm.xlu0 %1653, %v463
        %v1655 = vpop.permute.xlu0 %1654
        %1658 = vset.pattern.permute.xlu0 0
        %1659 = vperm.xlu0 %1658, %v464
        %v1660 = vpop.permute.xlu0 %1659
        %1663 = vset.pattern.permute.xlu0 0
        %1664 = vperm.xlu0 %1663, %v465
        %v1665 = vpop.permute.xlu0 %1664
        %1668 = vset.pattern.permute.xlu0 0
        %1669 = vperm.xlu0 %1668, %v466
        %v1670 = vpop.permute.xlu0 %1669
        %1673 = vset.pattern.permute.xlu0 0
        %1674 = vperm.xlu0 %1673, %v467
        %v1675 = vpop.permute.xlu0 %1674
        %1678 = vset.pattern.permute.xlu0 0
        %1679 = vperm.xlu0 %1678, %v468
        %v1680 = vpop.permute.xlu0 %1679
        %1683 = vset.pattern.permute.xlu0 0
        %1684 = vperm.xlu0 %1683, %v469
        %v1685 = vpop.permute.xlu0 %1684
        %1688 = vset.pattern.permute.xlu0 0
        %1689 = vperm.xlu0 %1688, %v470
        %v1690 = vpop.permute.xlu0 %1689
        %1693 = vset.pattern.permute.xlu0 0
        %1694 = vperm.xlu0 %1693, %v471
        %v1695 = vpop.permute.xlu0 %1694
        %1698 = vset.pattern.permute.xlu0 0
        %1699 = vperm.xlu0 %1698, %v472
        %v1700 = vpop.permute.xlu0 %1699
        %1703 = vset.pattern.permute.xlu0 0
        %1704 = vperm.xlu0 %1703, %v473
        %v1705 = vpop.permute.xlu0 %1704
        %1708 = vset.pattern.permute.xlu0 0
        %1709 = vperm.xlu0 %1708, %v474
        %v1710 = vpop.permute.xlu0 %1709
        %1713 = vset.pattern.permute.xlu0 0
        %1714 = vperm.xlu0 %1713, %v475
        %v1715 = vpop.permute.xlu0 %1714
        %1718 = vset.pattern.permute.xlu0 0
        %1719 = vperm.xlu0 %1718, %v476
        %v1720 = vpop.permute.xlu0 %1719
        %1723 = vset.pattern.permute.xlu0 0
        %1724 = vperm.xlu0 %1723, %v477
        %v1725 = vpop.permute.xlu0 %1724
        %1728 = vset.pattern.permute.xlu0 0
        %1729 = vperm.xlu0 %1728, %v478
        %v1730 = vpop.permute.xlu0 %1729
        %1733 = vset.pattern.permute.xlu0 0
        %1734 = vperm.xlu0 %1733, %v479
        %v1735 = vpop.permute.xlu0 %1734
        %1738 = vset.pattern.permute.xlu0 0
        %1739 = vperm.xlu0 %1738, %v480
        %v1740 = vpop.permute.xlu0 %1739
        %1743 = vset.pattern.permute.xlu0 0
        %1744 = vperm.xlu0 %1743, %v481
        %v1745 = vpop.permute.xlu0 %1744
        %1748 = vset.pattern.permute.xlu0 0
        %1749 = vperm.xlu0 %1748, %v482
        %v1750 = vpop.permute.xlu0 %1749
        %1753 = vset.pattern.permute.xlu0 0
        %1754 = vperm.xlu0 %1753, %v483
        %v1755 = vpop.permute.xlu0 %1754
        %1758 = vset.pattern.permute.xlu0 0
        %1759 = vperm.xlu0 %1758, %v484
        %v1760 = vpop.permute.xlu0 %1759
        %1763 = vset.pattern.permute.xlu0 0
        %1764 = vperm.xlu0 %1763, %v485
        %v1765 = vpop.permute.xlu0 %1764
        %v1768 = vperm.slane %v486, 0
        %v1769 = vperm.slane %v486, 1
        %v1772 = vsub.f32 %v490, %v1768
        %v1773 = vsub.f32 %v490, %v1769
        %v1774 = vsub.f32 %v495, %v1768
        %v1775 = vsub.f32 %v495, %v1769
        %v1776 = vsub.f32 %v500, %v1768
        %v1777 = vsub.f32 %v500, %v1769
        %v1778 = vsub.f32 %v505, %v1768
        %v1779 = vsub.f32 %v505, %v1769
        %v1780 = vsub.f32 %v510, %v1768
        %v1781 = vsub.f32 %v510, %v1769
        %v1782 = vsub.f32 %v515, %v1768
        %v1783 = vsub.f32 %v515, %v1769
        %v1784 = vsub.f32 %v520, %v1768
        %v1785 = vsub.f32 %v520, %v1769
        %v1786 = vsub.f32 %v525, %v1768
        %v1787 = vsub.f32 %v525, %v1769
        %v1788 = vsub.f32 %v530, %v1768
        %v1789 = vsub.f32 %v530, %v1769
        %v1790 = vsub.f32 %v535, %v1768
        %v1791 = vsub.f32 %v535, %v1769
        %v1792 = vsub.f32 %v540, %v1768
        %v1793 = vsub.f32 %v540, %v1769
        %v1794 = vsub.f32 %v545, %v1768
        %v1795 = vsub.f32 %v545, %v1769
        %v1796 = vsub.f32 %v550, %v1768
        %v1797 = vsub.f32 %v550, %v1769
        %v1798 = vsub.f32 %v555, %v1768
        %v1799 = vsub.f32 %v555, %v1769
        %v1800 = vsub.f32 %v560, %v1768
        %v1801 = vsub.f32 %v560, %v1769
        %v1802 = vsub.f32 %v565, %v1768
        %v1803 = vsub.f32 %v565, %v1769
        %v1804 = vsub.f32 %v570, %v1768
        %v1805 = vsub.f32 %v570, %v1769
        %v1806 = vsub.f32 %v575, %v1768
        %v1807 = vsub.f32 %v575, %v1769
        %v1808 = vsub.f32 %v580, %v1768
        %v1809 = vsub.f32 %v580, %v1769
        %v1810 = vsub.f32 %v585, %v1768
        %v1811 = vsub.f32 %v585, %v1769
        %v1812 = vsub.f32 %v590, %v1768
        %v1813 = vsub.f32 %v590, %v1769
        %v1814 = vsub.f32 %v595, %v1768
        %v1815 = vsub.f32 %v595, %v1769
        %v1816 = vsub.f32 %v600, %v1768
        %v1817 = vsub.f32 %v600, %v1769
        %v1818 = vsub.f32 %v605, %v1768
        %v1819 = vsub.f32 %v605, %v1769
        %v1820 = vsub.f32 %v610, %v1768
        %v1821 = vsub.f32 %v610, %v1769
        %v1822 = vsub.f32 %v615, %v1768
        %v1823 = vsub.f32 %v615, %v1769
        %v1824 = vsub.f32 %v620, %v1768
        %v1825 = vsub.f32 %v620, %v1769
        %v1826 = vsub.f32 %v625, %v1768
        %v1827 = vsub.f32 %v625, %v1769
        %v1828 = vsub.f32 %v630, %v1768
        %v1829 = vsub.f32 %v630, %v1769
        %v1830 = vsub.f32 %v635, %v1768
        %v1831 = vsub.f32 %v635, %v1769
        %v1832 = vsub.f32 %v640, %v1768
        %v1833 = vsub.f32 %v640, %v1769
        %v1834 = vsub.f32 %v645, %v1768
        %v1835 = vsub.f32 %v645, %v1769
        %v1836 = vsub.f32 %v650, %v1768
        %v1837 = vsub.f32 %v650, %v1769
        %v1838 = vsub.f32 %v655, %v1768
        %v1839 = vsub.f32 %v655, %v1769
        %v1840 = vsub.f32 %v660, %v1768
        %v1841 = vsub.f32 %v660, %v1769
        %v1842 = vsub.f32 %v665, %v1768
        %v1843 = vsub.f32 %v665, %v1769
        %v1844 = vsub.f32 %v670, %v1768
        %v1845 = vsub.f32 %v670, %v1769
        %v1846 = vsub.f32 %v675, %v1768
        %v1847 = vsub.f32 %v675, %v1769
        %v1848 = vsub.f32 %v680, %v1768
        %v1849 = vsub.f32 %v680, %v1769
        %v1850 = vsub.f32 %v685, %v1768
        %v1851 = vsub.f32 %v685, %v1769
        %v1852 = vsub.f32 %v690, %v1768
        %v1853 = vsub.f32 %v690, %v1769
        %v1854 = vsub.f32 %v695, %v1768
        %v1855 = vsub.f32 %v695, %v1769
        %v1856 = vsub.f32 %v700, %v1768
        %v1857 = vsub.f32 %v700, %v1769
        %v1858 = vsub.f32 %v705, %v1768
        %v1859 = vsub.f32 %v705, %v1769
        %v1860 = vsub.f32 %v710, %v1768
        %v1861 = vsub.f32 %v710, %v1769
        %v1862 = vsub.f32 %v715, %v1768
        %v1863 = vsub.f32 %v715, %v1769
        %v1864 = vsub.f32 %v720, %v1768
        %v1865 = vsub.f32 %v720, %v1769
        %v1866 = vsub.f32 %v725, %v1768
        %v1867 = vsub.f32 %v725, %v1769
        %v1868 = vsub.f32 %v730, %v1768
        %v1869 = vsub.f32 %v730, %v1769
        %v1870 = vsub.f32 %v735, %v1768
        %v1871 = vsub.f32 %v735, %v1769
        %v1872 = vsub.f32 %v740, %v1768
        %v1873 = vsub.f32 %v740, %v1769
        %v1874 = vsub.f32 %v745, %v1768
        %v1875 = vsub.f32 %v745, %v1769
        %v1876 = vsub.f32 %v750, %v1768
        %v1877 = vsub.f32 %v750, %v1769
        %v1878 = vsub.f32 %v755, %v1768
        %v1879 = vsub.f32 %v755, %v1769
        %v1880 = vsub.f32 %v760, %v1768
        %v1881 = vsub.f32 %v760, %v1769
        %v1882 = vsub.f32 %v765, %v1768
        %v1883 = vsub.f32 %v765, %v1769
        %v1884 = vsub.f32 %v770, %v1768
        %v1885 = vsub.f32 %v770, %v1769
        %v1886 = vsub.f32 %v775, %v1768
        %v1887 = vsub.f32 %v775, %v1769
        %v1888 = vsub.f32 %v780, %v1768
        %v1889 = vsub.f32 %v780, %v1769
        %v1890 = vsub.f32 %v785, %v1768
        %v1891 = vsub.f32 %v785, %v1769
        %v1892 = vsub.f32 %v790, %v1768
        %v1893 = vsub.f32 %v790, %v1769
        %v1894 = vsub.f32 %v795, %v1768
        %v1895 = vsub.f32 %v795, %v1769
        %v1896 = vsub.f32 %v800, %v1768
        %v1897 = vsub.f32 %v800, %v1769
        %v1898 = vsub.f32 %v805, %v1768
        %v1899 = vsub.f32 %v805, %v1769
        %v1900 = vsub.f32 %v810, %v1768
        %v1901 = vsub.f32 %v810, %v1769
        %v1902 = vsub.f32 %v815, %v1768
        %v1903 = vsub.f32 %v815, %v1769
        %v1904 = vsub.f32 %v820, %v1768
        %v1905 = vsub.f32 %v820, %v1769
        %v1906 = vsub.f32 %v825, %v1768
        %v1907 = vsub.f32 %v825, %v1769
        %v1908 = vsub.f32 %v830, %v1768
        %v1909 = vsub.f32 %v830, %v1769
        %v1910 = vsub.f32 %v835, %v1768
        %v1911 = vsub.f32 %v835, %v1769
        %v1912 = vsub.f32 %v840, %v1768
        %v1913 = vsub.f32 %v840, %v1769
        %v1914 = vsub.f32 %v845, %v1768
        %v1915 = vsub.f32 %v845, %v1769
        %v1916 = vsub.f32 %v850, %v1768
        %v1917 = vsub.f32 %v850, %v1769
        %v1918 = vsub.f32 %v855, %v1768
        %v1919 = vsub.f32 %v855, %v1769
        %v1920 = vsub.f32 %v860, %v1768
        %v1921 = vsub.f32 %v860, %v1769
        %v1922 = vsub.f32 %v865, %v1768
        %v1923 = vsub.f32 %v865, %v1769
        %v1924 = vsub.f32 %v870, %v1768
        %v1925 = vsub.f32 %v870, %v1769
        %v1926 = vsub.f32 %v875, %v1768
        %v1927 = vsub.f32 %v875, %v1769
        %v1928 = vsub.f32 %v880, %v1768
        %v1929 = vsub.f32 %v880, %v1769
        %v1930 = vsub.f32 %v885, %v1768
        %v1931 = vsub.f32 %v885, %v1769
        %v1932 = vsub.f32 %v890, %v1768
        %v1933 = vsub.f32 %v890, %v1769
        %v1934 = vsub.f32 %v895, %v1768
        %v1935 = vsub.f32 %v895, %v1769
        %v1936 = vsub.f32 %v900, %v1768
        %v1937 = vsub.f32 %v900, %v1769
        %v1938 = vsub.f32 %v905, %v1768
        %v1939 = vsub.f32 %v905, %v1769
        %v1940 = vsub.f32 %v910, %v1768
        %v1941 = vsub.f32 %v910, %v1769
        %v1942 = vsub.f32 %v915, %v1768
        %v1943 = vsub.f32 %v915, %v1769
        %v1944 = vsub.f32 %v920, %v1768
        %v1945 = vsub.f32 %v920, %v1769
        %v1946 = vsub.f32 %v925, %v1768
        %v1947 = vsub.f32 %v925, %v1769
        %v1948 = vsub.f32 %v930, %v1768
        %v1949 = vsub.f32 %v930, %v1769
        %v1950 = vsub.f32 %v935, %v1768
        %v1951 = vsub.f32 %v935, %v1769
        %v1952 = vsub.f32 %v940, %v1768
        %v1953 = vsub.f32 %v940, %v1769
        %v1954 = vsub.f32 %v945, %v1768
        %v1955 = vsub.f32 %v945, %v1769
        %v1956 = vsub.f32 %v950, %v1768
        %v1957 = vsub.f32 %v950, %v1769
        %v1958 = vsub.f32 %v955, %v1768
        %v1959 = vsub.f32 %v955, %v1769
        %v1960 = vsub.f32 %v960, %v1768
        %v1961 = vsub.f32 %v960, %v1769
        %v1962 = vsub.f32 %v965, %v1768
        %v1963 = vsub.f32 %v965, %v1769
        %v1964 = vsub.f32 %v970, %v1768
        %v1965 = vsub.f32 %v970, %v1769
        %v1966 = vsub.f32 %v975, %v1768
        %v1967 = vsub.f32 %v975, %v1769
        %v1968 = vsub.f32 %v980, %v1768
        %v1969 = vsub.f32 %v980, %v1769
        %v1970 = vsub.f32 %v985, %v1768
        %v1971 = vsub.f32 %v985, %v1769
        %v1972 = vsub.f32 %v990, %v1768
        %v1973 = vsub.f32 %v990, %v1769
        %v1974 = vsub.f32 %v995, %v1768
        %v1975 = vsub.f32 %v995, %v1769
        %v1976 = vsub.f32 %v1000, %v1768
        %v1977 = vsub.f32 %v1000, %v1769
        %v1978 = vsub.f32 %v1005, %v1768
        %v1979 = vsub.f32 %v1005, %v1769
        %v1980 = vsub.f32 %v1010, %v1768
        %v1981 = vsub.f32 %v1010, %v1769
        %v1982 = vsub.f32 %v1015, %v1768
        %v1983 = vsub.f32 %v1015, %v1769
        %v1984 = vsub.f32 %v1020, %v1768
        %v1985 = vsub.f32 %v1020, %v1769
        %v1986 = vsub.f32 %v1025, %v1768
        %v1987 = vsub.f32 %v1025, %v1769
        %v1988 = vsub.f32 %v1030, %v1768
        %v1989 = vsub.f32 %v1030, %v1769
        %v1990 = vsub.f32 %v1035, %v1768
        %v1991 = vsub.f32 %v1035, %v1769
        %v1992 = vsub.f32 %v1040, %v1768
        %v1993 = vsub.f32 %v1040, %v1769
        %v1994 = vsub.f32 %v1045, %v1768
        %v1995 = vsub.f32 %v1045, %v1769
        %v1996 = vsub.f32 %v1050, %v1768
        %v1997 = vsub.f32 %v1050, %v1769
        %v1998 = vsub.f32 %v1055, %v1768
        %v1999 = vsub.f32 %v1055, %v1769
        %v2000 = vsub.f32 %v1060, %v1768
        %v2001 = vsub.f32 %v1060, %v1769
        %v2002 = vsub.f32 %v1065, %v1768
        %v2003 = vsub.f32 %v1065, %v1769
        %v2004 = vsub.f32 %v1070, %v1768
        %v2005 = vsub.f32 %v1070, %v1769
        %v2006 = vsub.f32 %v1075, %v1768
        %v2007 = vsub.f32 %v1075, %v1769
        %v2008 = vsub.f32 %v1080, %v1768
        %v2009 = vsub.f32 %v1080, %v1769
        %v2010 = vsub.f32 %v1085, %v1768
        %v2011 = vsub.f32 %v1085, %v1769
        %v2012 = vsub.f32 %v1090, %v1768
        %v2013 = vsub.f32 %v1090, %v1769
        %v2014 = vsub.f32 %v1095, %v1768
        %v2015 = vsub.f32 %v1095, %v1769
        %v2016 = vsub.f32 %v1100, %v1768
        %v2017 = vsub.f32 %v1100, %v1769
        %v2018 = vsub.f32 %v1105, %v1768
        %v2019 = vsub.f32 %v1105, %v1769
        %v2020 = vsub.f32 %v1110, %v1768
        %v2021 = vsub.f32 %v1110, %v1769
        %v2022 = vsub.f32 %v1115, %v1768
        %v2023 = vsub.f32 %v1115, %v1769
        %v2024 = vsub.f32 %v1120, %v1768
        %v2025 = vsub.f32 %v1120, %v1769
        %v2026 = vsub.f32 %v1125, %v1768
        %v2027 = vsub.f32 %v1125, %v1769
        %v2028 = vsub.f32 %v1130, %v1768
        %v2029 = vsub.f32 %v1130, %v1769
        %v2030 = vsub.f32 %v1135, %v1768
        %v2031 = vsub.f32 %v1135, %v1769
        %v2032 = vsub.f32 %v1140, %v1768
        %v2033 = vsub.f32 %v1140, %v1769
        %v2034 = vsub.f32 %v1145, %v1768
        %v2035 = vsub.f32 %v1145, %v1769
        %v2036 = vsub.f32 %v1150, %v1768
        %v2037 = vsub.f32 %v1150, %v1769
        %v2038 = vsub.f32 %v1155, %v1768
        %v2039 = vsub.f32 %v1155, %v1769
        %v2040 = vsub.f32 %v1160, %v1768
        %v2041 = vsub.f32 %v1160, %v1769
        %v2042 = vsub.f32 %v1165, %v1768
        %v2043 = vsub.f32 %v1165, %v1769
        %v2044 = vsub.f32 %v1170, %v1768
        %v2045 = vsub.f32 %v1170, %v1769
        %v2046 = vsub.f32 %v1175, %v1768
        %v2047 = vsub.f32 %v1175, %v1769
        %v2048 = vsub.f32 %v1180, %v1768
        %v2049 = vsub.f32 %v1180, %v1769
        %v2050 = vsub.f32 %v1185, %v1768
        %v2051 = vsub.f32 %v1185, %v1769
        %v2052 = vsub.f32 %v1190, %v1768
        %v2053 = vsub.f32 %v1190, %v1769
        %v2054 = vsub.f32 %v1195, %v1768
        %v2055 = vsub.f32 %v1195, %v1769
        %v2056 = vsub.f32 %v1200, %v1768
        %v2057 = vsub.f32 %v1200, %v1769
        %v2058 = vsub.f32 %v1205, %v1768
        %v2059 = vsub.f32 %v1205, %v1769
        %v2060 = vsub.f32 %v1210, %v1768
        %v2061 = vsub.f32 %v1210, %v1769
        %v2062 = vsub.f32 %v1215, %v1768
        %v2063 = vsub.f32 %v1215, %v1769
        %v2064 = vsub.f32 %v1220, %v1768
        %v2065 = vsub.f32 %v1220, %v1769
        %v2066 = vsub.f32 %v1225, %v1768
        %v2067 = vsub.f32 %v1225, %v1769
        %v2068 = vsub.f32 %v1230, %v1768
        %v2069 = vsub.f32 %v1230, %v1769
        %v2070 = vsub.f32 %v1235, %v1768
        %v2071 = vsub.f32 %v1235, %v1769
        %v2072 = vsub.f32 %v1240, %v1768
        %v2073 = vsub.f32 %v1240, %v1769
        %v2074 = vsub.f32 %v1245, %v1768
        %v2075 = vsub.f32 %v1245, %v1769
        %v2076 = vsub.f32 %v1250, %v1768
        %v2077 = vsub.f32 %v1250, %v1769
        %v2078 = vsub.f32 %v1255, %v1768
        %v2079 = vsub.f32 %v1255, %v1769
        %v2080 = vsub.f32 %v1260, %v1768
        %v2081 = vsub.f32 %v1260, %v1769
        %v2082 = vsub.f32 %v1265, %v1768
        %v2083 = vsub.f32 %v1265, %v1769
        %v2084 = vsub.f32 %v1270, %v1768
        %v2085 = vsub.f32 %v1270, %v1769
        %v2086 = vsub.f32 %v1275, %v1768
        %v2087 = vsub.f32 %v1275, %v1769
        %v2088 = vsub.f32 %v1280, %v1768
        %v2089 = vsub.f32 %v1280, %v1769
        %v2090 = vsub.f32 %v1285, %v1768
        %v2091 = vsub.f32 %v1285, %v1769
        %v2092 = vsub.f32 %v1290, %v1768
        %v2093 = vsub.f32 %v1290, %v1769
        %v2094 = vsub.f32 %v1295, %v1768
        %v2095 = vsub.f32 %v1295, %v1769
        %v2096 = vsub.f32 %v1300, %v1768
        %v2097 = vsub.f32 %v1300, %v1769
        %v2098 = vsub.f32 %v1305, %v1768
        %v2099 = vsub.f32 %v1305, %v1769
        %v2100 = vsub.f32 %v1310, %v1768
        %v2101 = vsub.f32 %v1310, %v1769
        %v2102 = vsub.f32 %v1315, %v1768
        %v2103 = vsub.f32 %v1315, %v1769
        %v2104 = vsub.f32 %v1320, %v1768
        %v2105 = vsub.f32 %v1320, %v1769
        %v2106 = vsub.f32 %v1325, %v1768
        %v2107 = vsub.f32 %v1325, %v1769
        %v2108 = vsub.f32 %v1330, %v1768
        %v2109 = vsub.f32 %v1330, %v1769
        %v2110 = vsub.f32 %v1335, %v1768
        %v2111 = vsub.f32 %v1335, %v1769
        %v2112 = vsub.f32 %v1340, %v1768
        %v2113 = vsub.f32 %v1340, %v1769
        %v2114 = vsub.f32 %v1345, %v1768
        %v2115 = vsub.f32 %v1345, %v1769
        %v2116 = vsub.f32 %v1350, %v1768
        %v2117 = vsub.f32 %v1350, %v1769
        %v2118 = vsub.f32 %v1355, %v1768
        %v2119 = vsub.f32 %v1355, %v1769
        %v2120 = vsub.f32 %v1360, %v1768
        %v2121 = vsub.f32 %v1360, %v1769
        %v2122 = vsub.f32 %v1365, %v1768
        %v2123 = vsub.f32 %v1365, %v1769
        %v2124 = vsub.f32 %v1370, %v1768
        %v2125 = vsub.f32 %v1370, %v1769
        %v2126 = vsub.f32 %v1375, %v1768
        %v2127 = vsub.f32 %v1375, %v1769
        %v2128 = vsub.f32 %v1380, %v1768
        %v2129 = vsub.f32 %v1380, %v1769
        %v2130 = vsub.f32 %v1385, %v1768
        %v2131 = vsub.f32 %v1385, %v1769
        %v2132 = vsub.f32 %v1390, %v1768
        %v2133 = vsub.f32 %v1390, %v1769
        %v2134 = vsub.f32 %v1395, %v1768
        %v2135 = vsub.f32 %v1395, %v1769
        %v2136 = vsub.f32 %v1400, %v1768
        %v2137 = vsub.f32 %v1400, %v1769
        %v2138 = vsub.f32 %v1405, %v1768
        %v2139 = vsub.f32 %v1405, %v1769
        %v2140 = vsub.f32 %v1410, %v1768
        %v2141 = vsub.f32 %v1410, %v1769
        %v2142 = vsub.f32 %v1415, %v1768
        %v2143 = vsub.f32 %v1415, %v1769
        %v2144 = vsub.f32 %v1420, %v1768
        %v2145 = vsub.f32 %v1420, %v1769
        %v2146 = vsub.f32 %v1425, %v1768
        %v2147 = vsub.f32 %v1425, %v1769
        %v2148 = vsub.f32 %v1430, %v1768
        %v2149 = vsub.f32 %v1430, %v1769
        %v2150 = vsub.f32 %v1435, %v1768
        %v2151 = vsub.f32 %v1435, %v1769
        %v2152 = vsub.f32 %v1440, %v1768
        %v2153 = vsub.f32 %v1440, %v1769
        %v2154 = vsub.f32 %v1445, %v1768
        %v2155 = vsub.f32 %v1445, %v1769
        %v2156 = vsub.f32 %v1450, %v1768
        %v2157 = vsub.f32 %v1450, %v1769
        %v2158 = vsub.f32 %v1455, %v1768
        %v2159 = vsub.f32 %v1455, %v1769
        %v2160 = vsub.f32 %v1460, %v1768
        %v2161 = vsub.f32 %v1460, %v1769
        %v2162 = vsub.f32 %v1465, %v1768
        %v2163 = vsub.f32 %v1465, %v1769
        %v2164 = vsub.f32 %v1470, %v1768
        %v2165 = vsub.f32 %v1470, %v1769
        %v2166 = vsub.f32 %v1475, %v1768
        %v2167 = vsub.f32 %v1475, %v1769
        %v2168 = vsub.f32 %v1480, %v1768
        %v2169 = vsub.f32 %v1480, %v1769
        %v2170 = vsub.f32 %v1485, %v1768
        %v2171 = vsub.f32 %v1485, %v1769
        %v2172 = vsub.f32 %v1490, %v1768
        %v2173 = vsub.f32 %v1490, %v1769
        %v2174 = vsub.f32 %v1495, %v1768
        %v2175 = vsub.f32 %v1495, %v1769
        %v2176 = vsub.f32 %v1500, %v1768
        %v2177 = vsub.f32 %v1500, %v1769
        %v2178 = vsub.f32 %v1505, %v1768
        %v2179 = vsub.f32 %v1505, %v1769
        %v2180 = vsub.f32 %v1510, %v1768
        %v2181 = vsub.f32 %v1510, %v1769
        %v2182 = vsub.f32 %v1515, %v1768
        %v2183 = vsub.f32 %v1515, %v1769
        %v2184 = vsub.f32 %v1520, %v1768
        %v2185 = vsub.f32 %v1520, %v1769
        %v2186 = vsub.f32 %v1525, %v1768
        %v2187 = vsub.f32 %v1525, %v1769
        %v2188 = vsub.f32 %v1530, %v1768
        %v2189 = vsub.f32 %v1530, %v1769
        %v2190 = vsub.f32 %v1535, %v1768
        %v2191 = vsub.f32 %v1535, %v1769
        %v2192 = vsub.f32 %v1540, %v1768
        %v2193 = vsub.f32 %v1540, %v1769
        %v2194 = vsub.f32 %v1545, %v1768
        %v2195 = vsub.f32 %v1545, %v1769
        %v2196 = vsub.f32 %v1550, %v1768
        %v2197 = vsub.f32 %v1550, %v1769
        %v2198 = vsub.f32 %v1555, %v1768
        %v2199 = vsub.f32 %v1555, %v1769
        %v2200 = vsub.f32 %v1560, %v1768
        %v2201 = vsub.f32 %v1560, %v1769
        %v2202 = vsub.f32 %v1565, %v1768
        %v2203 = vsub.f32 %v1565, %v1769
        %v2204 = vsub.f32 %v1570, %v1768
        %v2205 = vsub.f32 %v1570, %v1769
        %v2206 = vsub.f32 %v1575, %v1768
        %v2207 = vsub.f32 %v1575, %v1769
        %v2208 = vsub.f32 %v1580, %v1768
        %v2209 = vsub.f32 %v1580, %v1769
        %v2210 = vsub.f32 %v1585, %v1768
        %v2211 = vsub.f32 %v1585, %v1769
        %v2212 = vsub.f32 %v1590, %v1768
        %v2213 = vsub.f32 %v1590, %v1769
        %v2214 = vsub.f32 %v1595, %v1768
        %v2215 = vsub.f32 %v1595, %v1769
        %v2216 = vsub.f32 %v1600, %v1768
        %v2217 = vsub.f32 %v1600, %v1769
        %v2218 = vsub.f32 %v1605, %v1768
        %v2219 = vsub.f32 %v1605, %v1769
        %v2220 = vsub.f32 %v1610, %v1768
        %v2221 = vsub.f32 %v1610, %v1769
        %v2222 = vsub.f32 %v1615, %v1768
        %v2223 = vsub.f32 %v1615, %v1769
        %v2224 = vsub.f32 %v1620, %v1768
        %v2225 = vsub.f32 %v1620, %v1769
        %v2226 = vsub.f32 %v1625, %v1768
        %v2227 = vsub.f32 %v1625, %v1769
        %v2228 = vsub.f32 %v1630, %v1768
        %v2229 = vsub.f32 %v1630, %v1769
        %v2230 = vsub.f32 %v1635, %v1768
        %v2231 = vsub.f32 %v1635, %v1769
        %v2232 = vsub.f32 %v1640, %v1768
        %v2233 = vsub.f32 %v1640, %v1769
        %v2234 = vsub.f32 %v1645, %v1768
        %v2235 = vsub.f32 %v1645, %v1769
        %v2236 = vsub.f32 %v1650, %v1768
        %v2237 = vsub.f32 %v1650, %v1769
        %v2238 = vsub.f32 %v1655, %v1768
        %v2239 = vsub.f32 %v1655, %v1769
        %v2240 = vsub.f32 %v1660, %v1768
        %v2241 = vsub.f32 %v1660, %v1769
        %v2242 = vsub.f32 %v1665, %v1768
        %v2243 = vsub.f32 %v1665, %v1769
        %v2244 = vsub.f32 %v1670, %v1768
        %v2245 = vsub.f32 %v1670, %v1769
        %v2246 = vsub.f32 %v1675, %v1768
        %v2247 = vsub.f32 %v1675, %v1769
        %v2248 = vsub.f32 %v1680, %v1768
        %v2249 = vsub.f32 %v1680, %v1769
        %v2250 = vsub.f32 %v1685, %v1768
        %v2251 = vsub.f32 %v1685, %v1769
        %v2252 = vsub.f32 %v1690, %v1768
        %v2253 = vsub.f32 %v1690, %v1769
        %v2254 = vsub.f32 %v1695, %v1768
        %v2255 = vsub.f32 %v1695, %v1769
        %v2256 = vsub.f32 %v1700, %v1768
        %v2257 = vsub.f32 %v1700, %v1769
        %v2258 = vsub.f32 %v1705, %v1768
        %v2259 = vsub.f32 %v1705, %v1769
        %v2260 = vsub.f32 %v1710, %v1768
        %v2261 = vsub.f32 %v1710, %v1769
        %v2262 = vsub.f32 %v1715, %v1768
        %v2263 = vsub.f32 %v1715, %v1769
        %v2264 = vsub.f32 %v1720, %v1768
        %v2265 = vsub.f32 %v1720, %v1769
        %v2266 = vsub.f32 %v1725, %v1768
        %v2267 = vsub.f32 %v1725, %v1769
        %v2268 = vsub.f32 %v1730, %v1768
        %v2269 = vsub.f32 %v1730, %v1769
        %v2270 = vsub.f32 %v1735, %v1768
        %v2271 = vsub.f32 %v1735, %v1769
        %v2272 = vsub.f32 %v1740, %v1768
        %v2273 = vsub.f32 %v1740, %v1769
        %v2274 = vsub.f32 %v1745, %v1768
        %v2275 = vsub.f32 %v1745, %v1769
        %v2276 = vsub.f32 %v1750, %v1768
        %v2277 = vsub.f32 %v1750, %v1769
        %v2278 = vsub.f32 %v1755, %v1768
        %v2279 = vsub.f32 %v1755, %v1769
        %v2280 = vsub.f32 %v1760, %v1768
        %v2281 = vsub.f32 %v1760, %v1769
        %v2282 = vsub.f32 %v1765, %v1768
        %v2283 = vsub.f32 %v1765, %v1769
        %v2284 = vmax.f32 %v1772, 0.0
        %v2285 = vmax.f32 %v1773, 0.0
        %v2286 = vmax.f32 %v1774, 0.0
        %v2287 = vmax.f32 %v1775, 0.0
        %v2288 = vmax.f32 %v1776, 0.0
        %v2289 = vmax.f32 %v1777, 0.0
        %v2290 = vmax.f32 %v1778, 0.0
        %v2291 = vmax.f32 %v1779, 0.0
        %v2292 = vmax.f32 %v1780, 0.0
        %v2293 = vmax.f32 %v1781, 0.0
        %v2294 = vmax.f32 %v1782, 0.0
        %v2295 = vmax.f32 %v1783, 0.0
        %v2296 = vmax.f32 %v1784, 0.0
        %v2297 = vmax.f32 %v1785, 0.0
        %v2298 = vmax.f32 %v1786, 0.0
        %v2299 = vmax.f32 %v1787, 0.0
        %v2300 = vmax.f32 %v1788, 0.0
        %v2301 = vmax.f32 %v1789, 0.0
        %v2302 = vmax.f32 %v1790, 0.0
        %v2303 = vmax.f32 %v1791, 0.0
        %v2304 = vmax.f32 %v1792, 0.0
        %v2305 = vmax.f32 %v1793, 0.0
        %v2306 = vmax.f32 %v1794, 0.0
        %v2307 = vmax.f32 %v1795, 0.0
        %v2308 = vmax.f32 %v1796, 0.0
        %v2309 = vmax.f32 %v1797, 0.0
        %v2310 = vmax.f32 %v1798, 0.0
        %v2311 = vmax.f32 %v1799, 0.0
        %v2312 = vmax.f32 %v1800, 0.0
        %v2313 = vmax.f32 %v1801, 0.0
        %v2314 = vmax.f32 %v1802, 0.0
        %v2315 = vmax.f32 %v1803, 0.0
        %v2316 = vmax.f32 %v1804, 0.0
        %v2317 = vmax.f32 %v1805, 0.0
        %v2318 = vmax.f32 %v1806, 0.0
        %v2319 = vmax.f32 %v1807, 0.0
        %v2320 = vmax.f32 %v1808, 0.0
        %v2321 = vmax.f32 %v1809, 0.0
        %v2322 = vmax.f32 %v1810, 0.0
        %v2323 = vmax.f32 %v1811, 0.0
        %v2324 = vmax.f32 %v1812, 0.0
        %v2325 = vmax.f32 %v1813, 0.0
        %v2326 = vmax.f32 %v1814, 0.0
        %v2327 = vmax.f32 %v1815, 0.0
        %v2328 = vmax.f32 %v1816, 0.0
        %v2329 = vmax.f32 %v1817, 0.0
        %v2330 = vmax.f32 %v1818, 0.0
        %v2331 = vmax.f32 %v1819, 0.0
        %v2332 = vmax.f32 %v1820, 0.0
        %v2333 = vmax.f32 %v1821, 0.0
        %v2334 = vmax.f32 %v1822, 0.0
        %v2335 = vmax.f32 %v1823, 0.0
        %v2336 = vmax.f32 %v1824, 0.0
        %v2337 = vmax.f32 %v1825, 0.0
        %v2338 = vmax.f32 %v1826, 0.0
        %v2339 = vmax.f32 %v1827, 0.0
        %v2340 = vmax.f32 %v1828, 0.0
        %v2341 = vmax.f32 %v1829, 0.0
        %v2342 = vmax.f32 %v1830, 0.0
        %v2343 = vmax.f32 %v1831, 0.0
        %v2344 = vmax.f32 %v1832, 0.0
        %v2345 = vmax.f32 %v1833, 0.0
        %v2346 = vmax.f32 %v1834, 0.0
        %v2347 = vmax.f32 %v1835, 0.0
        %v2348 = vmax.f32 %v1836, 0.0
        %v2349 = vmax.f32 %v1837, 0.0
        %v2350 = vmax.f32 %v1838, 0.0
        %v2351 = vmax.f32 %v1839, 0.0
        %v2352 = vmax.f32 %v1840, 0.0
        %v2353 = vmax.f32 %v1841, 0.0
        %v2354 = vmax.f32 %v1842, 0.0
        %v2355 = vmax.f32 %v1843, 0.0
        %v2356 = vmax.f32 %v1844, 0.0
        %v2357 = vmax.f32 %v1845, 0.0
        %v2358 = vmax.f32 %v1846, 0.0
        %v2359 = vmax.f32 %v1847, 0.0
        %v2360 = vmax.f32 %v1848, 0.0
        %v2361 = vmax.f32 %v1849, 0.0
        %v2362 = vmax.f32 %v1850, 0.0
        %v2363 = vmax.f32 %v1851, 0.0
        %v2364 = vmax.f32 %v1852, 0.0
        %v2365 = vmax.f32 %v1853, 0.0
        %v2366 = vmax.f32 %v1854, 0.0
        %v2367 = vmax.f32 %v1855, 0.0
        %v2368 = vmax.f32 %v1856, 0.0
        %v2369 = vmax.f32 %v1857, 0.0
        %v2370 = vmax.f32 %v1858, 0.0
        %v2371 = vmax.f32 %v1859, 0.0
        %v2372 = vmax.f32 %v1860, 0.0
        %v2373 = vmax.f32 %v1861, 0.0
        %v2374 = vmax.f32 %v1862, 0.0
        %v2375 = vmax.f32 %v1863, 0.0
        %v2376 = vmax.f32 %v1864, 0.0
        %v2377 = vmax.f32 %v1865, 0.0
        %v2378 = vmax.f32 %v1866, 0.0
        %v2379 = vmax.f32 %v1867, 0.0
        %v2380 = vmax.f32 %v1868, 0.0
        %v2381 = vmax.f32 %v1869, 0.0
        %v2382 = vmax.f32 %v1870, 0.0
        %v2383 = vmax.f32 %v1871, 0.0
        %v2384 = vmax.f32 %v1872, 0.0
        %v2385 = vmax.f32 %v1873, 0.0
        %v2386 = vmax.f32 %v1874, 0.0
        %v2387 = vmax.f32 %v1875, 0.0
        %v2388 = vmax.f32 %v1876, 0.0
        %v2389 = vmax.f32 %v1877, 0.0
        %v2390 = vmax.f32 %v1878, 0.0
        %v2391 = vmax.f32 %v1879, 0.0
        %v2392 = vmax.f32 %v1880, 0.0
        %v2393 = vmax.f32 %v1881, 0.0
        %v2394 = vmax.f32 %v1882, 0.0
        %v2395 = vmax.f32 %v1883, 0.0
        %v2396 = vmax.f32 %v1884, 0.0
        %v2397 = vmax.f32 %v1885, 0.0
        %v2398 = vmax.f32 %v1886, 0.0
        %v2399 = vmax.f32 %v1887, 0.0
        %v2400 = vmax.f32 %v1888, 0.0
        %v2401 = vmax.f32 %v1889, 0.0
        %v2402 = vmax.f32 %v1890, 0.0
        %v2403 = vmax.f32 %v1891, 0.0
        %v2404 = vmax.f32 %v1892, 0.0
        %v2405 = vmax.f32 %v1893, 0.0
        %v2406 = vmax.f32 %v1894, 0.0
        %v2407 = vmax.f32 %v1895, 0.0
        %v2408 = vmax.f32 %v1896, 0.0
        %v2409 = vmax.f32 %v1897, 0.0
        %v2410 = vmax.f32 %v1898, 0.0
        %v2411 = vmax.f32 %v1899, 0.0
        %v2412 = vmax.f32 %v1900, 0.0
        %v2413 = vmax.f32 %v1901, 0.0
        %v2414 = vmax.f32 %v1902, 0.0
        %v2415 = vmax.f32 %v1903, 0.0
        %v2416 = vmax.f32 %v1904, 0.0
        %v2417 = vmax.f32 %v1905, 0.0
        %v2418 = vmax.f32 %v1906, 0.0
        %v2419 = vmax.f32 %v1907, 0.0
        %v2420 = vmax.f32 %v1908, 0.0
        %v2421 = vmax.f32 %v1909, 0.0
        %v2422 = vmax.f32 %v1910, 0.0
        %v2423 = vmax.f32 %v1911, 0.0
        %v2424 = vmax.f32 %v1912, 0.0
        %v2425 = vmax.f32 %v1913, 0.0
        %v2426 = vmax.f32 %v1914, 0.0
        %v2427 = vmax.f32 %v1915, 0.0
        %v2428 = vmax.f32 %v1916, 0.0
        %v2429 = vmax.f32 %v1917, 0.0
        %v2430 = vmax.f32 %v1918, 0.0
        %v2431 = vmax.f32 %v1919, 0.0
        %v2432 = vmax.f32 %v1920, 0.0
        %v2433 = vmax.f32 %v1921, 0.0
        %v2434 = vmax.f32 %v1922, 0.0
        %v2435 = vmax.f32 %v1923, 0.0
        %v2436 = vmax.f32 %v1924, 0.0
        %v2437 = vmax.f32 %v1925, 0.0
        %v2438 = vmax.f32 %v1926, 0.0
        %v2439 = vmax.f32 %v1927, 0.0
        %v2440 = vmax.f32 %v1928, 0.0
        %v2441 = vmax.f32 %v1929, 0.0
        %v2442 = vmax.f32 %v1930, 0.0
        %v2443 = vmax.f32 %v1931, 0.0
        %v2444 = vmax.f32 %v1932, 0.0
        %v2445 = vmax.f32 %v1933, 0.0
        %v2446 = vmax.f32 %v1934, 0.0
        %v2447 = vmax.f32 %v1935, 0.0
        %v2448 = vmax.f32 %v1936, 0.0
        %v2449 = vmax.f32 %v1937, 0.0
        %v2450 = vmax.f32 %v1938, 0.0
        %v2451 = vmax.f32 %v1939, 0.0
        %v2452 = vmax.f32 %v1940, 0.0
        %v2453 = vmax.f32 %v1941, 0.0
        %v2454 = vmax.f32 %v1942, 0.0
        %v2455 = vmax.f32 %v1943, 0.0
        %v2456 = vmax.f32 %v1944, 0.0
        %v2457 = vmax.f32 %v1945, 0.0
        %v2458 = vmax.f32 %v1946, 0.0
        %v2459 = vmax.f32 %v1947, 0.0
        %v2460 = vmax.f32 %v1948, 0.0
        %v2461 = vmax.f32 %v1949, 0.0
        %v2462 = vmax.f32 %v1950, 0.0
        %v2463 = vmax.f32 %v1951, 0.0
        %v2464 = vmax.f32 %v1952, 0.0
        %v2465 = vmax.f32 %v1953, 0.0
        %v2466 = vmax.f32 %v1954, 0.0
        %v2467 = vmax.f32 %v1955, 0.0
        %v2468 = vmax.f32 %v1956, 0.0
        %v2469 = vmax.f32 %v1957, 0.0
        %v2470 = vmax.f32 %v1958, 0.0
        %v2471 = vmax.f32 %v1959, 0.0
        %v2472 = vmax.f32 %v1960, 0.0
        %v2473 = vmax.f32 %v1961, 0.0
        %v2474 = vmax.f32 %v1962, 0.0
        %v2475 = vmax.f32 %v1963, 0.0
        %v2476 = vmax.f32 %v1964, 0.0
        %v2477 = vmax.f32 %v1965, 0.0
        %v2478 = vmax.f32 %v1966, 0.0
        %v2479 = vmax.f32 %v1967, 0.0
        %v2480 = vmax.f32 %v1968, 0.0
        %v2481 = vmax.f32 %v1969, 0.0
        %v2482 = vmax.f32 %v1970, 0.0
        %v2483 = vmax.f32 %v1971, 0.0
        %v2484 = vmax.f32 %v1972, 0.0
        %v2485 = vmax.f32 %v1973, 0.0
        %v2486 = vmax.f32 %v1974, 0.0
        %v2487 = vmax.f32 %v1975, 0.0
        %v2488 = vmax.f32 %v1976, 0.0
        %v2489 = vmax.f32 %v1977, 0.0
        %v2490 = vmax.f32 %v1978, 0.0
        %v2491 = vmax.f32 %v1979, 0.0
        %v2492 = vmax.f32 %v1980, 0.0
        %v2493 = vmax.f32 %v1981, 0.0
        %v2494 = vmax.f32 %v1982, 0.0
        %v2495 = vmax.f32 %v1983, 0.0
        %v2496 = vmax.f32 %v1984, 0.0
        %v2497 = vmax.f32 %v1985, 0.0
        %v2498 = vmax.f32 %v1986, 0.0
        %v2499 = vmax.f32 %v1987, 0.0
        %v2500 = vmax.f32 %v1988, 0.0
        %v2501 = vmax.f32 %v1989, 0.0
        %v2502 = vmax.f32 %v1990, 0.0
        %v2503 = vmax.f32 %v1991, 0.0
        %v2504 = vmax.f32 %v1992, 0.0
        %v2505 = vmax.f32 %v1993, 0.0
        %v2506 = vmax.f32 %v1994, 0.0
        %v2507 = vmax.f32 %v1995, 0.0
        %v2508 = vmax.f32 %v1996, 0.0
        %v2509 = vmax.f32 %v1997, 0.0
        %v2510 = vmax.f32 %v1998, 0.0
        %v2511 = vmax.f32 %v1999, 0.0
        %v2512 = vmax.f32 %v2000, 0.0
        %v2513 = vmax.f32 %v2001, 0.0
        %v2514 = vmax.f32 %v2002, 0.0
        %v2515 = vmax.f32 %v2003, 0.0
        %v2516 = vmax.f32 %v2004, 0.0
        %v2517 = vmax.f32 %v2005, 0.0
        %v2518 = vmax.f32 %v2006, 0.0
        %v2519 = vmax.f32 %v2007, 0.0
        %v2520 = vmax.f32 %v2008, 0.0
        %v2521 = vmax.f32 %v2009, 0.0
        %v2522 = vmax.f32 %v2010, 0.0
        %v2523 = vmax.f32 %v2011, 0.0
        %v2524 = vmax.f32 %v2012, 0.0
        %v2525 = vmax.f32 %v2013, 0.0
        %v2526 = vmax.f32 %v2014, 0.0
        %v2527 = vmax.f32 %v2015, 0.0
        %v2528 = vmax.f32 %v2016, 0.0
        %v2529 = vmax.f32 %v2017, 0.0
        %v2530 = vmax.f32 %v2018, 0.0
        %v2531 = vmax.f32 %v2019, 0.0
        %v2532 = vmax.f32 %v2020, 0.0
        %v2533 = vmax.f32 %v2021, 0.0
        %v2534 = vmax.f32 %v2022, 0.0
        %v2535 = vmax.f32 %v2023, 0.0
        %v2536 = vmax.f32 %v2024, 0.0
        %v2537 = vmax.f32 %v2025, 0.0
        %v2538 = vmax.f32 %v2026, 0.0
        %v2539 = vmax.f32 %v2027, 0.0
        %v2540 = vmax.f32 %v2028, 0.0
        %v2541 = vmax.f32 %v2029, 0.0
        %v2542 = vmax.f32 %v2030, 0.0
        %v2543 = vmax.f32 %v2031, 0.0
        %v2544 = vmax.f32 %v2032, 0.0
        %v2545 = vmax.f32 %v2033, 0.0
        %v2546 = vmax.f32 %v2034, 0.0
        %v2547 = vmax.f32 %v2035, 0.0
        %v2548 = vmax.f32 %v2036, 0.0
        %v2549 = vmax.f32 %v2037, 0.0
        %v2550 = vmax.f32 %v2038, 0.0
        %v2551 = vmax.f32 %v2039, 0.0
        %v2552 = vmax.f32 %v2040, 0.0
        %v2553 = vmax.f32 %v2041, 0.0
        %v2554 = vmax.f32 %v2042, 0.0
        %v2555 = vmax.f32 %v2043, 0.0
        %v2556 = vmax.f32 %v2044, 0.0
        %v2557 = vmax.f32 %v2045, 0.0
        %v2558 = vmax.f32 %v2046, 0.0
        %v2559 = vmax.f32 %v2047, 0.0
        %v2560 = vmax.f32 %v2048, 0.0
        %v2561 = vmax.f32 %v2049, 0.0
        %v2562 = vmax.f32 %v2050, 0.0
        %v2563 = vmax.f32 %v2051, 0.0
        %v2564 = vmax.f32 %v2052, 0.0
        %v2565 = vmax.f32 %v2053, 0.0
        %v2566 = vmax.f32 %v2054, 0.0
        %v2567 = vmax.f32 %v2055, 0.0
        %v2568 = vmax.f32 %v2056, 0.0
        %v2569 = vmax.f32 %v2057, 0.0
        %v2570 = vmax.f32 %v2058, 0.0
        %v2571 = vmax.f32 %v2059, 0.0
        %v2572 = vmax.f32 %v2060, 0.0
        %v2573 = vmax.f32 %v2061, 0.0
        %v2574 = vmax.f32 %v2062, 0.0
        %v2575 = vmax.f32 %v2063, 0.0
        %v2576 = vmax.f32 %v2064, 0.0
        %v2577 = vmax.f32 %v2065, 0.0
        %v2578 = vmax.f32 %v2066, 0.0
        %v2579 = vmax.f32 %v2067, 0.0
        %v2580 = vmax.f32 %v2068, 0.0
        %v2581 = vmax.f32 %v2069, 0.0
        %v2582 = vmax.f32 %v2070, 0.0
        %v2583 = vmax.f32 %v2071, 0.0
        %v2584 = vmax.f32 %v2072, 0.0
        %v2585 = vmax.f32 %v2073, 0.0
        %v2586 = vmax.f32 %v2074, 0.0
        %v2587 = vmax.f32 %v2075, 0.0
        %v2588 = vmax.f32 %v2076, 0.0
        %v2589 = vmax.f32 %v2077, 0.0
        %v2590 = vmax.f32 %v2078, 0.0
        %v2591 = vmax.f32 %v2079, 0.0
        %v2592 = vmax.f32 %v2080, 0.0
        %v2593 = vmax.f32 %v2081, 0.0
        %v2594 = vmax.f32 %v2082, 0.0
        %v2595 = vmax.f32 %v2083, 0.0
        %v2596 = vmax.f32 %v2084, 0.0
        %v2597 = vmax.f32 %v2085, 0.0
        %v2598 = vmax.f32 %v2086, 0.0
        %v2599 = vmax.f32 %v2087, 0.0
        %v2600 = vmax.f32 %v2088, 0.0
        %v2601 = vmax.f32 %v2089, 0.0
        %v2602 = vmax.f32 %v2090, 0.0
        %v2603 = vmax.f32 %v2091, 0.0
        %v2604 = vmax.f32 %v2092, 0.0
        %v2605 = vmax.f32 %v2093, 0.0
        %v2606 = vmax.f32 %v2094, 0.0
        %v2607 = vmax.f32 %v2095, 0.0
        %v2608 = vmax.f32 %v2096, 0.0
        %v2609 = vmax.f32 %v2097, 0.0
        %v2610 = vmax.f32 %v2098, 0.0
        %v2611 = vmax.f32 %v2099, 0.0
        %v2612 = vmax.f32 %v2100, 0.0
        %v2613 = vmax.f32 %v2101, 0.0
        %v2614 = vmax.f32 %v2102, 0.0
        %v2615 = vmax.f32 %v2103, 0.0
        %v2616 = vmax.f32 %v2104, 0.0
        %v2617 = vmax.f32 %v2105, 0.0
        %v2618 = vmax.f32 %v2106, 0.0
        %v2619 = vmax.f32 %v2107, 0.0
        %v2620 = vmax.f32 %v2108, 0.0
        %v2621 = vmax.f32 %v2109, 0.0
        %v2622 = vmax.f32 %v2110, 0.0
        %v2623 = vmax.f32 %v2111, 0.0
        %v2624 = vmax.f32 %v2112, 0.0
        %v2625 = vmax.f32 %v2113, 0.0
        %v2626 = vmax.f32 %v2114, 0.0
        %v2627 = vmax.f32 %v2115, 0.0
        %v2628 = vmax.f32 %v2116, 0.0
        %v2629 = vmax.f32 %v2117, 0.0
        %v2630 = vmax.f32 %v2118, 0.0
        %v2631 = vmax.f32 %v2119, 0.0
        %v2632 = vmax.f32 %v2120, 0.0
        %v2633 = vmax.f32 %v2121, 0.0
        %v2634 = vmax.f32 %v2122, 0.0
        %v2635 = vmax.f32 %v2123, 0.0
        %v2636 = vmax.f32 %v2124, 0.0
        %v2637 = vmax.f32 %v2125, 0.0
        %v2638 = vmax.f32 %v2126, 0.0
        %v2639 = vmax.f32 %v2127, 0.0
        %v2640 = vmax.f32 %v2128, 0.0
        %v2641 = vmax.f32 %v2129, 0.0
        %v2642 = vmax.f32 %v2130, 0.0
        %v2643 = vmax.f32 %v2131, 0.0
        %v2644 = vmax.f32 %v2132, 0.0
        %v2645 = vmax.f32 %v2133, 0.0
        %v2646 = vmax.f32 %v2134, 0.0
        %v2647 = vmax.f32 %v2135, 0.0
        %v2648 = vmax.f32 %v2136, 0.0
        %v2649 = vmax.f32 %v2137, 0.0
        %v2650 = vmax.f32 %v2138, 0.0
        %v2651 = vmax.f32 %v2139, 0.0
        %v2652 = vmax.f32 %v2140, 0.0
        %v2653 = vmax.f32 %v2141, 0.0
        %v2654 = vmax.f32 %v2142, 0.0
        %v2655 = vmax.f32 %v2143, 0.0
        %v2656 = vmax.f32 %v2144, 0.0
        %v2657 = vmax.f32 %v2145, 0.0
        %v2658 = vmax.f32 %v2146, 0.0
        %v2659 = vmax.f32 %v2147, 0.0
        %v2660 = vmax.f32 %v2148, 0.0
        %v2661 = vmax.f32 %v2149, 0.0
        %v2662 = vmax.f32 %v2150, 0.0
        %v2663 = vmax.f32 %v2151, 0.0
        %v2664 = vmax.f32 %v2152, 0.0
        %v2665 = vmax.f32 %v2153, 0.0
        %v2666 = vmax.f32 %v2154, 0.0
        %v2667 = vmax.f32 %v2155, 0.0
        %v2668 = vmax.f32 %v2156, 0.0
        %v2669 = vmax.f32 %v2157, 0.0
        %v2670 = vmax.f32 %v2158, 0.0
        %v2671 = vmax.f32 %v2159, 0.0
        %v2672 = vmax.f32 %v2160, 0.0
        %v2673 = vmax.f32 %v2161, 0.0
        %v2674 = vmax.f32 %v2162, 0.0
        %v2675 = vmax.f32 %v2163, 0.0
        %v2676 = vmax.f32 %v2164, 0.0
        %v2677 = vmax.f32 %v2165, 0.0
        %v2678 = vmax.f32 %v2166, 0.0
        %v2679 = vmax.f32 %v2167, 0.0
        %v2680 = vmax.f32 %v2168, 0.0
        %v2681 = vmax.f32 %v2169, 0.0
        %v2682 = vmax.f32 %v2170, 0.0
        %v2683 = vmax.f32 %v2171, 0.0
        %v2684 = vmax.f32 %v2172, 0.0
        %v2685 = vmax.f32 %v2173, 0.0
        %v2686 = vmax.f32 %v2174, 0.0
        %v2687 = vmax.f32 %v2175, 0.0
        %v2688 = vmax.f32 %v2176, 0.0
        %v2689 = vmax.f32 %v2177, 0.0
        %v2690 = vmax.f32 %v2178, 0.0
        %v2691 = vmax.f32 %v2179, 0.0
        %v2692 = vmax.f32 %v2180, 0.0
        %v2693 = vmax.f32 %v2181, 0.0
        %v2694 = vmax.f32 %v2182, 0.0
        %v2695 = vmax.f32 %v2183, 0.0
        %v2696 = vmax.f32 %v2184, 0.0
        %v2697 = vmax.f32 %v2185, 0.0
        %v2698 = vmax.f32 %v2186, 0.0
        %v2699 = vmax.f32 %v2187, 0.0
        %v2700 = vmax.f32 %v2188, 0.0
        %v2701 = vmax.f32 %v2189, 0.0
        %v2702 = vmax.f32 %v2190, 0.0
        %v2703 = vmax.f32 %v2191, 0.0
        %v2704 = vmax.f32 %v2192, 0.0
        %v2705 = vmax.f32 %v2193, 0.0
        %v2706 = vmax.f32 %v2194, 0.0
        %v2707 = vmax.f32 %v2195, 0.0
        %v2708 = vmax.f32 %v2196, 0.0
        %v2709 = vmax.f32 %v2197, 0.0
        %v2710 = vmax.f32 %v2198, 0.0
        %v2711 = vmax.f32 %v2199, 0.0
        %v2712 = vmax.f32 %v2200, 0.0
        %v2713 = vmax.f32 %v2201, 0.0
        %v2714 = vmax.f32 %v2202, 0.0
        %v2715 = vmax.f32 %v2203, 0.0
        %v2716 = vmax.f32 %v2204, 0.0
        %v2717 = vmax.f32 %v2205, 0.0
        %v2718 = vmax.f32 %v2206, 0.0
        %v2719 = vmax.f32 %v2207, 0.0
        %v2720 = vmax.f32 %v2208, 0.0
        %v2721 = vmax.f32 %v2209, 0.0
        %v2722 = vmax.f32 %v2210, 0.0
        %v2723 = vmax.f32 %v2211, 0.0
        %v2724 = vmax.f32 %v2212, 0.0
        %v2725 = vmax.f32 %v2213, 0.0
        %v2726 = vmax.f32 %v2214, 0.0
        %v2727 = vmax.f32 %v2215, 0.0
        %v2728 = vmax.f32 %v2216, 0.0
        %v2729 = vmax.f32 %v2217, 0.0
        %v2730 = vmax.f32 %v2218, 0.0
        %v2731 = vmax.f32 %v2219, 0.0
        %v2732 = vmax.f32 %v2220, 0.0
        %v2733 = vmax.f32 %v2221, 0.0
        %v2734 = vmax.f32 %v2222, 0.0
        %v2735 = vmax.f32 %v2223, 0.0
        %v2736 = vmax.f32 %v2224, 0.0
        %v2737 = vmax.f32 %v2225, 0.0
        %v2738 = vmax.f32 %v2226, 0.0
        %v2739 = vmax.f32 %v2227, 0.0
        %v2740 = vmax.f32 %v2228, 0.0
        %v2741 = vmax.f32 %v2229, 0.0
        %v2742 = vmax.f32 %v2230, 0.0
        %v2743 = vmax.f32 %v2231, 0.0
        %v2744 = vmax.f32 %v2232, 0.0
        %v2745 = vmax.f32 %v2233, 0.0
        %v2746 = vmax.f32 %v2234, 0.0
        %v2747 = vmax.f32 %v2235, 0.0
        %v2748 = vmax.f32 %v2236, 0.0
        %v2749 = vmax.f32 %v2237, 0.0
        %v2750 = vmax.f32 %v2238, 0.0
        %v2751 = vmax.f32 %v2239, 0.0
        %v2752 = vmax.f32 %v2240, 0.0
        %v2753 = vmax.f32 %v2241, 0.0
        %v2754 = vmax.f32 %v2242, 0.0
        %v2755 = vmax.f32 %v2243, 0.0
        %v2756 = vmax.f32 %v2244, 0.0
        %v2757 = vmax.f32 %v2245, 0.0
        %v2758 = vmax.f32 %v2246, 0.0
        %v2759 = vmax.f32 %v2247, 0.0
        %v2760 = vmax.f32 %v2248, 0.0
        %v2761 = vmax.f32 %v2249, 0.0
        %v2762 = vmax.f32 %v2250, 0.0
        %v2763 = vmax.f32 %v2251, 0.0
        %v2764 = vmax.f32 %v2252, 0.0
        %v2765 = vmax.f32 %v2253, 0.0
        %v2766 = vmax.f32 %v2254, 0.0
        %v2767 = vmax.f32 %v2255, 0.0
        %v2768 = vmax.f32 %v2256, 0.0
        %v2769 = vmax.f32 %v2257, 0.0
        %v2770 = vmax.f32 %v2258, 0.0
        %v2771 = vmax.f32 %v2259, 0.0
        %v2772 = vmax.f32 %v2260, 0.0
        %v2773 = vmax.f32 %v2261, 0.0
        %v2774 = vmax.f32 %v2262, 0.0
        %v2775 = vmax.f32 %v2263, 0.0
        %v2776 = vmax.f32 %v2264, 0.0
        %v2777 = vmax.f32 %v2265, 0.0
        %v2778 = vmax.f32 %v2266, 0.0
        %v2779 = vmax.f32 %v2267, 0.0
        %v2780 = vmax.f32 %v2268, 0.0
        %v2781 = vmax.f32 %v2269, 0.0
        %v2782 = vmax.f32 %v2270, 0.0
        %v2783 = vmax.f32 %v2271, 0.0
        %v2784 = vmax.f32 %v2272, 0.0
        %v2785 = vmax.f32 %v2273, 0.0
        %v2786 = vmax.f32 %v2274, 0.0
        %v2787 = vmax.f32 %v2275, 0.0
        %v2788 = vmax.f32 %v2276, 0.0
        %v2789 = vmax.f32 %v2277, 0.0
        %v2790 = vmax.f32 %v2278, 0.0
        %v2791 = vmax.f32 %v2279, 0.0
        %v2792 = vmax.f32 %v2280, 0.0
        %v2793 = vmax.f32 %v2281, 0.0
        %v2794 = vmax.f32 %v2282, 0.0
        %v2795 = vmax.f32 %v2283, 0.0
        %v2796 = vmin.f32 %v2284, 1.0
        %v2797 = vmin.f32 %v2285, 1.0
        %v2798 = vmin.f32 %v2286, 1.0
        %v2799 = vmin.f32 %v2287, 1.0
        %v2800 = vmin.f32 %v2288, 1.0
        %v2801 = vmin.f32 %v2289, 1.0
        %v2802 = vmin.f32 %v2290, 1.0
        %v2803 = vmin.f32 %v2291, 1.0
        %v2804 = vmin.f32 %v2292, 1.0
        %v2805 = vmin.f32 %v2293, 1.0
        %v2806 = vmin.f32 %v2294, 1.0
        %v2807 = vmin.f32 %v2295, 1.0
        %v2808 = vmin.f32 %v2296, 1.0
        %v2809 = vmin.f32 %v2297, 1.0
        %v2810 = vmin.f32 %v2298, 1.0
        %v2811 = vmin.f32 %v2299, 1.0
        %v2812 = vmin.f32 %v2300, 1.0
        %v2813 = vmin.f32 %v2301, 1.0
        %v2814 = vmin.f32 %v2302, 1.0
        %v2815 = vmin.f32 %v2303, 1.0
        %v2816 = vmin.f32 %v2304, 1.0
        %v2817 = vmin.f32 %v2305, 1.0
        %v2818 = vmin.f32 %v2306, 1.0
        %v2819 = vmin.f32 %v2307, 1.0
        %v2820 = vmin.f32 %v2308, 1.0
        %v2821 = vmin.f32 %v2309, 1.0
        %v2822 = vmin.f32 %v2310, 1.0
        %v2823 = vmin.f32 %v2311, 1.0
        %v2824 = vmin.f32 %v2312, 1.0
        %v2825 = vmin.f32 %v2313, 1.0
        %v2826 = vmin.f32 %v2314, 1.0
        %v2827 = vmin.f32 %v2315, 1.0
        %v2828 = vmin.f32 %v2316, 1.0
        %v2829 = vmin.f32 %v2317, 1.0
        %v2830 = vmin.f32 %v2318, 1.0
        %v2831 = vmin.f32 %v2319, 1.0
        %v2832 = vmin.f32 %v2320, 1.0
        %v2833 = vmin.f32 %v2321, 1.0
        %v2834 = vmin.f32 %v2322, 1.0
        %v2835 = vmin.f32 %v2323, 1.0
        %v2836 = vmin.f32 %v2324, 1.0
        %v2837 = vmin.f32 %v2325, 1.0
        %v2838 = vmin.f32 %v2326, 1.0
        %v2839 = vmin.f32 %v2327, 1.0
        %v2840 = vmin.f32 %v2328, 1.0
        %v2841 = vmin.f32 %v2329, 1.0
        %v2842 = vmin.f32 %v2330, 1.0
        %v2843 = vmin.f32 %v2331, 1.0
        %v2844 = vmin.f32 %v2332, 1.0
        %v2845 = vmin.f32 %v2333, 1.0
        %v2846 = vmin.f32 %v2334, 1.0
        %v2847 = vmin.f32 %v2335, 1.0
        %v2848 = vmin.f32 %v2336, 1.0
        %v2849 = vmin.f32 %v2337, 1.0
        %v2850 = vmin.f32 %v2338, 1.0
        %v2851 = vmin.f32 %v2339, 1.0
        %v2852 = vmin.f32 %v2340, 1.0
        %v2853 = vmin.f32 %v2341, 1.0
        %v2854 = vmin.f32 %v2342, 1.0
        %v2855 = vmin.f32 %v2343, 1.0
        %v2856 = vmin.f32 %v2344, 1.0
        %v2857 = vmin.f32 %v2345, 1.0
        %v2858 = vmin.f32 %v2346, 1.0
        %v2859 = vmin.f32 %v2347, 1.0
        %v2860 = vmin.f32 %v2348, 1.0
        %v2861 = vmin.f32 %v2349, 1.0
        %v2862 = vmin.f32 %v2350, 1.0
        %v2863 = vmin.f32 %v2351, 1.0
        %v2864 = vmin.f32 %v2352, 1.0
        %v2865 = vmin.f32 %v2353, 1.0
        %v2866 = vmin.f32 %v2354, 1.0
        %v2867 = vmin.f32 %v2355, 1.0
        %v2868 = vmin.f32 %v2356, 1.0
        %v2869 = vmin.f32 %v2357, 1.0
        %v2870 = vmin.f32 %v2358, 1.0
        %v2871 = vmin.f32 %v2359, 1.0
        %v2872 = vmin.f32 %v2360, 1.0
        %v2873 = vmin.f32 %v2361, 1.0
        %v2874 = vmin.f32 %v2362, 1.0
        %v2875 = vmin.f32 %v2363, 1.0
        %v2876 = vmin.f32 %v2364, 1.0
        %v2877 = vmin.f32 %v2365, 1.0
        %v2878 = vmin.f32 %v2366, 1.0
        %v2879 = vmin.f32 %v2367, 1.0
        %v2880 = vmin.f32 %v2368, 1.0
        %v2881 = vmin.f32 %v2369, 1.0
        %v2882 = vmin.f32 %v2370, 1.0
        %v2883 = vmin.f32 %v2371, 1.0
        %v2884 = vmin.f32 %v2372, 1.0
        %v2885 = vmin.f32 %v2373, 1.0
        %v2886 = vmin.f32 %v2374, 1.0
        %v2887 = vmin.f32 %v2375, 1.0
        %v2888 = vmin.f32 %v2376, 1.0
        %v2889 = vmin.f32 %v2377, 1.0
        %v2890 = vmin.f32 %v2378, 1.0
        %v2891 = vmin.f32 %v2379, 1.0
        %v2892 = vmin.f32 %v2380, 1.0
        %v2893 = vmin.f32 %v2381, 1.0
        %v2894 = vmin.f32 %v2382, 1.0
        %v2895 = vmin.f32 %v2383, 1.0
        %v2896 = vmin.f32 %v2384, 1.0
        %v2897 = vmin.f32 %v2385, 1.0
        %v2898 = vmin.f32 %v2386, 1.0
        %v2899 = vmin.f32 %v2387, 1.0
        %v2900 = vmin.f32 %v2388, 1.0
        %v2901 = vmin.f32 %v2389, 1.0
        %v2902 = vmin.f32 %v2390, 1.0
        %v2903 = vmin.f32 %v2391, 1.0
        %v2904 = vmin.f32 %v2392, 1.0
        %v2905 = vmin.f32 %v2393, 1.0
        %v2906 = vmin.f32 %v2394, 1.0
        %v2907 = vmin.f32 %v2395, 1.0
        %v2908 = vmin.f32 %v2396, 1.0
        %v2909 = vmin.f32 %v2397, 1.0
        %v2910 = vmin.f32 %v2398, 1.0
        %v2911 = vmin.f32 %v2399, 1.0
        %v2912 = vmin.f32 %v2400, 1.0
        %v2913 = vmin.f32 %v2401, 1.0
        %v2914 = vmin.f32 %v2402, 1.0
        %v2915 = vmin.f32 %v2403, 1.0
        %v2916 = vmin.f32 %v2404, 1.0
        %v2917 = vmin.f32 %v2405, 1.0
        %v2918 = vmin.f32 %v2406, 1.0
        %v2919 = vmin.f32 %v2407, 1.0
        %v2920 = vmin.f32 %v2408, 1.0
        %v2921 = vmin.f32 %v2409, 1.0
        %v2922 = vmin.f32 %v2410, 1.0
        %v2923 = vmin.f32 %v2411, 1.0
        %v2924 = vmin.f32 %v2412, 1.0
        %v2925 = vmin.f32 %v2413, 1.0
        %v2926 = vmin.f32 %v2414, 1.0
        %v2927 = vmin.f32 %v2415, 1.0
        %v2928 = vmin.f32 %v2416, 1.0
        %v2929 = vmin.f32 %v2417, 1.0
        %v2930 = vmin.f32 %v2418, 1.0
        %v2931 = vmin.f32 %v2419, 1.0
        %v2932 = vmin.f32 %v2420, 1.0
        %v2933 = vmin.f32 %v2421, 1.0
        %v2934 = vmin.f32 %v2422, 1.0
        %v2935 = vmin.f32 %v2423, 1.0
        %v2936 = vmin.f32 %v2424, 1.0
        %v2937 = vmin.f32 %v2425, 1.0
        %v2938 = vmin.f32 %v2426, 1.0
        %v2939 = vmin.f32 %v2427, 1.0
        %v2940 = vmin.f32 %v2428, 1.0
        %v2941 = vmin.f32 %v2429, 1.0
        %v2942 = vmin.f32 %v2430, 1.0
        %v2943 = vmin.f32 %v2431, 1.0
        %v2944 = vmin.f32 %v2432, 1.0
        %v2945 = vmin.f32 %v2433, 1.0
        %v2946 = vmin.f32 %v2434, 1.0
        %v2947 = vmin.f32 %v2435, 1.0
        %v2948 = vmin.f32 %v2436, 1.0
        %v2949 = vmin.f32 %v2437, 1.0
        %v2950 = vmin.f32 %v2438, 1.0
        %v2951 = vmin.f32 %v2439, 1.0
        %v2952 = vmin.f32 %v2440, 1.0
        %v2953 = vmin.f32 %v2441, 1.0
        %v2954 = vmin.f32 %v2442, 1.0
        %v2955 = vmin.f32 %v2443, 1.0
        %v2956 = vmin.f32 %v2444, 1.0
        %v2957 = vmin.f32 %v2445, 1.0
        %v2958 = vmin.f32 %v2446, 1.0
        %v2959 = vmin.f32 %v2447, 1.0
        %v2960 = vmin.f32 %v2448, 1.0
        %v2961 = vmin.f32 %v2449, 1.0
        %v2962 = vmin.f32 %v2450, 1.0
        %v2963 = vmin.f32 %v2451, 1.0
        %v2964 = vmin.f32 %v2452, 1.0
        %v2965 = vmin.f32 %v2453, 1.0
        %v2966 = vmin.f32 %v2454, 1.0
        %v2967 = vmin.f32 %v2455, 1.0
        %v2968 = vmin.f32 %v2456, 1.0
        %v2969 = vmin.f32 %v2457, 1.0
        %v2970 = vmin.f32 %v2458, 1.0
        %v2971 = vmin.f32 %v2459, 1.0
        %v2972 = vmin.f32 %v2460, 1.0
        %v2973 = vmin.f32 %v2461, 1.0
        %v2974 = vmin.f32 %v2462, 1.0
        %v2975 = vmin.f32 %v2463, 1.0
        %v2976 = vmin.f32 %v2464, 1.0
        %v2977 = vmin.f32 %v2465, 1.0
        %v2978 = vmin.f32 %v2466, 1.0
        %v2979 = vmin.f32 %v2467, 1.0
        %v2980 = vmin.f32 %v2468, 1.0
        %v2981 = vmin.f32 %v2469, 1.0
        %v2982 = vmin.f32 %v2470, 1.0
        %v2983 = vmin.f32 %v2471, 1.0
        %v2984 = vmin.f32 %v2472, 1.0
        %v2985 = vmin.f32 %v2473, 1.0
        %v2986 = vmin.f32 %v2474, 1.0
        %v2987 = vmin.f32 %v2475, 1.0
        %v2988 = vmin.f32 %v2476, 1.0
        %v2989 = vmin.f32 %v2477, 1.0
        %v2990 = vmin.f32 %v2478, 1.0
        %v2991 = vmin.f32 %v2479, 1.0
        %v2992 = vmin.f32 %v2480, 1.0
        %v2993 = vmin.f32 %v2481, 1.0
        %v2994 = vmin.f32 %v2482, 1.0
        %v2995 = vmin.f32 %v2483, 1.0
        %v2996 = vmin.f32 %v2484, 1.0
        %v2997 = vmin.f32 %v2485, 1.0
        %v2998 = vmin.f32 %v2486, 1.0
        %v2999 = vmin.f32 %v2487, 1.0
        %v3000 = vmin.f32 %v2488, 1.0
        %v3001 = vmin.f32 %v2489, 1.0
        %v3002 = vmin.f32 %v2490, 1.0
        %v3003 = vmin.f32 %v2491, 1.0
        %v3004 = vmin.f32 %v2492, 1.0
        %v3005 = vmin.f32 %v2493, 1.0
        %v3006 = vmin.f32 %v2494, 1.0
        %v3007 = vmin.f32 %v2495, 1.0
        %v3008 = vmin.f32 %v2496, 1.0
        %v3009 = vmin.f32 %v2497, 1.0
        %v3010 = vmin.f32 %v2498, 1.0
        %v3011 = vmin.f32 %v2499, 1.0
        %v3012 = vmin.f32 %v2500, 1.0
        %v3013 = vmin.f32 %v2501, 1.0
        %v3014 = vmin.f32 %v2502, 1.0
        %v3015 = vmin.f32 %v2503, 1.0
        %v3016 = vmin.f32 %v2504, 1.0
        %v3017 = vmin.f32 %v2505, 1.0
        %v3018 = vmin.f32 %v2506, 1.0
        %v3019 = vmin.f32 %v2507, 1.0
        %v3020 = vmin.f32 %v2508, 1.0
        %v3021 = vmin.f32 %v2509, 1.0
        %v3022 = vmin.f32 %v2510, 1.0
        %v3023 = vmin.f32 %v2511, 1.0
        %v3024 = vmin.f32 %v2512, 1.0
        %v3025 = vmin.f32 %v2513, 1.0
        %v3026 = vmin.f32 %v2514, 1.0
        %v3027 = vmin.f32 %v2515, 1.0
        %v3028 = vmin.f32 %v2516, 1.0
        %v3029 = vmin.f32 %v2517, 1.0
        %v3030 = vmin.f32 %v2518, 1.0
        %v3031 = vmin.f32 %v2519, 1.0
        %v3032 = vmin.f32 %v2520, 1.0
        %v3033 = vmin.f32 %v2521, 1.0
        %v3034 = vmin.f32 %v2522, 1.0
        %v3035 = vmin.f32 %v2523, 1.0
        %v3036 = vmin.f32 %v2524, 1.0
        %v3037 = vmin.f32 %v2525, 1.0
        %v3038 = vmin.f32 %v2526, 1.0
        %v3039 = vmin.f32 %v2527, 1.0
        %v3040 = vmin.f32 %v2528, 1.0
        %v3041 = vmin.f32 %v2529, 1.0
        %v3042 = vmin.f32 %v2530, 1.0
        %v3043 = vmin.f32 %v2531, 1.0
        %v3044 = vmin.f32 %v2532, 1.0
        %v3045 = vmin.f32 %v2533, 1.0
        %v3046 = vmin.f32 %v2534, 1.0
        %v3047 = vmin.f32 %v2535, 1.0
        %v3048 = vmin.f32 %v2536, 1.0
        %v3049 = vmin.f32 %v2537, 1.0
        %v3050 = vmin.f32 %v2538, 1.0
        %v3051 = vmin.f32 %v2539, 1.0
        %v3052 = vmin.f32 %v2540, 1.0
        %v3053 = vmin.f32 %v2541, 1.0
        %v3054 = vmin.f32 %v2542, 1.0
        %v3055 = vmin.f32 %v2543, 1.0
        %v3056 = vmin.f32 %v2544, 1.0
        %v3057 = vmin.f32 %v2545, 1.0
        %v3058 = vmin.f32 %v2546, 1.0
        %v3059 = vmin.f32 %v2547, 1.0
        %v3060 = vmin.f32 %v2548, 1.0
        %v3061 = vmin.f32 %v2549, 1.0
        %v3062 = vmin.f32 %v2550, 1.0
        %v3063 = vmin.f32 %v2551, 1.0
        %v3064 = vmin.f32 %v2552, 1.0
        %v3065 = vmin.f32 %v2553, 1.0
        %v3066 = vmin.f32 %v2554, 1.0
        %v3067 = vmin.f32 %v2555, 1.0
        %v3068 = vmin.f32 %v2556, 1.0
        %v3069 = vmin.f32 %v2557, 1.0
        %v3070 = vmin.f32 %v2558, 1.0
        %v3071 = vmin.f32 %v2559, 1.0
        %v3072 = vmin.f32 %v2560, 1.0
        %v3073 = vmin.f32 %v2561, 1.0
        %v3074 = vmin.f32 %v2562, 1.0
        %v3075 = vmin.f32 %v2563, 1.0
        %v3076 = vmin.f32 %v2564, 1.0
        %v3077 = vmin.f32 %v2565, 1.0
        %v3078 = vmin.f32 %v2566, 1.0
        %v3079 = vmin.f32 %v2567, 1.0
        %v3080 = vmin.f32 %v2568, 1.0
        %v3081 = vmin.f32 %v2569, 1.0
        %v3082 = vmin.f32 %v2570, 1.0
        %v3083 = vmin.f32 %v2571, 1.0
        %v3084 = vmin.f32 %v2572, 1.0
        %v3085 = vmin.f32 %v2573, 1.0
        %v3086 = vmin.f32 %v2574, 1.0
        %v3087 = vmin.f32 %v2575, 1.0
        %v3088 = vmin.f32 %v2576, 1.0
        %v3089 = vmin.f32 %v2577, 1.0
        %v3090 = vmin.f32 %v2578, 1.0
        %v3091 = vmin.f32 %v2579, 1.0
        %v3092 = vmin.f32 %v2580, 1.0
        %v3093 = vmin.f32 %v2581, 1.0
        %v3094 = vmin.f32 %v2582, 1.0
        %v3095 = vmin.f32 %v2583, 1.0
        %v3096 = vmin.f32 %v2584, 1.0
        %v3097 = vmin.f32 %v2585, 1.0
        %v3098 = vmin.f32 %v2586, 1.0
        %v3099 = vmin.f32 %v2587, 1.0
        %v3100 = vmin.f32 %v2588, 1.0
        %v3101 = vmin.f32 %v2589, 1.0
        %v3102 = vmin.f32 %v2590, 1.0
        %v3103 = vmin.f32 %v2591, 1.0
        %v3104 = vmin.f32 %v2592, 1.0
        %v3105 = vmin.f32 %v2593, 1.0
        %v3106 = vmin.f32 %v2594, 1.0
        %v3107 = vmin.f32 %v2595, 1.0
        %v3108 = vmin.f32 %v2596, 1.0
        %v3109 = vmin.f32 %v2597, 1.0
        %v3110 = vmin.f32 %v2598, 1.0
        %v3111 = vmin.f32 %v2599, 1.0
        %v3112 = vmin.f32 %v2600, 1.0
        %v3113 = vmin.f32 %v2601, 1.0
        %v3114 = vmin.f32 %v2602, 1.0
        %v3115 = vmin.f32 %v2603, 1.0
        %v3116 = vmin.f32 %v2604, 1.0
        %v3117 = vmin.f32 %v2605, 1.0
        %v3118 = vmin.f32 %v2606, 1.0
        %v3119 = vmin.f32 %v2607, 1.0
        %v3120 = vmin.f32 %v2608, 1.0
        %v3121 = vmin.f32 %v2609, 1.0
        %v3122 = vmin.f32 %v2610, 1.0
        %v3123 = vmin.f32 %v2611, 1.0
        %v3124 = vmin.f32 %v2612, 1.0
        %v3125 = vmin.f32 %v2613, 1.0
        %v3126 = vmin.f32 %v2614, 1.0
        %v3127 = vmin.f32 %v2615, 1.0
        %v3128 = vmin.f32 %v2616, 1.0
        %v3129 = vmin.f32 %v2617, 1.0
        %v3130 = vmin.f32 %v2618, 1.0
        %v3131 = vmin.f32 %v2619, 1.0
        %v3132 = vmin.f32 %v2620, 1.0
        %v3133 = vmin.f32 %v2621, 1.0
        %v3134 = vmin.f32 %v2622, 1.0
        %v3135 = vmin.f32 %v2623, 1.0
        %v3136 = vmin.f32 %v2624, 1.0
        %v3137 = vmin.f32 %v2625, 1.0
        %v3138 = vmin.f32 %v2626, 1.0
        %v3139 = vmin.f32 %v2627, 1.0
        %v3140 = vmin.f32 %v2628, 1.0
        %v3141 = vmin.f32 %v2629, 1.0
        %v3142 = vmin.f32 %v2630, 1.0
        %v3143 = vmin.f32 %v2631, 1.0
        %v3144 = vmin.f32 %v2632, 1.0
        %v3145 = vmin.f32 %v2633, 1.0
        %v3146 = vmin.f32 %v2634, 1.0
        %v3147 = vmin.f32 %v2635, 1.0
        %v3148 = vmin.f32 %v2636, 1.0
        %v3149 = vmin.f32 %v2637, 1.0
        %v3150 = vmin.f32 %v2638, 1.0
        %v3151 = vmin.f32 %v2639, 1.0
        %v3152 = vmin.f32 %v2640, 1.0
        %v3153 = vmin.f32 %v2641, 1.0
        %v3154 = vmin.f32 %v2642, 1.0
        %v3155 = vmin.f32 %v2643, 1.0
        %v3156 = vmin.f32 %v2644, 1.0
        %v3157 = vmin.f32 %v2645, 1.0
        %v3158 = vmin.f32 %v2646, 1.0
        %v3159 = vmin.f32 %v2647, 1.0
        %v3160 = vmin.f32 %v2648, 1.0
        %v3161 = vmin.f32 %v2649, 1.0
        %v3162 = vmin.f32 %v2650, 1.0
        %v3163 = vmin.f32 %v2651, 1.0
        %v3164 = vmin.f32 %v2652, 1.0
        %v3165 = vmin.f32 %v2653, 1.0
        %v3166 = vmin.f32 %v2654, 1.0
        %v3167 = vmin.f32 %v2655, 1.0
        %v3168 = vmin.f32 %v2656, 1.0
        %v3169 = vmin.f32 %v2657, 1.0
        %v3170 = vmin.f32 %v2658, 1.0
        %v3171 = vmin.f32 %v2659, 1.0
        %v3172 = vmin.f32 %v2660, 1.0
        %v3173 = vmin.f32 %v2661, 1.0
        %v3174 = vmin.f32 %v2662, 1.0
        %v3175 = vmin.f32 %v2663, 1.0
        %v3176 = vmin.f32 %v2664, 1.0
        %v3177 = vmin.f32 %v2665, 1.0
        %v3178 = vmin.f32 %v2666, 1.0
        %v3179 = vmin.f32 %v2667, 1.0
        %v3180 = vmin.f32 %v2668, 1.0
        %v3181 = vmin.f32 %v2669, 1.0
        %v3182 = vmin.f32 %v2670, 1.0
        %v3183 = vmin.f32 %v2671, 1.0
        %v3184 = vmin.f32 %v2672, 1.0
        %v3185 = vmin.f32 %v2673, 1.0
        %v3186 = vmin.f32 %v2674, 1.0
        %v3187 = vmin.f32 %v2675, 1.0
        %v3188 = vmin.f32 %v2676, 1.0
        %v3189 = vmin.f32 %v2677, 1.0
        %v3190 = vmin.f32 %v2678, 1.0
        %v3191 = vmin.f32 %v2679, 1.0
        %v3192 = vmin.f32 %v2680, 1.0
        %v3193 = vmin.f32 %v2681, 1.0
        %v3194 = vmin.f32 %v2682, 1.0
        %v3195 = vmin.f32 %v2683, 1.0
        %v3196 = vmin.f32 %v2684, 1.0
        %v3197 = vmin.f32 %v2685, 1.0
        %v3198 = vmin.f32 %v2686, 1.0
        %v3199 = vmin.f32 %v2687, 1.0
        %v3200 = vmin.f32 %v2688, 1.0
        %v3201 = vmin.f32 %v2689, 1.0
        %v3202 = vmin.f32 %v2690, 1.0
        %v3203 = vmin.f32 %v2691, 1.0
        %v3204 = vmin.f32 %v2692, 1.0
        %v3205 = vmin.f32 %v2693, 1.0
        %v3206 = vmin.f32 %v2694, 1.0
        %v3207 = vmin.f32 %v2695, 1.0
        %v3208 = vmin.f32 %v2696, 1.0
        %v3209 = vmin.f32 %v2697, 1.0
        %v3210 = vmin.f32 %v2698, 1.0
        %v3211 = vmin.f32 %v2699, 1.0
        %v3212 = vmin.f32 %v2700, 1.0
        %v3213 = vmin.f32 %v2701, 1.0
        %v3214 = vmin.f32 %v2702, 1.0
        %v3215 = vmin.f32 %v2703, 1.0
        %v3216 = vmin.f32 %v2704, 1.0
        %v3217 = vmin.f32 %v2705, 1.0
        %v3218 = vmin.f32 %v2706, 1.0
        %v3219 = vmin.f32 %v2707, 1.0
        %v3220 = vmin.f32 %v2708, 1.0
        %v3221 = vmin.f32 %v2709, 1.0
        %v3222 = vmin.f32 %v2710, 1.0
        %v3223 = vmin.f32 %v2711, 1.0
        %v3224 = vmin.f32 %v2712, 1.0
        %v3225 = vmin.f32 %v2713, 1.0
        %v3226 = vmin.f32 %v2714, 1.0
        %v3227 = vmin.f32 %v2715, 1.0
        %v3228 = vmin.f32 %v2716, 1.0
        %v3229 = vmin.f32 %v2717, 1.0
        %v3230 = vmin.f32 %v2718, 1.0
        %v3231 = vmin.f32 %v2719, 1.0
        %v3232 = vmin.f32 %v2720, 1.0
        %v3233 = vmin.f32 %v2721, 1.0
        %v3234 = vmin.f32 %v2722, 1.0
        %v3235 = vmin.f32 %v2723, 1.0
        %v3236 = vmin.f32 %v2724, 1.0
        %v3237 = vmin.f32 %v2725, 1.0
        %v3238 = vmin.f32 %v2726, 1.0
        %v3239 = vmin.f32 %v2727, 1.0
        %v3240 = vmin.f32 %v2728, 1.0
        %v3241 = vmin.f32 %v2729, 1.0
        %v3242 = vmin.f32 %v2730, 1.0
        %v3243 = vmin.f32 %v2731, 1.0
        %v3244 = vmin.f32 %v2732, 1.0
        %v3245 = vmin.f32 %v2733, 1.0
        %v3246 = vmin.f32 %v2734, 1.0
        %v3247 = vmin.f32 %v2735, 1.0
        %v3248 = vmin.f32 %v2736, 1.0
        %v3249 = vmin.f32 %v2737, 1.0
        %v3250 = vmin.f32 %v2738, 1.0
        %v3251 = vmin.f32 %v2739, 1.0
        %v3252 = vmin.f32 %v2740, 1.0
        %v3253 = vmin.f32 %v2741, 1.0
        %v3254 = vmin.f32 %v2742, 1.0
        %v3255 = vmin.f32 %v2743, 1.0
        %v3256 = vmin.f32 %v2744, 1.0
        %v3257 = vmin.f32 %v2745, 1.0
        %v3258 = vmin.f32 %v2746, 1.0
        %v3259 = vmin.f32 %v2747, 1.0
        %v3260 = vmin.f32 %v2748, 1.0
        %v3261 = vmin.f32 %v2749, 1.0
        %v3262 = vmin.f32 %v2750, 1.0
        %v3263 = vmin.f32 %v2751, 1.0
        %v3264 = vmin.f32 %v2752, 1.0
        %v3265 = vmin.f32 %v2753, 1.0
        %v3266 = vmin.f32 %v2754, 1.0
        %v3267 = vmin.f32 %v2755, 1.0
        %v3268 = vmin.f32 %v2756, 1.0
        %v3269 = vmin.f32 %v2757, 1.0
        %v3270 = vmin.f32 %v2758, 1.0
        %v3271 = vmin.f32 %v2759, 1.0
        %v3272 = vmin.f32 %v2760, 1.0
        %v3273 = vmin.f32 %v2761, 1.0
        %v3274 = vmin.f32 %v2762, 1.0
        %v3275 = vmin.f32 %v2763, 1.0
        %v3276 = vmin.f32 %v2764, 1.0
        %v3277 = vmin.f32 %v2765, 1.0
        %v3278 = vmin.f32 %v2766, 1.0
        %v3279 = vmin.f32 %v2767, 1.0
        %v3280 = vmin.f32 %v2768, 1.0
        %v3281 = vmin.f32 %v2769, 1.0
        %v3282 = vmin.f32 %v2770, 1.0
        %v3283 = vmin.f32 %v2771, 1.0
        %v3284 = vmin.f32 %v2772, 1.0
        %v3285 = vmin.f32 %v2773, 1.0
        %v3286 = vmin.f32 %v2774, 1.0
        %v3287 = vmin.f32 %v2775, 1.0
        %v3288 = vmin.f32 %v2776, 1.0
        %v3289 = vmin.f32 %v2777, 1.0
        %v3290 = vmin.f32 %v2778, 1.0
        %v3291 = vmin.f32 %v2779, 1.0
        %v3292 = vmin.f32 %v2780, 1.0
        %v3293 = vmin.f32 %v2781, 1.0
        %v3294 = vmin.f32 %v2782, 1.0
        %v3295 = vmin.f32 %v2783, 1.0
        %v3296 = vmin.f32 %v2784, 1.0
        %v3297 = vmin.f32 %v2785, 1.0
        %v3298 = vmin.f32 %v2786, 1.0
        %v3299 = vmin.f32 %v2787, 1.0
        %v3300 = vmin.f32 %v2788, 1.0
        %v3301 = vmin.f32 %v2789, 1.0
        %v3302 = vmin.f32 %v2790, 1.0
        %v3303 = vmin.f32 %v2791, 1.0
        %v3304 = vmin.f32 %v2792, 1.0
        %v3305 = vmin.f32 %v2793, 1.0
        %v3306 = vmin.f32 %v2794, 1.0
        %v3307 = vmin.f32 %v2795, 1.0
        %v3308 = vld [vmem:[%s206] sm:$0xf]
        %v3309 = vld [vmem:[%s222] sm:$0xff]
        %v3310 = vld [vmem:[%s222 + $0x8] sm:$0xff]
        %v3311 = vld [vmem:[%s222 + $0x10] sm:$0xff]
        %v3312 = vld [vmem:[%s222 + $0x18] sm:$0xff]
        %3317 = vst [vmem:[#allocation1] ss:$4 sm:$0xff] %v3309
        %s3318 = scalar_lea.vmem [#allocation1], 32
        %3319 = vst [vmem:[%s3318] ss:$4 sm:$0xff] %v3310
        %v3320 = vld.sshfl [vmem:[#allocation1] sm:$0xff pattern:$0x73625140]
        %v3321 = vld.sshfl [vmem:[#allocation1 + $0x8] sm:$0xff pattern:$0x73625140]
        %v3322 = vld.sshfl [vmem:[#allocation1 + $0x10] sm:$0xff pattern:$0x73625140]
        %v3323 = vld.sshfl [vmem:[#allocation1 + $0x18] sm:$0xff pattern:$0x73625140]
        %v3324 = vld.sshfl [vmem:[#allocation1 + $0x20] sm:$0xff pattern:$0x73625140]
        %v3325 = vld.sshfl [vmem:[#allocation1 + $0x28] sm:$0xff pattern:$0x73625140]
        %v3326 = vld.sshfl [vmem:[#allocation1 + $0x30] sm:$0xff pattern:$0x73625140]
        %v3327 = vld.sshfl [vmem:[#allocation1 + $0x38] sm:$0xff pattern:$0x73625140]
        %3328 = vst [vmem:[#allocation1] ss:$4 sm:$0xff] %v3311
        %3329 = vst [vmem:[%s3318] ss:$4 sm:$0xff] %v3312
        %v3330 = vld.sshfl [vmem:[#allocation1] sm:$0xff pattern:$0x73625140]
        %v3331 = vld.sshfl [vmem:[#allocation1 + $0x8] sm:$0xff pattern:$0x73625140]
        %v3332 = vld.sshfl [vmem:[#allocation1 + $0x10] sm:$0xff pattern:$0x73625140]
        %v3333 = vld.sshfl [vmem:[#allocation1 + $0x18] sm:$0xff pattern:$0x73625140]
        %v3334 = vld.sshfl [vmem:[#allocation1 + $0x20] sm:$0xff pattern:$0x73625140]
        %v3335 = vld.sshfl [vmem:[#allocation1 + $0x28] sm:$0xff pattern:$0x73625140]
        %v3336 = vld.sshfl [vmem:[#allocation1 + $0x30] sm:$0xff pattern:$0x73625140]
        %v3337 = vld.sshfl [vmem:[#allocation1 + $0x38] sm:$0xff pattern:$0x73625140]
        %3354 = vmatpush.msra.mxu0 %v2826
        %3355 = vmatpush.msra.mxu0 %v2824
        %3356 = vmatpush.msra.mxu0 %v2822
        %3357 = vmatpush.msra.mxu0 %v2820
        %3358 = vmatpush.msra.mxu0 %v2818
        %3359 = vmatpush.msra.mxu0 %v2816
        %3360 = vmatpush.msra.mxu0 %v2814
        %3361 = vmatpush.msra.mxu0 %v2812
        %3362 = vmatpush.msra.mxu0 %v2810
        %3363 = vmatpush.msra.mxu0 %v2808
        %3364 = vmatpush.msra.mxu0 %v2806
        %3365 = vmatpush.msra.mxu0 %v2804
        %3366 = vmatpush.msra.mxu0 %v2802
        %3367 = vmatpush.msra.mxu0 %v2800
        %3368 = vmatpush.msra.mxu0 %v2798
        %3369 = vmatpush.msra.mxu0 %v2796
        %3370 = vmatmul.f32.gmra.mxu0 %v3320
        %v3371 = vpop.f32.mrf.mxu0
        %v3372 = vadd.f32 0.0, %v3371
        %3373 = vdwg.mxu0
        %3374 = vmatpush.msra.mxu0 %v2858
        %3375 = vmatpush.msra.mxu0 %v2856
        %3376 = vmatpush.msra.mxu0 %v2854
        %3377 = vmatpush.msra.mxu0 %v2852
        %3378 = vmatpush.msra.mxu0 %v2850
        %3379 = vmatpush.msra.mxu0 %v2848
        %3380 = vmatpush.msra.mxu0 %v2846
        %3381 = vmatpush.msra.mxu0 %v2844
        %3382 = vmatpush.msra.mxu0 %v2842
        %3383 = vmatpush.msra.mxu0 %v2840
        %3384 = vmatpush.msra.mxu0 %v2838
        %3385 = vmatpush.msra.mxu0 %v2836
        %3386 = vmatpush.msra.mxu0 %v2834
        %3387 = vmatpush.msra.mxu0 %v2832
        %3388 = vmatpush.msra.mxu0 %v2830
        %3389 = vmatpush.msra.mxu0 %v2828
        %3390 = vmatmul.f32.gmra.mxu0 %v3321
        %v3391 = vpop.f32.mrf.mxu0
        %v3392 = vadd.f32 %v3372, %v3391
        %3393 = vdwg.mxu0
        %3394 = vmatpush.msra.mxu0 %v2890
        %3395 = vmatpush.msra.mxu0 %v2888
        %3396 = vmatpush.msra.mxu0 %v2886
        %3397 = vmatpush.msra.mxu0 %v2884
        %3398 = vmatpush.msra.mxu0 %v2882
        %3399 = vmatpush.msra.mxu0 %v2880
        %3400 = vmatpush.msra.mxu0 %v2878
        %3401 = vmatpush.msra.mxu0 %v2876
        %3402 = vmatpush.msra.mxu0 %v2874
        %3403 = vmatpush.msra.mxu0 %v2872
        %3404 = vmatpush.msra.mxu0 %v2870
        %3405 = vmatpush.msra.mxu0 %v2868
        %3406 = vmatpush.msra.mxu0 %v2866
        %3407 = vmatpush.msra.mxu0 %v2864
        %3408 = vmatpush.msra.mxu0 %v2862
        %3409 = vmatpush.msra.mxu0 %v2860
        %3410 = vmatmul.f32.gmra.mxu0 %v3322
        %v3411 = vpop.f32.mrf.mxu0
        %v3412 = vadd.f32 %v3392, %v3411
        %3413 = vdwg.mxu0
        %3414 = vmatpush.msra.mxu0 %v2922
        %3415 = vmatpush.msra.mxu0 %v2920
        %3416 = vmatpush.msra.mxu0 %v2918
        %3417 = vmatpush.msra.mxu0 %v2916
        %3418 = vmatpush.msra.mxu0 %v2914
        %3419 = vmatpush.msra.mxu0 %v2912
        %3420 = vmatpush.msra.mxu0 %v2910
        %3421 = vmatpush.msra.mxu0 %v2908
        %3422 = vmatpush.msra.mxu0 %v2906
        %3423 = vmatpush.msra.mxu0 %v2904
        %3424 = vmatpush.msra.mxu0 %v2902
        %3425 = vmatpush.msra.mxu0 %v2900
        %3426 = vmatpush.msra.mxu0 %v2898
        %3427 = vmatpush.msra.mxu0 %v2896
        %3428 = vmatpush.msra.mxu0 %v2894
        %3429 = vmatpush.msra.mxu0 %v2892
        %3430 = vmatmul.f32.gmra.mxu0 %v3323
        %v3431 = vpop.f32.mrf.mxu0
        %v3432 = vadd.f32 %v3412, %v3431
        %3433 = vdwg.mxu0
        %3434 = vmatpush.msra.mxu0 %v2954
        %3435 = vmatpush.msra.mxu0 %v2952
        %3436 = vmatpush.msra.mxu0 %v2950
        %3437 = vmatpush.msra.mxu0 %v2948
        %3438 = vmatpush.msra.mxu0 %v2946
        %3439 = vmatpush.msra.mxu0 %v2944
        %3440 = vmatpush.msra.mxu0 %v2942
        %3441 = vmatpush.msra.mxu0 %v2940
        %3442 = vmatpush.msra.mxu0 %v2938
        %3443 = vmatpush.msra.mxu0 %v2936
        %3444 = vmatpush.msra.mxu0 %v2934
        %3445 = vmatpush.msra.mxu0 %v2932
        %3446 = vmatpush.msra.mxu0 %v2930
        %3447 = vmatpush.msra.mxu0 %v2928
        %3448 = vmatpush.msra.mxu0 %v2926
        %3449 = vmatpush.msra.mxu0 %v2924
        %3450 = vmatmul.f32.gmra.mxu0 %v3324
        %v3451 = vpop.f32.mrf.mxu0
        %v3452 = vadd.f32 %v3432, %v3451
        %3453 = vdwg.mxu0
        %3454 = vmatpush.msra.mxu0 %v2986
        %3455 = vmatpush.msra.mxu0 %v2984
        %3456 = vmatpush.msra.mxu0 %v2982
        %3457 = vmatpush.msra.mxu0 %v2980
        %3458 = vmatpush.msra.mxu0 %v2978
        %3459 = vmatpush.msra.mxu0 %v2976
        %3460 = vmatpush.msra.mxu0 %v2974
        %3461 = vmatpush.msra.mxu0 %v2972
        %3462 = vmatpush.msra.mxu0 %v2970
        %3463 = vmatpush.msra.mxu0 %v2968
        %3464 = vmatpush.msra.mxu0 %v2966
        %3465 = vmatpush.msra.mxu0 %v2964
        %3466 = vmatpush.msra.mxu0 %v2962
        %3467 = vmatpush.msra.mxu0 %v2960
        %3468 = vmatpush.msra.mxu0 %v2958
        %3469 = vmatpush.msra.mxu0 %v2956
        %3470 = vmatmul.f32.gmra.mxu0 %v3325
        %v3471 = vpop.f32.mrf.mxu0
        %v3472 = vadd.f32 %v3452, %v3471
        %3473 = vdwg.mxu0
        %3474 = vmatpush.msra.mxu0 %v3018
        %3475 = vmatpush.msra.mxu0 %v3016
        %3476 = vmatpush.msra.mxu0 %v3014
        %3477 = vmatpush.msra.mxu0 %v3012
        %3478 = vmatpush.msra.mxu0 %v3010
        %3479 = vmatpush.msra.mxu0 %v3008
        %3480 = vmatpush.msra.mxu0 %v3006
        %3481 = vmatpush.msra.mxu0 %v3004
        %3482 = vmatpush.msra.mxu0 %v3002
        %3483 = vmatpush.msra.mxu0 %v3000
        %3484 = vmatpush.msra.mxu0 %v2998
        %3485 = vmatpush.msra.mxu0 %v2996
        %3486 = vmatpush.msra.mxu0 %v2994
        %3487 = vmatpush.msra.mxu0 %v2992
        %3488 = vmatpush.msra.mxu0 %v2990
        %3489 = vmatpush.msra.mxu0 %v2988
        %3490 = vmatmul.f32.gmra.mxu0 %v3326
        %v3491 = vpop.f32.mrf.mxu0
        %v3492 = vadd.f32 %v3472, %v3491
        %3493 = vdwg.mxu0
        %3494 = vmatpush.msra.mxu0 %v3050
        %3495 = vmatpush.msra.mxu0 %v3048
        %3496 = vmatpush.msra.mxu0 %v3046
        %3497 = vmatpush.msra.mxu0 %v3044
        %3498 = vmatpush.msra.mxu0 %v3042
        %3499 = vmatpush.msra.mxu0 %v3040
        %3500 = vmatpush.msra.mxu0 %v3038
        %3501 = vmatpush.msra.mxu0 %v3036
        %3502 = vmatpush.msra.mxu0 %v3034
        %3503 = vmatpush.msra.mxu0 %v3032
        %3504 = vmatpush.msra.mxu0 %v3030
        %3505 = vmatpush.msra.mxu0 %v3028
        %3506 = vmatpush.msra.mxu0 %v3026
        %3507 = vmatpush.msra.mxu0 %v3024
        %3508 = vmatpush.msra.mxu0 %v3022
        %3509 = vmatpush.msra.mxu0 %v3020
        %3510 = vmatmul.f32.gmra.mxu0 %v3327
        %v3511 = vpop.f32.mrf.mxu0
        %v3512 = vadd.f32 %v3492, %v3511
        %3513 = vdwg.mxu0
        %3514 = vmatpush.msra.mxu0 %v3082
        %3515 = vmatpush.msra.mxu0 %v3080
        %3516 = vmatpush.msra.mxu0 %v3078
        %3517 = vmatpush.msra.mxu0 %v3076
        %3518 = vmatpush.msra.mxu0 %v3074
        %3519 = vmatpush.msra.mxu0 %v3072
        %3520 = vmatpush.msra.mxu0 %v3070
        %3521 = vmatpush.msra.mxu0 %v3068
        %3522 = vmatpush.msra.mxu0 %v3066
        %3523 = vmatpush.msra.mxu0 %v3064
        %3524 = vmatpush.msra.mxu0 %v3062
        %3525 = vmatpush.msra.mxu0 %v3060
        %3526 = vmatpush.msra.mxu0 %v3058
        %3527 = vmatpush.msra.mxu0 %v3056
        %3528 = vmatpush.msra.mxu0 %v3054
        %3529 = vmatpush.msra.mxu0 %v3052
        %3530 = vmatmul.f32.gmra.mxu0 %v3330
        %v3531 = vpop.f32.mrf.mxu0
        %v3532 = vadd.f32 %v3512, %v3531
        %3533 = vdwg.mxu0
        %3534 = vmatpush.msra.mxu0 %v3114
        %3535 = vmatpush.msra.mxu0 %v3112
        %3536 = vmatpush.msra.mxu0 %v3110
        %3537 = vmatpush.msra.mxu0 %v3108
        %3538 = vmatpush.msra.mxu0 %v3106
        %3539 = vmatpush.msra.mxu0 %v3104
        %3540 = vmatpush.msra.mxu0 %v3102
        %3541 = vmatpush.msra.mxu0 %v3100
        %3542 = vmatpush.msra.mxu0 %v3098
        %3543 = vmatpush.msra.mxu0 %v3096
        %3544 = vmatpush.msra.mxu0 %v3094
        %3545 = vmatpush.msra.mxu0 %v3092
        %3546 = vmatpush.msra.mxu0 %v3090
        %3547 = vmatpush.msra.mxu0 %v3088
        %3548 = vmatpush.msra.mxu0 %v3086
        %3549 = vmatpush.msra.mxu0 %v3084
        %3550 = vmatmul.f32.gmra.mxu0 %v3331
        %v3551 = vpop.f32.mrf.mxu0
        %v3552 = vadd.f32 %v3532, %v3551
        %3553 = vdwg.mxu0
        %3554 = vmatpush.msra.mxu0 %v3146
        %3555 = vmatpush.msra.mxu0 %v3144
        %3556 = vmatpush.msra.mxu0 %v3142
        %3557 = vmatpush.msra.mxu0 %v3140
        %3558 = vmatpush.msra.mxu0 %v3138
        %3559 = vmatpush.msra.mxu0 %v3136
        %3560 = vmatpush.msra.mxu0 %v3134
        %3561 = vmatpush.msra.mxu0 %v3132
        %3562 = vmatpush.msra.mxu0 %v3130
        %3563 = vmatpush.msra.mxu0 %v3128
        %3564 = vmatpush.msra.mxu0 %v3126
        %3565 = vmatpush.msra.mxu0 %v3124
        %3566 = vmatpush.msra.mxu0 %v3122
        %3567 = vmatpush.msra.mxu0 %v3120
        %3568 = vmatpush.msra.mxu0 %v3118
        %3569 = vmatpush.msra.mxu0 %v3116
        %3570 = vmatmul.f32.gmra.mxu0 %v3332
        %v3571 = vpop.f32.mrf.mxu0
        %v3572 = vadd.f32 %v3552, %v3571
        %3573 = vdwg.mxu0
        %3574 = vmatpush.msra.mxu0 %v3178
        %3575 = vmatpush.msra.mxu0 %v3176
        %3576 = vmatpush.msra.mxu0 %v3174
        %3577 = vmatpush.msra.mxu0 %v3172
        %3578 = vmatpush.msra.mxu0 %v3170
        %3579 = vmatpush.msra.mxu0 %v3168
        %3580 = vmatpush.msra.mxu0 %v3166
        %3581 = vmatpush.msra.mxu0 %v3164
        %3582 = vmatpush.msra.mxu0 %v3162
        %3583 = vmatpush.msra.mxu0 %v3160
        %3584 = vmatpush.msra.mxu0 %v3158
        %3585 = vmatpush.msra.mxu0 %v3156
        %3586 = vmatpush.msra.mxu0 %v3154
        %3587 = vmatpush.msra.mxu0 %v3152
        %3588 = vmatpush.msra.mxu0 %v3150
        %3589 = vmatpush.msra.mxu0 %v3148
        %3590 = vmatmul.f32.gmra.mxu0 %v3333
        %v3591 = vpop.f32.mrf.mxu0
        %v3592 = vadd.f32 %v3572, %v3591
        %3593 = vdwg.mxu0
        %3594 = vmatpush.msra.mxu0 %v3210
        %3595 = vmatpush.msra.mxu0 %v3208
        %3596 = vmatpush.msra.mxu0 %v3206
        %3597 = vmatpush.msra.mxu0 %v3204
        %3598 = vmatpush.msra.mxu0 %v3202
        %3599 = vmatpush.msra.mxu0 %v3200
        %3600 = vmatpush.msra.mxu0 %v3198
        %3601 = vmatpush.msra.mxu0 %v3196
        %3602 = vmatpush.msra.mxu0 %v3194
        %3603 = vmatpush.msra.mxu0 %v3192
        %3604 = vmatpush.msra.mxu0 %v3190
        %3605 = vmatpush.msra.mxu0 %v3188
        %3606 = vmatpush.msra.mxu0 %v3186
        %3607 = vmatpush.msra.mxu0 %v3184
        %3608 = vmatpush.msra.mxu0 %v3182
        %3609 = vmatpush.msra.mxu0 %v3180
        %3610 = vmatmul.f32.gmra.mxu0 %v3334
        %v3611 = vpop.f32.mrf.mxu0
        %v3612 = vadd.f32 %v3592, %v3611
        %3613 = vdwg.mxu0
        %3614 = vmatpush.msra.mxu0 %v3242
        %3615 = vmatpush.msra.mxu0 %v3240
        %3616 = vmatpush.msra.mxu0 %v3238
        %3617 = vmatpush.msra.mxu0 %v3236
        %3618 = vmatpush.msra.mxu0 %v3234
        %3619 = vmatpush.msra.mxu0 %v3232
        %3620 = vmatpush.msra.mxu0 %v3230
        %3621 = vmatpush.msra.mxu0 %v3228
        %3622 = vmatpush.msra.mxu0 %v3226
        %3623 = vmatpush.msra.mxu0 %v3224
        %3624 = vmatpush.msra.mxu0 %v3222
        %3625 = vmatpush.msra.mxu0 %v3220
        %3626 = vmatpush.msra.mxu0 %v3218
        %3627 = vmatpush.msra.mxu0 %v3216
        %3628 = vmatpush.msra.mxu0 %v3214
        %3629 = vmatpush.msra.mxu0 %v3212
        %3630 = vmatmul.f32.gmra.mxu0 %v3335
        %v3631 = vpop.f32.mrf.mxu0
        %v3632 = vadd.f32 %v3612, %v3631
        %3633 = vdwg.mxu0
        %3634 = vmatpush.msra.mxu0 %v3274
        %3635 = vmatpush.msra.mxu0 %v3272
        %3636 = vmatpush.msra.mxu0 %v3270
        %3637 = vmatpush.msra.mxu0 %v3268
        %3638 = vmatpush.msra.mxu0 %v3266
        %3639 = vmatpush.msra.mxu0 %v3264
        %3640 = vmatpush.msra.mxu0 %v3262
        %3641 = vmatpush.msra.mxu0 %v3260
        %3642 = vmatpush.msra.mxu0 %v3258
        %3643 = vmatpush.msra.mxu0 %v3256
        %3644 = vmatpush.msra.mxu0 %v3254
        %3645 = vmatpush.msra.mxu0 %v3252
        %3646 = vmatpush.msra.mxu0 %v3250
        %3647 = vmatpush.msra.mxu0 %v3248
        %3648 = vmatpush.msra.mxu0 %v3246
        %3649 = vmatpush.msra.mxu0 %v3244
        %3650 = vmatmul.f32.gmra.mxu0 %v3336
        %v3651 = vpop.f32.mrf.mxu0
        %v3652 = vadd.f32 %v3632, %v3651
        %3653 = vdwg.mxu0
        %3654 = vmatpush.msra.mxu0 %v3306
        %3655 = vmatpush.msra.mxu0 %v3304
        %3656 = vmatpush.msra.mxu0 %v3302
        %3657 = vmatpush.msra.mxu0 %v3300
        %3658 = vmatpush.msra.mxu0 %v3298
        %3659 = vmatpush.msra.mxu0 %v3296
        %3660 = vmatpush.msra.mxu0 %v3294
        %3661 = vmatpush.msra.mxu0 %v3292
        %3662 = vmatpush.msra.mxu0 %v3290
        %3663 = vmatpush.msra.mxu0 %v3288
        %3664 = vmatpush.msra.mxu0 %v3286
        %3665 = vmatpush.msra.mxu0 %v3284
        %3666 = vmatpush.msra.mxu0 %v3282
        %3667 = vmatpush.msra.mxu0 %v3280
        %3668 = vmatpush.msra.mxu0 %v3278
        %3669 = vmatpush.msra.mxu0 %v3276
        %3670 = vmatmul.f32.gmra.mxu0 %v3337
        %v3671 = vpop.f32.mrf.mxu0
        %v3672 = vadd.f32 %v3652, %v3671
        %3673 = vdwg.mxu0
        %3674 = vmatpush.msra.mxu0 %v2827
        %3675 = vmatpush.msra.mxu0 %v2825
        %3676 = vmatpush.msra.mxu0 %v2823
        %3677 = vmatpush.msra.mxu0 %v2821
        %3678 = vmatpush.msra.mxu0 %v2819
        %3679 = vmatpush.msra.mxu0 %v2817
        %3680 = vmatpush.msra.mxu0 %v2815
        %3681 = vmatpush.msra.mxu0 %v2813
        %3682 = vmatpush.msra.mxu0 %v2811
        %3683 = vmatpush.msra.mxu0 %v2809
        %3684 = vmatpush.msra.mxu0 %v2807
        %3685 = vmatpush.msra.mxu0 %v2805
        %3686 = vmatpush.msra.mxu0 %v2803
        %3687 = vmatpush.msra.mxu0 %v2801
        %3688 = vmatpush.msra.mxu0 %v2799
        %3689 = vmatpush.msra.mxu0 %v2797
        %3690 = vmatmul.f32.gmra.mxu0 %v3320
        %v3691 = vpop.f32.mrf.mxu0
        %v3692 = vadd.f32 0.0, %v3691
        %3693 = vdwg.mxu0
        %3694 = vmatpush.msra.mxu0 %v2859
        %3695 = vmatpush.msra.mxu0 %v2857
        %3696 = vmatpush.msra.mxu0 %v2855
        %3697 = vmatpush.msra.mxu0 %v2853
        %3698 = vmatpush.msra.mxu0 %v2851
        %3699 = vmatpush.msra.mxu0 %v2849
        %3700 = vmatpush.msra.mxu0 %v2847
        %3701 = vmatpush.msra.mxu0 %v2845
        %3702 = vmatpush.msra.mxu0 %v2843
        %3703 = vmatpush.msra.mxu0 %v2841
        %3704 = vmatpush.msra.mxu0 %v2839
        %3705 = vmatpush.msra.mxu0 %v2837
        %3706 = vmatpush.msra.mxu0 %v2835
        %3707 = vmatpush.msra.mxu0 %v2833
        %3708 = vmatpush.msra.mxu0 %v2831
        %3709 = vmatpush.msra.mxu0 %v2829
        %3710 = vmatmul.f32.gmra.mxu0 %v3321
        %v3711 = vpop.f32.mrf.mxu0
        %v3712 = vadd.f32 %v3692, %v3711
        %3713 = vdwg.mxu0
        %3714 = vmatpush.msra.mxu0 %v2891
        %3715 = vmatpush.msra.mxu0 %v2889
        %3716 = vmatpush.msra.mxu0 %v2887
        %3717 = vmatpush.msra.mxu0 %v2885
        %3718 = vmatpush.msra.mxu0 %v2883
        %3719 = vmatpush.msra.mxu0 %v2881
        %3720 = vmatpush.msra.mxu0 %v2879
        %3721 = vmatpush.msra.mxu0 %v2877
        %3722 = vmatpush.msra.mxu0 %v2875
        %3723 = vmatpush.msra.mxu0 %v2873
        %3724 = vmatpush.msra.mxu0 %v2871
        %3725 = vmatpush.msra.mxu0 %v2869
        %3726 = vmatpush.msra.mxu0 %v2867
        %3727 = vmatpush.msra.mxu0 %v2865
        %3728 = vmatpush.msra.mxu0 %v2863
        %3729 = vmatpush.msra.mxu0 %v2861
        %3730 = vmatmul.f32.gmra.mxu0 %v3322
        %v3731 = vpop.f32.mrf.mxu0
        %v3732 = vadd.f32 %v3712, %v3731
        %3733 = vdwg.mxu0
        %3734 = vmatpush.msra.mxu0 %v2923
        %3735 = vmatpush.msra.mxu0 %v2921
        %3736 = vmatpush.msra.mxu0 %v2919
        %3737 = vmatpush.msra.mxu0 %v2917
        %3738 = vmatpush.msra.mxu0 %v2915
        %3739 = vmatpush.msra.mxu0 %v2913
        %3740 = vmatpush.msra.mxu0 %v2911
        %3741 = vmatpush.msra.mxu0 %v2909
        %3742 = vmatpush.msra.mxu0 %v2907
        %3743 = vmatpush.msra.mxu0 %v2905
        %3744 = vmatpush.msra.mxu0 %v2903
        %3745 = vmatpush.msra.mxu0 %v2901
        %3746 = vmatpush.msra.mxu0 %v2899
        %3747 = vmatpush.msra.mxu0 %v2897
        %3748 = vmatpush.msra.mxu0 %v2895
        %3749 = vmatpush.msra.mxu0 %v2893
        %3750 = vmatmul.f32.gmra.mxu0 %v3323
        %v3751 = vpop.f32.mrf.mxu0
        %v3752 = vadd.f32 %v3732, %v3751
        %3753 = vdwg.mxu0
        %3754 = vmatpush.msra.mxu0 %v2955
        %3755 = vmatpush.msra.mxu0 %v2953
        %3756 = vmatpush.msra.mxu0 %v2951
        %3757 = vmatpush.msra.mxu0 %v2949
        %3758 = vmatpush.msra.mxu0 %v2947
        %3759 = vmatpush.msra.mxu0 %v2945
        %3760 = vmatpush.msra.mxu0 %v2943
        %3761 = vmatpush.msra.mxu0 %v2941
        %3762 = vmatpush.msra.mxu0 %v2939
        %3763 = vmatpush.msra.mxu0 %v2937
        %3764 = vmatpush.msra.mxu0 %v2935
        %3765 = vmatpush.msra.mxu0 %v2933
        %3766 = vmatpush.msra.mxu0 %v2931
        %3767 = vmatpush.msra.mxu0 %v2929
        %3768 = vmatpush.msra.mxu0 %v2927
        %3769 = vmatpush.msra.mxu0 %v2925
        %3770 = vmatmul.f32.gmra.mxu0 %v3324
        %v3771 = vpop.f32.mrf.mxu0
        %v3772 = vadd.f32 %v3752, %v3771
        %3773 = vdwg.mxu0
        %3774 = vmatpush.msra.mxu0 %v2987
        %3775 = vmatpush.msra.mxu0 %v2985
        %3776 = vmatpush.msra.mxu0 %v2983
        %3777 = vmatpush.msra.mxu0 %v2981
        %3778 = vmatpush.msra.mxu0 %v2979
        %3779 = vmatpush.msra.mxu0 %v2977
        %3780 = vmatpush.msra.mxu0 %v2975
        %3781 = vmatpush.msra.mxu0 %v2973
        %3782 = vmatpush.msra.mxu0 %v2971
        %3783 = vmatpush.msra.mxu0 %v2969
        %3784 = vmatpush.msra.mxu0 %v2967
        %3785 = vmatpush.msra.mxu0 %v2965
        %3786 = vmatpush.msra.mxu0 %v2963
        %3787 = vmatpush.msra.mxu0 %v2961
        %3788 = vmatpush.msra.mxu0 %v2959
        %3789 = vmatpush.msra.mxu0 %v2957
        %3790 = vmatmul.f32.gmra.mxu0 %v3325
        %v3791 = vpop.f32.mrf.mxu0
        %v3792 = vadd.f32 %v3772, %v3791
        %3793 = vdwg.mxu0
        %3794 = vmatpush.msra.mxu0 %v3019
        %3795 = vmatpush.msra.mxu0 %v3017
        %3796 = vmatpush.msra.mxu0 %v3015
        %3797 = vmatpush.msra.mxu0 %v3013
        %3798 = vmatpush.msra.mxu0 %v3011
        %3799 = vmatpush.msra.mxu0 %v3009
        %3800 = vmatpush.msra.mxu0 %v3007
        %3801 = vmatpush.msra.mxu0 %v3005
        %3802 = vmatpush.msra.mxu0 %v3003
        %3803 = vmatpush.msra.mxu0 %v3001
        %3804 = vmatpush.msra.mxu0 %v2999
        %3805 = vmatpush.msra.mxu0 %v2997
        %3806 = vmatpush.msra.mxu0 %v2995
        %3807 = vmatpush.msra.mxu0 %v2993
        %3808 = vmatpush.msra.mxu0 %v2991
        %3809 = vmatpush.msra.mxu0 %v2989
        %3810 = vmatmul.f32.gmra.mxu0 %v3326
        %v3811 = vpop.f32.mrf.mxu0
        %v3812 = vadd.f32 %v3792, %v3811
        %3813 = vdwg.mxu0
        %3814 = vmatpush.msra.mxu0 %v3051
        %3815 = vmatpush.msra.mxu0 %v3049
        %3816 = vmatpush.msra.mxu0 %v3047
        %3817 = vmatpush.msra.mxu0 %v3045
        %3818 = vmatpush.msra.mxu0 %v3043
        %3819 = vmatpush.msra.mxu0 %v3041
        %3820 = vmatpush.msra.mxu0 %v3039
        %3821 = vmatpush.msra.mxu0 %v3037
        %3822 = vmatpush.msra.mxu0 %v3035
        %3823 = vmatpush.msra.mxu0 %v3033
        %3824 = vmatpush.msra.mxu0 %v3031
        %3825 = vmatpush.msra.mxu0 %v3029
        %3826 = vmatpush.msra.mxu0 %v3027
        %3827 = vmatpush.msra.mxu0 %v3025
        %3828 = vmatpush.msra.mxu0 %v3023
        %3829 = vmatpush.msra.mxu0 %v3021
        %3830 = vmatmul.f32.gmra.mxu0 %v3327
        %v3831 = vpop.f32.mrf.mxu0
        %v3832 = vadd.f32 %v3812, %v3831
        %3833 = vdwg.mxu0
        %3834 = vmatpush.msra.mxu0 %v3083
        %3835 = vmatpush.msra.mxu0 %v3081
        %3836 = vmatpush.msra.mxu0 %v3079
        %3837 = vmatpush.msra.mxu0 %v3077
        %3838 = vmatpush.msra.mxu0 %v3075
        %3839 = vmatpush.msra.mxu0 %v3073
        %3840 = vmatpush.msra.mxu0 %v3071
        %3841 = vmatpush.msra.mxu0 %v3069
        %3842 = vmatpush.msra.mxu0 %v3067
        %3843 = vmatpush.msra.mxu0 %v3065
        %3844 = vmatpush.msra.mxu0 %v3063
        %3845 = vmatpush.msra.mxu0 %v3061
        %3846 = vmatpush.msra.mxu0 %v3059
        %3847 = vmatpush.msra.mxu0 %v3057
        %3848 = vmatpush.msra.mxu0 %v3055
        %3849 = vmatpush.msra.mxu0 %v3053
        %3850 = vmatmul.f32.gmra.mxu0 %v3330
        %v3851 = vpop.f32.mrf.mxu0
        %v3852 = vadd.f32 %v3832, %v3851
        %3853 = vdwg.mxu0
        %3854 = vmatpush.msra.mxu0 %v3115
        %3855 = vmatpush.msra.mxu0 %v3113
        %3856 = vmatpush.msra.mxu0 %v3111
        %3857 = vmatpush.msra.mxu0 %v3109
        %3858 = vmatpush.msra.mxu0 %v3107
        %3859 = vmatpush.msra.mxu0 %v3105
        %3860 = vmatpush.msra.mxu0 %v3103
        %3861 = vmatpush.msra.mxu0 %v3101
        %3862 = vmatpush.msra.mxu0 %v3099
        %3863 = vmatpush.msra.mxu0 %v3097
        %3864 = vmatpush.msra.mxu0 %v3095
        %3865 = vmatpush.msra.mxu0 %v3093
        %3866 = vmatpush.msra.mxu0 %v3091
        %3867 = vmatpush.msra.mxu0 %v3089
        %3868 = vmatpush.msra.mxu0 %v3087
        %3869 = vmatpush.msra.mxu0 %v3085
        %3870 = vmatmul.f32.gmra.mxu0 %v3331
        %v3871 = vpop.f32.mrf.mxu0
        %v3872 = vadd.f32 %v3852, %v3871
        %3873 = vdwg.mxu0
        %3874 = vmatpush.msra.mxu0 %v3147
        %3875 = vmatpush.msra.mxu0 %v3145
        %3876 = vmatpush.msra.mxu0 %v3143
        %3877 = vmatpush.msra.mxu0 %v3141
        %3878 = vmatpush.msra.mxu0 %v3139
        %3879 = vmatpush.msra.mxu0 %v3137
        %3880 = vmatpush.msra.mxu0 %v3135
        %3881 = vmatpush.msra.mxu0 %v3133
        %3882 = vmatpush.msra.mxu0 %v3131
        %3883 = vmatpush.msra.mxu0 %v3129
        %3884 = vmatpush.msra.mxu0 %v3127
        %3885 = vmatpush.msra.mxu0 %v3125
        %3886 = vmatpush.msra.mxu0 %v3123
        %3887 = vmatpush.msra.mxu0 %v3121
        %3888 = vmatpush.msra.mxu0 %v3119
        %3889 = vmatpush.msra.mxu0 %v3117
        %3890 = vmatmul.f32.gmra.mxu0 %v3332
        %v3891 = vpop.f32.mrf.mxu0
        %v3892 = vadd.f32 %v3872, %v3891
        %3893 = vdwg.mxu0
        %3894 = vmatpush.msra.mxu0 %v3179
        %3895 = vmatpush.msra.mxu0 %v3177
        %3896 = vmatpush.msra.mxu0 %v3175
        %3897 = vmatpush.msra.mxu0 %v3173
        %3898 = vmatpush.msra.mxu0 %v3171
        %3899 = vmatpush.msra.mxu0 %v3169
        %3900 = vmatpush.msra.mxu0 %v3167
        %3901 = vmatpush.msra.mxu0 %v3165
        %3902 = vmatpush.msra.mxu0 %v3163
        %3903 = vmatpush.msra.mxu0 %v3161
        %3904 = vmatpush.msra.mxu0 %v3159
        %3905 = vmatpush.msra.mxu0 %v3157
        %3906 = vmatpush.msra.mxu0 %v3155
        %3907 = vmatpush.msra.mxu0 %v3153
        %3908 = vmatpush.msra.mxu0 %v3151
        %3909 = vmatpush.msra.mxu0 %v3149
        %3910 = vmatmul.f32.gmra.mxu0 %v3333
        %v3911 = vpop.f32.mrf.mxu0
        %v3912 = vadd.f32 %v3892, %v3911
        %3913 = vdwg.mxu0
        %3914 = vmatpush.msra.mxu0 %v3211
        %3915 = vmatpush.msra.mxu0 %v3209
        %3916 = vmatpush.msra.mxu0 %v3207
        %3917 = vmatpush.msra.mxu0 %v3205
        %3918 = vmatpush.msra.mxu0 %v3203
        %3919 = vmatpush.msra.mxu0 %v3201
        %3920 = vmatpush.msra.mxu0 %v3199
        %3921 = vmatpush.msra.mxu0 %v3197
        %3922 = vmatpush.msra.mxu0 %v3195
        %3923 = vmatpush.msra.mxu0 %v3193
        %3924 = vmatpush.msra.mxu0 %v3191
        %3925 = vmatpush.msra.mxu0 %v3189
        %3926 = vmatpush.msra.mxu0 %v3187
        %3927 = vmatpush.msra.mxu0 %v3185
        %3928 = vmatpush.msra.mxu0 %v3183
        %3929 = vmatpush.msra.mxu0 %v3181
        %3930 = vmatmul.f32.gmra.mxu0 %v3334
        %v3931 = vpop.f32.mrf.mxu0
        %v3932 = vadd.f32 %v3912, %v3931
        %3933 = vdwg.mxu0
        %3934 = vmatpush.msra.mxu0 %v3243
        %3935 = vmatpush.msra.mxu0 %v3241
        %3936 = vmatpush.msra.mxu0 %v3239
        %3937 = vmatpush.msra.mxu0 %v3237
        %3938 = vmatpush.msra.mxu0 %v3235
        %3939 = vmatpush.msra.mxu0 %v3233
        %3940 = vmatpush.msra.mxu0 %v3231
        %3941 = vmatpush.msra.mxu0 %v3229
        %3942 = vmatpush.msra.mxu0 %v3227
        %3943 = vmatpush.msra.mxu0 %v3225
        %3944 = vmatpush.msra.mxu0 %v3223
        %3945 = vmatpush.msra.mxu0 %v3221
        %3946 = vmatpush.msra.mxu0 %v3219
        %3947 = vmatpush.msra.mxu0 %v3217
        %3948 = vmatpush.msra.mxu0 %v3215
        %3949 = vmatpush.msra.mxu0 %v3213
        %3950 = vmatmul.f32.gmra.mxu0 %v3335
        %v3951 = vpop.f32.mrf.mxu0
        %v3952 = vadd.f32 %v3932, %v3951
        %3953 = vdwg.mxu0
        %3954 = vmatpush.msra.mxu0 %v3275
        %3955 = vmatpush.msra.mxu0 %v3273
        %3956 = vmatpush.msra.mxu0 %v3271
        %3957 = vmatpush.msra.mxu0 %v3269
        %3958 = vmatpush.msra.mxu0 %v3267
        %3959 = vmatpush.msra.mxu0 %v3265
        %3960 = vmatpush.msra.mxu0 %v3263
        %3961 = vmatpush.msra.mxu0 %v3261
        %3962 = vmatpush.msra.mxu0 %v3259
        %3963 = vmatpush.msra.mxu0 %v3257
        %3964 = vmatpush.msra.mxu0 %v3255
        %3965 = vmatpush.msra.mxu0 %v3253
        %3966 = vmatpush.msra.mxu0 %v3251
        %3967 = vmatpush.msra.mxu0 %v3249
        %3968 = vmatpush.msra.mxu0 %v3247
        %3969 = vmatpush.msra.mxu0 %v3245
        %3970 = vmatmul.f32.gmra.mxu0 %v3336
        %v3971 = vpop.f32.mrf.mxu0
        %v3972 = vadd.f32 %v3952, %v3971
        %3973 = vdwg.mxu0
        %3974 = vmatpush.msra.mxu0 %v3307
        %3975 = vmatpush.msra.mxu0 %v3305
        %3976 = vmatpush.msra.mxu0 %v3303
        %3977 = vmatpush.msra.mxu0 %v3301
        %3978 = vmatpush.msra.mxu0 %v3299
        %3979 = vmatpush.msra.mxu0 %v3297
        %3980 = vmatpush.msra.mxu0 %v3295
        %3981 = vmatpush.msra.mxu0 %v3293
        %3982 = vmatpush.msra.mxu0 %v3291
        %3983 = vmatpush.msra.mxu0 %v3289
        %3984 = vmatpush.msra.mxu0 %v3287
        %3985 = vmatpush.msra.mxu0 %v3285
        %3986 = vmatpush.msra.mxu0 %v3283
        %3987 = vmatpush.msra.mxu0 %v3281
        %3988 = vmatpush.msra.mxu0 %v3279
        %3989 = vmatpush.msra.mxu0 %v3277
        %3990 = vmatmul.f32.gmra.mxu0 %v3337
        %v3991 = vpop.f32.mrf.mxu0
        %v3992 = vadd.f32 %v3972, %v3991
        %3993 = vdwg.mxu0
        %v3996 = vrot.slane %v3992, 6
        %vm3997 = vcmask 1041408
        %v3998 = vsel %vm3997, %v3672, %v3996
        %v4000 = vadd.f32 %v3308, %v3998
        %4001 = vst [vmem:[%s206] sm:$0xf] %v4000
        %s4002 = sand.u32 %s115, 1
        %s4003 = scalar_lea.sflag [#allocation3], %s4002
        %s4004 = sand.u32 %s115, 1
        %s4005 = smul.addr %s4004, 4
        %s4006 = scalar_lea.vmem [#allocation2], %s4005
        // Predicated region
        $region37: #{tpu_custom_call.1} parent=31 // pred_check
          %p4007 = pneg %p125
        $region38: #{tpu_custom_call.1} parent=31 // pred_check_branch
          %4009 = sbr.rel (%p4007) target = $region40
        $region39: #{tpu_custom_call.1} parent=31 // pred_region
          %s4010 = smul.u32 2, %s21
          %4012 = vsyncadd %s4003, 0
          %s4013 = smul.addr %s4010, 2
          %s4014 = scalar_lea.hbm %s3, %s4013
          %s4016 = sshll.u32 %s4006, 4
          %s4017 = int_to_ptr.vmem [resolvable:$true] %s4016
          %s4018 = sshll.u32 %s4014, 4
          %s4019 = int_to_ptr.hbm [resolvable:$true] %s4018
          %4021 = dma.vmem_to_hbm [thread:$0]  %s4017, 64, %s4019, %s4003
        $region40: #{tpu_custom_call.1} parent=31 // pred_fallthru
          _
      $region32: #{tpu_custom_call.1} parent=5 // pred_fallthru
        _
      %p4022 = scmp.le.s32.totalorder 2, %s12
      // Predicated region
      $region41: #{tpu_custom_call.1} parent=5 // pred_check
        %p4023 = pneg %p4022
      $region42: #{tpu_custom_call.1} parent=5 // pred_check_branch
        %4025 = sbr.rel (%p4023) target = $region44
      $region43: #{tpu_custom_call.1} parent=5 // pred_region
        %s4026 = ssub.s32 %s12, 2
        // Predicated region
        $region45: #{tpu_custom_call.1} parent=43 // pred_check
          %p4027 = pneg %p131
        $region46: #{tpu_custom_call.1} parent=43 // pred_check_branch
          %4029 = sbr.rel (%p4027) target = $region48
        $region47: #{tpu_custom_call.1} parent=43 // pred_region
          %s4030 = sand.u32 %s116, 1
          %s4031 = scalar_lea.sflag [#allocation3], %s4030
          %s4032 = sand.u32 %s116, 1
          %s4033 = smul.addr %s4032, 4
          %s4034 = scalar_lea.vmem [#allocation2], %s4033
          %4036 = dma.done %s4031, 64
        $region48: #{tpu_custom_call.1} parent=43 // pred_fallthru
          _
      $region44: #{tpu_custom_call.1} parent=5 // pred_fallthru
        _
    $region6: #{tpu_custom_call.1} parent=1 // loop_footer
      %s16 = sadd.s32 1, %s12
    $region7: #{tpu_custom_call.1} parent=1 // loop_footer_branch
      %11 = sbr.rel target = $region3
    $region8: #{tpu_custom_call.1} parent=1 // loop_exit
      _
    %4037 = vsyncpa [#allocation3], 1
    %s4038 = scalar_lea.sflag [#allocation3], 1
    %4039 = vsyncpa %s4038, 1

</llo_original>
